<compile_context>
chip_gen: v5e
topology: v5e:2x2
jax: 0.10.0
libtpu: 0.0.40
codegen_flags: <defaults>
</compile_context>

<pallas_src>
import functools

import jax
import jax.numpy as jnp
from jax.experimental import pallas as pl
from jax.experimental.pallas import tpu as pltpu

_HP = jax.lax.Precision.HIGHEST


def lce_kernel(x_ref, wtap_ref, bias_ref, mask_ref, wf1_ref, wf2_ref,
               pool_ref, seg_ref, o_ref, *scratch, H, W, G, P, C):
    """One grid step: G packed groups of P lane-packed images, M = G*H*W rows."""
    HW = H * W
    M = G * HW
    PC = P * C

    x = x_ref[...]                                            # (M, PC) f32

    def tap(k):
        oy, ox = k // 3 - 1, k % 3 - 1
        s = oy * W + ox                    # flat row offset of this tap
        if s == 0:
            return x                       # centre tap: no roll, mask == 1
        # Sublane roll (XLU) + precomputed border mask; rows that wrap across an
        # image / group / block edge are exactly the masked-out rows.
        return pltpu.roll(x, shift=(-s) % M, axis=0) * mask_ref[k]

    if scratch:
        # P*C is 128-aligned: build the (M, 9*PC) im2col slab in VMEM with
        # lane-aligned stores and contract everything in a single MXU dot.
        lhs_ref, = scratch
        for k in range(9):
            lhs_ref[:, k * PC:(k + 1) * PC] = tap(k)
        h = jnp.dot(lhs_ref[...], wtap_ref[...],
                    preferred_element_type=jnp.float32) + bias_ref[...]
    else:
        # P*C not lane-aligned: 9 chained K=PC dots, straight accumulation into
        # one f32 value (MRB-friendly on v7x, no interleaved VPU work needed).
        h = bias_ref[...]
        for k in range(9):
            h = h + jnp.dot(tap(k), wtap_ref[k * PC:(k + 1) * PC, :],
                            preferred_element_type=jnp.float32)

    # conv[3]: LeakyReLU(0.2)
    xc = jnp.where(h > 0, h, 0.2 * h)                         # (M, PC)

    # Squeeze-excitation, batched over all G groups x P lane-packed images:
    #   per-image spatial mean  -> (G, PC)   via pooling matmul,
    #   fc1 -> ReLU -> fc2 -> sigmoid        (block-diagonal over packed images),
    #   gate broadcast back to all rows      via segment matmul,
    #   one full, unmasked store.
    y = jnp.dot(pool_ref[...], xc, preferred_element_type=jnp.float32)     # (G, PC)
    z = jnp.maximum(
        jnp.dot(y, wf1_ref[...], preferred_element_type=jnp.float32), 0.0)  # (G, P*Cr)
    gate = jax.nn.sigmoid(
        jnp.dot(z, wf2_ref[...], preferred_element_type=jnp.float32))       # (G, PC)
    gate_rows = jnp.dot(seg_ref[...], gate,
                        preferred_element_type=jnp.float32)                 # (M, PC)
    o_ref[...] = (xc * gate_rows).astype(o_ref.dtype)


def _block_diag(w, P):
    a, b = w.shape
    out = jnp.zeros((P * a, P * b), w.dtype)
    for p in range(P):
        out = out.at[p * a:(p + 1) * a, p * b:(p + 1) * b].set(w)
    return out


def local_context_extractor(x, params, pack=None, groups_per_block=1):
    """x: (B, H, W, C) float32 NHWC.  Returns (B, H, W, C) float32.

    pack:              images packed along the lane axis (default: fill 128 lanes).
    groups_per_block:  packed groups per grid step.  Guidance: v5e/v6e prefer one
                       big block for tiny batches; v7x prefers an even grid >= 2.
    """
    B, H, W, C = x.shape
    HW = H * W
    Cr = params["w1"].shape[1]
    assert HW % 8 == 0, "H*W must be a multiple of 8"

    # --- lane pack factor ---
    if pack is None:
        pack = max(1, min(B, 128 // C)) if C <= 128 else 1
        while B % pack:
            pack -= 1
    P = pack
    assert B % P == 0, "batch must be divisible by the lane-pack factor"
    PC = P * C
    NG = B // P                          # number of packed groups
    G = groups_per_block
    assert NG % G == 0, "packed groups must be divisible by groups_per_block"
    M = G * HW                           # rows per grid step

    w1, b1 = params["w1"], params["b1"]
    w2, b2 = params["w2"], params["b2"]
    w3, b3 = params["w3"], params["b3"]
    wf1, wf2 = params["wf1"], params["wf2"]

    # --- offline weight composition:  conv0 o conv1 o conv2 per tap ---
    w23 = jnp.einsum("yxio,oc->yxic", w2, w3, precision=_HP)       # (3,3,Cr,C)
    w123 = jnp.einsum("ij,yxjc->yxic", w1, w23, precision=_HP)     # (3,3,C,C)
    w9 = w123.reshape(9, C, C)

    # per-pixel bias map (b1 interacts with the SAME zero padding of conv[1])
    b23 = jnp.dot(b2, w3, precision=_HP) + b3                      # (1, C)
    btap = jnp.einsum("i,yxic->yxc", b1[0], w23,
                      precision=_HP).reshape(9, C)                 # (9, C)

    # border-validity masks, one per tap, same for every image
    rr = jnp.arange(HW)
    row, col = rr // W, rr % W
    masks = []
    for oy in (-1, 0, 1):
        for ox in (-1, 0, 1):
            ok = ((row + oy >= 0) & (row + oy <= H - 1) &
                  (col + ox >= 0) & (col + ox <= W - 1))
            masks.append(ok)
    mask9 = jnp.stack(masks, 0).astype(jnp.float32)                # (9, HW)
    bias_hw = jnp.einsum("kp,kc->pc", mask9, btap, precision=_HP) + b23   # (HW, C)

    # --- lane-pack / block-diagonal expansion of all weights & constants ---
    Wtap = jnp.zeros((9, PC, PC), jnp.float32)
    for p in range(P):
        Wtap = Wtap.at[:, p * C:(p + 1) * C, p * C:(p + 1) * C].set(w9)
    Wtap = Wtap.reshape(9 * PC, PC)                                # (9*PC, PC)
    Wf1b = _block_diag(wf1, P)                                     # (PC, P*Cr)
    Wf2b = _block_diag(wf2, P)                                     # (P*Cr, PC)

    bias_blk = jnp.tile(bias_hw, (G, P))                           # (M, PC)
    mask_blk = jnp.tile(jnp.broadcast_to(mask9[:, :, None], (9, HW, PC)),
                        (1, G, 1))                                 # (9, M, PC)

    # segment pooling (mean) / broadcast-back matrices for the batched SE
    gid = jnp.repeat(jnp.arange(G), HW)                            # (M,)
    seg = (gid[:, None] == jnp.arange(G)[None, :]).astype(jnp.float32)   # (M, G)
    pool = seg.T * (1.0 / float(HW))                               # (G, M)

    # pack: (B,H,W,C) -> (NG*HW, P*C), image p of each group along the lanes
    xp = jnp.transpose(x.reshape(NG, P, HW, C), (0, 2, 1, 3)).reshape(NG * HW, PC)

    kernel = functools.partial(lce_kernel, H=H, W=W, G=G, P=P, C=C)

    def full_spec(a):
        nd = a.ndim
        return pl.BlockSpec(a.shape, lambda b, _nd=nd: (0,) * _nd)

    single_dot = (PC % 128 == 0)
    scratch_shapes = ([pltpu.VMEM((M, 9 * PC), jnp.float32)]
                      if single_dot else [])

    grid_spec = pltpu.PrefetchScalarGridSpec(
        num_scalar_prefetch=0,
        grid=(NG // G,),
        in_specs=[
            pl.BlockSpec((M, PC), lambda b: (b, 0)),
            full_spec(Wtap), full_spec(bias_blk), full_spec(mask_blk),
            full_spec(Wf1b), full_spec(Wf2b),
            full_spec(pool), full_spec(seg),
        ],
        out_specs=pl.BlockSpec((M, PC), lambda b: (b, 0)),
        scratch_shapes=scratch_shapes,
    )

    cost = pl.CostEstimate(
        flops=int(2 * B * HW * 9 * C * C            # folded 3x3 contraction
                  + 2 * B * (C * Cr + Cr * C)       # SE matmuls
                  + 12 * B * HW * C),               # rolls/masks/act/gate
        transcendentals=int(B * C),                 # sigmoid
        bytes_accessed=int(4 * (2 * B * HW * C + Wtap.size + bias_blk.size
                                + mask_blk.size + Wf1b.size + Wf2b.size
                                + pool.size + seg.size)),
    )

    out = pl.pallas_call(
        kernel,
        out_shape=jax.ShapeDtypeStruct((NG * HW, PC), jnp.float32),
        grid_spec=grid_spec,
        compiler_params=pltpu.CompilerParams(
            dimension_semantics=("parallel",)),
        cost_estimate=cost,
    )(xp, Wtap, bias_blk, mask_blk, Wf1b, Wf2b, pool, seg)

    # unpack: (NG*HW, P*C) -> (B, H, W, C)
    return jnp.transpose(out.reshape(NG, HW, P, C), (0, 2, 1, 3)).reshape(B, H, W, C)


def reference(x, params):
    """Pure-JAX reference (NHWC) matching the PyTorch forward semantics."""
    w1, b1 = params["w1"], params["b1"]
    w2, b2 = params["w2"], params["b2"]
    w3, b3 = params["w3"], params["b3"]
    wf1, wf2 = params["wf1"], params["wf2"]
    C, Cr = w1.shape
    dn = ("NHWC", "HWIO", "NHWC")
    h1 = jax.lax.conv_general_dilated(x, w1.reshape(1, 1, C, Cr), (1, 1), "VALID",
                                      dimension_numbers=dn, precision=_HP) + b1
    h2 = jax.lax.conv_general_dilated(h1, w2, (1, 1), "SAME",
                                      dimension_numbers=dn, precision=_HP) + b2
    h3 = jax.lax.conv_general_dilated(h2, w3.reshape(1, 1, Cr, C), (1, 1), "VALID",
                                      dimension_numbers=dn, precision=_HP) + b3
    xc = jnp.where(h3 > 0, h3, 0.2 * h3)             # LeakyReLU(0.2)
    y = jnp.mean(xc, axis=(1, 2))                    # (B, C)
    z = jnp.maximum(jnp.dot(y, wf1, precision=_HP), 0.0)
    s = jax.nn.sigmoid(jnp.dot(z, wf2, precision=_HP))
    return xc * s[:, None, None, :]


if __name__ == "__main__":
    dim, reduction = 32, 8
    C, Cr = dim, dim // reduction

    key = jax.random.PRNGKey(0)
    ks = jax.random.split(key, 10)
    params = {
        "w1":  0.1 * jax.random.normal(ks[0], (C, Cr), jnp.float32),
        "b1":  0.1 * jax.random.normal(ks[1], (1, Cr), jnp.float32),
        "w2":  0.1 * jax.random.normal(ks[2], (3, 3, Cr, Cr), jnp.float32),
        "b2":  0.1 * jax.random.normal(ks[3], (1, Cr), jnp.float32),
        "w3":  0.1 * jax.random.normal(ks[4], (Cr, C), jnp.float32),
        "b3":  0.1 * jax.random.normal(ks[5], (1, C), jnp.float32),
        "wf1": 0.1 * jax.random.normal(ks[6], (C, Cr), jnp.float32),
        "wf2": 0.1 * jax.random.normal(ks[7], (Cr, C), jnp.float32),
    }

    def check(x, **kw):
        out = jax.block_until_ready(local_context_extractor(x, params, **kw))
        ref = jax.block_until_ready(reference(x, params))
        assert out.shape == x.shape
        err = float(jnp.max(jnp.abs(out - ref)))
        assert jnp.allclose(out, ref, atol=2e-4, rtol=2e-4), (
            f"mismatch vs reference: max abs err {err}")

    # case 1: B=2, H=W=16 -> pack=2 (64 lanes), chained-dot path, grid=(1,)
    check(jax.random.normal(ks[8], (2, 16, 16, C), jnp.float32))
    # case 2: B=8, H=W=8  -> pack=4 (128 lanes), single-dot im2col path, grid=(2,)
    check(jax.random.normal(ks[9], (8, 8, 8, C), jnp.float32))
    # case 3: same, 2 packed groups per block (G=2) -> single big block, grid=(1,)
    check(jax.random.normal(ks[9], (8, 8, 8, C), jnp.float32), groups_per_block=2)

    print("KERNEL_OK")
</pallas_src>

<mosaic_0001>
module attributes {stable_mosaic.version = 11 : i64} {
  func.func @lce_kernel(%arg0: i32, %arg1: memref<256x64xf32, #tpu.memory_space<vmem>>, %arg2: memref<576x64xf32, #tpu.memory_space<vmem>>, %arg3: memref<256x64xf32, #tpu.memory_space<vmem>>, %arg4: memref<9x256x64xf32, #tpu.memory_space<vmem>>, %arg5: memref<64x8xf32, #tpu.memory_space<vmem>>, %arg6: memref<8x64xf32, #tpu.memory_space<vmem>>, %arg7: memref<1x256xf32, #tpu.memory_space<vmem>>, %arg8: memref<256x1xf32, #tpu.memory_space<vmem>>, %arg9: memref<256x64xf32, #tpu.memory_space<vmem>>) attributes {dimension_semantics = [#tpu.dimension_semantics<parallel>], iteration_bounds = array<i64: 1>, scalar_prefetch = 0 : i64, scratch_operands = 0 : i64, tpu.core_type = #tpu.core_type<tc>, window_params = [{transform_indices = @transform_0, window_bounds = array<i64: 256, 64>}, {pipeline_mode = #tpu.pipeline_mode<synchronous>, transform_indices = @transform_1, window_bounds = array<i64: 576, 64>}, {pipeline_mode = #tpu.pipeline_mode<synchronous>, transform_indices = @transform_2, window_bounds = array<i64: 256, 64>}, {pipeline_mode = #tpu.pipeline_mode<synchronous>, transform_indices = @transform_3, window_bounds = array<i64: 9, 256, 64>}, {pipeline_mode = #tpu.pipeline_mode<synchronous>, transform_indices = @transform_4, window_bounds = array<i64: 64, 8>}, {pipeline_mode = #tpu.pipeline_mode<synchronous>, transform_indices = @transform_5, window_bounds = array<i64: 8, 64>}, {pipeline_mode = #tpu.pipeline_mode<synchronous>, transform_indices = @transform_6, window_bounds = array<i64: 1, 256>}, {pipeline_mode = #tpu.pipeline_mode<synchronous>, transform_indices = @transform_7, window_bounds = array<i64: 256, 1>}, {transform_indices = @transform_8, window_bounds = array<i64: 256, 64>}]} {
    %c0 = arith.constant 0 : index
    %c0_0 = arith.constant 0 : index
    %0 = vector.load %arg1[%c0, %c0_0] : memref<256x64xf32, #tpu.memory_space<vmem>>, vector<256x64xf32>
    %c0_1 = arith.constant 0 : index
    %c0_2 = arith.constant 0 : index
    %1 = vector.load %arg3[%c0_1, %c0_2] : memref<256x64xf32, #tpu.memory_space<vmem>>, vector<256x64xf32>
    %c17_i32 = arith.constant 17 : i32
    %2 = tpu.dynamic_rotate %0 by %c17_i32 dim 0 : vector<256x64xf32>, i32 -> vector<256x64xf32>
    %c0_3 = arith.constant 0 : index
    %c0_4 = arith.constant 0 : index
    %c0_5 = arith.constant 0 : index
    %3 = vector.load %arg4[%c0_3, %c0_4, %c0_5] : memref<9x256x64xf32, #tpu.memory_space<vmem>>, vector<1x256x64xf32>
    %4 = vector.shape_cast %3 : vector<1x256x64xf32> to vector<256x64xf32>
    %5 = arith.mulf %2, %4 : vector<256x64xf32>
    %c0_6 = arith.constant 0 : index
    %c0_7 = arith.constant 0 : index
    %6 = vector.load %arg2[%c0_6, %c0_7] : memref<576x64xf32, #tpu.memory_space<vmem>>, vector<64x64xf32>
    %cst = arith.constant dense<0.000000e+00> : vector<256x64xf32>
    %7 = tpu.matmul %5, %6, %cst {dimension_numbers = #tpu.dot_dimension_numbers<[1], [0], [0], [1], [0, 0, 1, 1], [], []>} : vector<256x64xf32>, vector<64x64xf32>, vector<256x64xf32> -> vector<256x64xf32>
    %8 = arith.addf %1, %7 : vector<256x64xf32>
    %c16_i32 = arith.constant 16 : i32
    %9 = tpu.dynamic_rotate %0 by %c16_i32 dim 0 : vector<256x64xf32>, i32 -> vector<256x64xf32>
    %c1 = arith.constant 1 : index
    %c0_8 = arith.constant 0 : index
    %c0_9 = arith.constant 0 : index
    %10 = vector.load %arg4[%c1, %c0_8, %c0_9] : memref<9x256x64xf32, #tpu.memory_space<vmem>>, vector<1x256x64xf32>
    %11 = vector.shape_cast %10 : vector<1x256x64xf32> to vector<256x64xf32>
    %12 = arith.mulf %9, %11 : vector<256x64xf32>
    %c64 = arith.constant 64 : index
    %c0_10 = arith.constant 0 : index
    %13 = vector.load %arg2[%c64, %c0_10] : memref<576x64xf32, #tpu.memory_space<vmem>>, vector<64x64xf32>
    %cst_11 = arith.constant dense<0.000000e+00> : vector<256x64xf32>
    %14 = tpu.matmul %12, %13, %cst_11 {dimension_numbers = #tpu.dot_dimension_numbers<[1], [0], [0], [1], [0, 0, 1, 1], [], []>} : vector<256x64xf32>, vector<64x64xf32>, vector<256x64xf32> -> vector<256x64xf32>
    %15 = arith.addf %8, %14 : vector<256x64xf32>
    %c15_i32 = arith.constant 15 : i32
    %16 = tpu.dynamic_rotate %0 by %c15_i32 dim 0 : vector<256x64xf32>, i32 -> vector<256x64xf32>
    %c2 = arith.constant 2 : index
    %c0_12 = arith.constant 0 : index
    %c0_13 = arith.constant 0 : index
    %17 = vector.load %arg4[%c2, %c0_12, %c0_13] : memref<9x256x64xf32, #tpu.memory_space<vmem>>, vector<1x256x64xf32>
    %18 = vector.shape_cast %17 : vector<1x256x64xf32> to vector<256x64xf32>
    %19 = arith.mulf %16, %18 : vector<256x64xf32>
    %c128 = arith.constant 128 : index
    %c0_14 = arith.constant 0 : index
    %20 = vector.load %arg2[%c128, %c0_14] : memref<576x64xf32, #tpu.memory_space<vmem>>, vector<64x64xf32>
    %cst_15 = arith.constant dense<0.000000e+00> : vector<256x64xf32>
    %21 = tpu.matmul %19, %20, %cst_15 {dimension_numbers = #tpu.dot_dimension_numbers<[1], [0], [0], [1], [0, 0, 1, 1], [], []>} : vector<256x64xf32>, vector<64x64xf32>, vector<256x64xf32> -> vector<256x64xf32>
    %22 = arith.addf %15, %21 : vector<256x64xf32>
    %c1_i32 = arith.constant 1 : i32
    %23 = tpu.dynamic_rotate %0 by %c1_i32 dim 0 : vector<256x64xf32>, i32 -> vector<256x64xf32>
    %c3 = arith.constant 3 : index
    %c0_16 = arith.constant 0 : index
    %c0_17 = arith.constant 0 : index
    %24 = vector.load %arg4[%c3, %c0_16, %c0_17] : memref<9x256x64xf32, #tpu.memory_space<vmem>>, vector<1x256x64xf32>
    %25 = vector.shape_cast %24 : vector<1x256x64xf32> to vector<256x64xf32>
    %26 = arith.mulf %23, %25 : vector<256x64xf32>
    %c192 = arith.constant 192 : index
    %c0_18 = arith.constant 0 : index
    %27 = vector.load %arg2[%c192, %c0_18] : memref<576x64xf32, #tpu.memory_space<vmem>>, vector<64x64xf32>
    %cst_19 = arith.constant dense<0.000000e+00> : vector<256x64xf32>
    %28 = tpu.matmul %26, %27, %cst_19 {dimension_numbers = #tpu.dot_dimension_numbers<[1], [0], [0], [1], [0, 0, 1, 1], [], []>} : vector<256x64xf32>, vector<64x64xf32>, vector<256x64xf32> -> vector<256x64xf32>
    %29 = arith.addf %22, %28 : vector<256x64xf32>
    %c256 = arith.constant 256 : index
    %c0_20 = arith.constant 0 : index
    %30 = vector.load %arg2[%c256, %c0_20] : memref<576x64xf32, #tpu.memory_space<vmem>>, vector<64x64xf32>
    %cst_21 = arith.constant dense<0.000000e+00> : vector<256x64xf32>
    %31 = tpu.matmul %0, %30, %cst_21 {dimension_numbers = #tpu.dot_dimension_numbers<[1], [0], [0], [1], [0, 0, 1, 1], [], []>} : vector<256x64xf32>, vector<64x64xf32>, vector<256x64xf32> -> vector<256x64xf32>
    %32 = arith.addf %29, %31 : vector<256x64xf32>
    %c255_i32 = arith.constant 255 : i32
    %33 = tpu.dynamic_rotate %0 by %c255_i32 dim 0 : vector<256x64xf32>, i32 -> vector<256x64xf32>
    %c5 = arith.constant 5 : index
    %c0_22 = arith.constant 0 : index
    %c0_23 = arith.constant 0 : index
    %34 = vector.load %arg4[%c5, %c0_22, %c0_23] : memref<9x256x64xf32, #tpu.memory_space<vmem>>, vector<1x256x64xf32>
    %35 = vector.shape_cast %34 : vector<1x256x64xf32> to vector<256x64xf32>
    %36 = arith.mulf %33, %35 : vector<256x64xf32>
    %c320 = arith.constant 320 : index
    %c0_24 = arith.constant 0 : index
    %37 = vector.load %arg2[%c320, %c0_24] : memref<576x64xf32, #tpu.memory_space<vmem>>, vector<64x64xf32>
    %cst_25 = arith.constant dense<0.000000e+00> : vector<256x64xf32>
    %38 = tpu.matmul %36, %37, %cst_25 {dimension_numbers = #tpu.dot_dimension_numbers<[1], [0], [0], [1], [0, 0, 1, 1], [], []>} : vector<256x64xf32>, vector<64x64xf32>, vector<256x64xf32> -> vector<256x64xf32>
    %39 = arith.addf %32, %38 : vector<256x64xf32>
    %c241_i32 = arith.constant 241 : i32
    %40 = tpu.dynamic_rotate %0 by %c241_i32 dim 0 : vector<256x64xf32>, i32 -> vector<256x64xf32>
    %c6 = arith.constant 6 : index
    %c0_26 = arith.constant 0 : index
    %c0_27 = arith.constant 0 : index
    %41 = vector.load %arg4[%c6, %c0_26, %c0_27] : memref<9x256x64xf32, #tpu.memory_space<vmem>>, vector<1x256x64xf32>
    %42 = vector.shape_cast %41 : vector<1x256x64xf32> to vector<256x64xf32>
    %43 = arith.mulf %40, %42 : vector<256x64xf32>
    %c384 = arith.constant 384 : index
    %c0_28 = arith.constant 0 : index
    %44 = vector.load %arg2[%c384, %c0_28] : memref<576x64xf32, #tpu.memory_space<vmem>>, vector<64x64xf32>
    %cst_29 = arith.constant dense<0.000000e+00> : vector<256x64xf32>
    %45 = tpu.matmul %43, %44, %cst_29 {dimension_numbers = #tpu.dot_dimension_numbers<[1], [0], [0], [1], [0, 0, 1, 1], [], []>} : vector<256x64xf32>, vector<64x64xf32>, vector<256x64xf32> -> vector<256x64xf32>
    %46 = arith.addf %39, %45 : vector<256x64xf32>
    %c240_i32 = arith.constant 240 : i32
    %47 = tpu.dynamic_rotate %0 by %c240_i32 dim 0 : vector<256x64xf32>, i32 -> vector<256x64xf32>
    %c7 = arith.constant 7 : index
    %c0_30 = arith.constant 0 : index
    %c0_31 = arith.constant 0 : index
    %48 = vector.load %arg4[%c7, %c0_30, %c0_31] : memref<9x256x64xf32, #tpu.memory_space<vmem>>, vector<1x256x64xf32>
    %49 = vector.shape_cast %48 : vector<1x256x64xf32> to vector<256x64xf32>
    %50 = arith.mulf %47, %49 : vector<256x64xf32>
    %c448 = arith.constant 448 : index
    %c0_32 = arith.constant 0 : index
    %51 = vector.load %arg2[%c448, %c0_32] : memref<576x64xf32, #tpu.memory_space<vmem>>, vector<64x64xf32>
    %cst_33 = arith.constant dense<0.000000e+00> : vector<256x64xf32>
    %52 = tpu.matmul %50, %51, %cst_33 {dimension_numbers = #tpu.dot_dimension_numbers<[1], [0], [0], [1], [0, 0, 1, 1], [], []>} : vector<256x64xf32>, vector<64x64xf32>, vector<256x64xf32> -> vector<256x64xf32>
    %53 = arith.addf %46, %52 : vector<256x64xf32>
    %c239_i32 = arith.constant 239 : i32
    %54 = tpu.dynamic_rotate %0 by %c239_i32 dim 0 : vector<256x64xf32>, i32 -> vector<256x64xf32>
    %c8 = arith.constant 8 : index
    %c0_34 = arith.constant 0 : index
    %c0_35 = arith.constant 0 : index
    %55 = vector.load %arg4[%c8, %c0_34, %c0_35] : memref<9x256x64xf32, #tpu.memory_space<vmem>>, vector<1x256x64xf32>
    %56 = vector.shape_cast %55 : vector<1x256x64xf32> to vector<256x64xf32>
    %57 = arith.mulf %54, %56 : vector<256x64xf32>
    %c512 = arith.constant 512 : index
    %c0_36 = arith.constant 0 : index
    %58 = vector.load %arg2[%c512, %c0_36] : memref<576x64xf32, #tpu.memory_space<vmem>>, vector<64x64xf32>
    %cst_37 = arith.constant dense<0.000000e+00> : vector<256x64xf32>
    %59 = tpu.matmul %57, %58, %cst_37 {dimension_numbers = #tpu.dot_dimension_numbers<[1], [0], [0], [1], [0, 0, 1, 1], [], []>} : vector<256x64xf32>, vector<64x64xf32>, vector<256x64xf32> -> vector<256x64xf32>
    %60 = arith.addf %53, %59 : vector<256x64xf32>
    %cst_38 = arith.constant 0.000000e+00 : f32
    %61 = vector.broadcast %cst_38 : f32 to vector<256x64xf32>
    %62 = arith.cmpf ogt, %60, %61 : vector<256x64xf32>
    %cst_39 = arith.constant 2.000000e-01 : f32
    %63 = vector.broadcast %cst_39 : f32 to vector<256x64xf32>
    %64 = arith.mulf %63, %60 : vector<256x64xf32>
    %65 = arith.select %62, %60, %64 : vector<256x64xi1>, vector<256x64xf32>
    %c0_40 = arith.constant 0 : index
    %c0_41 = arith.constant 0 : index
    %66 = vector.load %arg7[%c0_40, %c0_41] : memref<1x256xf32, #tpu.memory_space<vmem>>, vector<1x256xf32>
    %cst_42 = arith.constant dense<0.000000e+00> : vector<1x64xf32>
    %67 = tpu.matmul %66, %65, %cst_42 {dimension_numbers = #tpu.dot_dimension_numbers<[1], [0], [0], [1], [0, 0, 1, 1], [], []>} : vector<1x256xf32>, vector<256x64xf32>, vector<1x64xf32> -> vector<1x64xf32>
    %c0_43 = arith.constant 0 : index
    %c0_44 = arith.constant 0 : index
    %68 = vector.load %arg5[%c0_43, %c0_44] : memref<64x8xf32, #tpu.memory_space<vmem>>, vector<64x8xf32>
    %cst_45 = arith.constant dense<0.000000e+00> : vector<1x8xf32>
    %69 = tpu.matmul %67, %68, %cst_45 {dimension_numbers = #tpu.dot_dimension_numbers<[1], [0], [0], [1], [0, 0, 1, 1], [], []>} : vector<1x64xf32>, vector<64x8xf32>, vector<1x8xf32> -> vector<1x8xf32>
    %cst_46 = arith.constant 0.000000e+00 : f32
    %70 = vector.broadcast %cst_46 : f32 to vector<1x8xf32>
    %71 = arith.maximumf %69, %70 : vector<1x8xf32>
    %c0_47 = arith.constant 0 : index
    %c0_48 = arith.constant 0 : index
    %72 = vector.load %arg6[%c0_47, %c0_48] : memref<8x64xf32, #tpu.memory_space<vmem>>, vector<8x64xf32>
    %cst_49 = arith.constant dense<0.000000e+00> : vector<1x64xf32>
    %73 = tpu.matmul %71, %72, %cst_49 {dimension_numbers = #tpu.dot_dimension_numbers<[1], [0], [0], [1], [0, 0, 1, 1], [], []>} : vector<1x8xf32>, vector<8x64xf32>, vector<1x64xf32> -> vector<1x64xf32>
    %74 = arith.negf %73 : vector<1x64xf32>
    %75 = math.exp %74 : vector<1x64xf32>
    %cst_50 = arith.constant 1.000000e+00 : f32
    %76 = vector.broadcast %cst_50 : f32 to vector<1x64xf32>
    %77 = arith.addf %76, %75 : vector<1x64xf32>
    %78 = arith.divf %76, %77 : vector<1x64xf32>
    %c0_51 = arith.constant 0 : index
    %c0_52 = arith.constant 0 : index
    %79 = vector.load %arg8[%c0_51, %c0_52] : memref<256x1xf32, #tpu.memory_space<vmem>>, vector<256x1xf32>
    %cst_53 = arith.constant dense<0.000000e+00> : vector<256x64xf32>
    %80 = tpu.matmul %79, %78, %cst_53 {dimension_numbers = #tpu.dot_dimension_numbers<[1], [0], [0], [1], [0, 0, 1, 1], [], []>} : vector<256x1xf32>, vector<1x64xf32>, vector<256x64xf32> -> vector<256x64xf32>
    %81 = arith.mulf %65, %80 : vector<256x64xf32>
    %c0_54 = arith.constant 0 : index
    %c0_55 = arith.constant 0 : index
    %82 = vector.load %arg9[%c0_54, %c0_55] : memref<256x64xf32, #tpu.memory_space<vmem>>, vector<256x64xf32>
    tpu.vector_store %arg9[%c0_54, %c0_55], %81 {strides = array<i32>} : memref<256x64xf32, #tpu.memory_space<vmem>>, vector<256x64xf32>,
    return
  }
  func.func @transform_0(%arg0: i32) -> (i32, i32) {
    %c0_i32 = arith.constant 0 : i32
    %c0_i32_0 = arith.constant 0 : i32
    return %arg0, %c0_i32 : i32, i32
  }
  func.func @transform_1(%arg0: i32) -> (i32, i32) {
    %c0_i32 = arith.constant 0 : i32
    %c0_i32_0 = arith.constant 0 : i32
    %c0_i32_1 = arith.constant 0 : i32
    return %c0_i32, %c0_i32_0 : i32, i32
  }
  func.func @transform_2(%arg0: i32) -> (i32, i32) {
    %c0_i32 = arith.constant 0 : i32
    %c0_i32_0 = arith.constant 0 : i32
    %c0_i32_1 = arith.constant 0 : i32
    return %c0_i32, %c0_i32_0 : i32, i32
  }
  func.func @transform_3(%arg0: i32) -> (i32, i32, i32) {
    %c0_i32 = arith.constant 0 : i32
    %c0_i32_0 = arith.constant 0 : i32
    %c0_i32_1 = arith.constant 0 : i32
    %c0_i32_2 = arith.constant 0 : i32
    return %c0_i32, %c0_i32_0, %c0_i32_1 : i32, i32, i32
  }
  func.func @transform_4(%arg0: i32) -> (i32, i32) {
    %c0_i32 = arith.constant 0 : i32
    %c0_i32_0 = arith.constant 0 : i32
    %c0_i32_1 = arith.constant 0 : i32
    return %c0_i32, %c0_i32_0 : i32, i32
  }
  func.func @transform_5(%arg0: i32) -> (i32, i32) {
    %c0_i32 = arith.constant 0 : i32
    %c0_i32_0 = arith.constant 0 : i32
    %c0_i32_1 = arith.constant 0 : i32
    return %c0_i32, %c0_i32_0 : i32, i32
  }
  func.func @transform_6(%arg0: i32) -> (i32, i32) {
    %c0_i32 = arith.constant 0 : i32
    %c0_i32_0 = arith.constant 0 : i32
    %c0_i32_1 = arith.constant 0 : i32
    return %c0_i32, %c0_i32_0 : i32, i32
  }
  func.func @transform_7(%arg0: i32) -> (i32, i32) {
    %c0_i32 = arith.constant 0 : i32
    %c0_i32_0 = arith.constant 0 : i32
    %c0_i32_1 = arith.constant 0 : i32
    return %c0_i32, %c0_i32_0 : i32, i32
  }
  func.func @transform_8(%arg0: i32) -> (i32, i32) {
    %c0_i32 = arith.constant 0 : i32
    %c0_i32_0 = arith.constant 0 : i32
    return %arg0, %c0_i32 : i32, i32
  }
}

</mosaic_0001>

<llo_original>
// kernel: tpu_custom_call.1
$region0: #{tpu_custom_call.1}
  #allocation0 [shape = 'u32[]', space=smem, size = 0x4, offset = 0x4, fixed_abs, tag = 'smem constant byte address 0x4 - core index']
  #allocation1 [shape = 'u32[72,128]{1,0:T(1,128)}', space=vmem, size = 0x9000, scoped, tag = 'internal scratch']
  %s0 = inlined_call_operand.vmem [shape: f32[256,64], index: 0, kind: input, shape index: {}]
  %s1 = inlined_call_operand.vmem [shape: f32[576,64], index: 1, kind: input, shape index: {}]
  %s2 = inlined_call_operand.vmem [shape: f32[256,64], index: 2, kind: input, shape index: {}]
  %s3 = inlined_call_operand.vmem [shape: f32[9,256,64], index: 3, kind: input, shape index: {}]
  %s4 = inlined_call_operand.vmem [shape: f32[64,8], index: 4, kind: input, shape index: {}]
  %s5 = inlined_call_operand.vmem [shape: f32[8,64], index: 5, kind: input, shape index: {}]
  %s6 = inlined_call_operand.vmem [shape: f32[1,256], index: 6, kind: input, shape index: {}]
  %s7 = inlined_call_operand.vmem [shape: f32[256,1], index: 7, kind: input, shape index: {}]
  %s8 = inlined_call_operand.vmem [shape: f32[256,64], index: 8, kind: output, shape index: {}]
  %s9 = sld [smem:[#allocation0]]
  $region42: #{tpu_custom_call.1} parent=0
    _
  %s11 = ssub.s32 1, %s9
  %s12 = scalar_select 0, %s11, %s9
  // Predicated region
  $region2: #{tpu_custom_call.1} parent=0 // pred_check
    _
  $region3: #{tpu_custom_call.1} parent=0 // pred_check_branch
    %14 = sbr.rel (0) target = $region5
  $region4: #{tpu_custom_call.1} parent=0 // pred_region
    _
  $region5: #{tpu_custom_call.1} parent=0 // pred_fallthru
    _
  // Predicated region
  $region6: #{tpu_custom_call.1} parent=0 // pred_check
    _
  $region7: #{tpu_custom_call.1} parent=0 // pred_check_branch
    %16 = sbr.rel (0) target = $region9
  $region8: #{tpu_custom_call.1} parent=0 // pred_region
    _
  $region9: #{tpu_custom_call.1} parent=0 // pred_fallthru
    _
  // Predicated region
  $region10: #{tpu_custom_call.1} parent=0 // pred_check
    _
  $region11: #{tpu_custom_call.1} parent=0 // pred_check_branch
    %18 = sbr.rel (0) target = $region13
  $region12: #{tpu_custom_call.1} parent=0 // pred_region
    _
  $region13: #{tpu_custom_call.1} parent=0 // pred_fallthru
    _
  // Predicated region
  $region14: #{tpu_custom_call.1} parent=0 // pred_check
    _
  $region15: #{tpu_custom_call.1} parent=0 // pred_check_branch
    %20 = sbr.rel (0) target = $region17
  $region16: #{tpu_custom_call.1} parent=0 // pred_region
    _
  $region17: #{tpu_custom_call.1} parent=0 // pred_fallthru
    _
  // Predicated region
  $region18: #{tpu_custom_call.1} parent=0 // pred_check
    _
  $region19: #{tpu_custom_call.1} parent=0 // pred_check_branch
    %22 = sbr.rel (0) target = $region21
  $region20: #{tpu_custom_call.1} parent=0 // pred_region
    _
  $region21: #{tpu_custom_call.1} parent=0 // pred_fallthru
    _
  // Predicated region
  $region22: #{tpu_custom_call.1} parent=0 // pred_check
    _
  $region23: #{tpu_custom_call.1} parent=0 // pred_check_branch
    %24 = sbr.rel (0) target = $region25
  $region24: #{tpu_custom_call.1} parent=0 // pred_region
    _
  $region25: #{tpu_custom_call.1} parent=0 // pred_fallthru
    _
  // Predicated region
  $region26: #{tpu_custom_call.1} parent=0 // pred_check
    _
  $region27: #{tpu_custom_call.1} parent=0 // pred_check_branch
    %26 = sbr.rel (0) target = $region29
  $region28: #{tpu_custom_call.1} parent=0 // pred_region
    _
  $region29: #{tpu_custom_call.1} parent=0 // pred_fallthru
    _
  // Predicated region
  $region30: #{tpu_custom_call.1} parent=0 // pred_check
    _
  $region31: #{tpu_custom_call.1} parent=0 // pred_check_branch
    %28 = sbr.rel (0) target = $region33
  $region32: #{tpu_custom_call.1} parent=0 // pred_region
    _
  $region33: #{tpu_custom_call.1} parent=0 // pred_fallthru
    _
  %v29 = vld [vmem:[%s0] sm:$0xff]
  %v30 = vld [vmem:[%s0 + $0x8] sm:$0xff]
  %v31 = vld [vmem:[%s0 + $0x10] sm:$0xff]
  %v32 = vld [vmem:[%s0 + $0x18] sm:$0xff]
  %v33 = vld [vmem:[%s0 + $0x20] sm:$0xff]
  %v34 = vld [vmem:[%s0 + $0x28] sm:$0xff]
  %v35 = vld [vmem:[%s0 + $0x30] sm:$0xff]
  %v36 = vld [vmem:[%s0 + $0x38] sm:$0xff]
  %v37 = vld [vmem:[%s0 + $0x40] sm:$0xff]
  %v38 = vld [vmem:[%s0 + $0x48] sm:$0xff]
  %v39 = vld [vmem:[%s0 + $0x50] sm:$0xff]
  %v40 = vld [vmem:[%s0 + $0x58] sm:$0xff]
  %v41 = vld [vmem:[%s0 + $0x60] sm:$0xff]
  %v42 = vld [vmem:[%s0 + $0x68] sm:$0xff]
  %v43 = vld [vmem:[%s0 + $0x70] sm:$0xff]
  %v44 = vld [vmem:[%s0 + $0x78] sm:$0xff]
  %v45 = vld [vmem:[%s0 + $0x80] sm:$0xff]
  %v46 = vld [vmem:[%s0 + $0x88] sm:$0xff]
  %v47 = vld [vmem:[%s0 + $0x90] sm:$0xff]
  %v48 = vld [vmem:[%s0 + $0x98] sm:$0xff]
  %v49 = vld [vmem:[%s0 + $0xa0] sm:$0xff]
  %v50 = vld [vmem:[%s0 + $0xa8] sm:$0xff]
  %v51 = vld [vmem:[%s0 + $0xb0] sm:$0xff]
  %v52 = vld [vmem:[%s0 + $0xb8] sm:$0xff]
  %v53 = vld [vmem:[%s0 + $0xc0] sm:$0xff]
  %v54 = vld [vmem:[%s0 + $0xc8] sm:$0xff]
  %v55 = vld [vmem:[%s0 + $0xd0] sm:$0xff]
  %v56 = vld [vmem:[%s0 + $0xd8] sm:$0xff]
  %v57 = vld [vmem:[%s0 + $0xe0] sm:$0xff]
  %v58 = vld [vmem:[%s0 + $0xe8] sm:$0xff]
  %v59 = vld [vmem:[%s0 + $0xf0] sm:$0xff]
  %v60 = vld [vmem:[%s0 + $0xf8] sm:$0xff]
  %v61 = vld [vmem:[%s2] sm:$0xff]
  %v62 = vld [vmem:[%s2 + $0x8] sm:$0xff]
  %v63 = vld [vmem:[%s2 + $0x10] sm:$0xff]
  %v64 = vld [vmem:[%s2 + $0x18] sm:$0xff]
  %v65 = vld [vmem:[%s2 + $0x20] sm:$0xff]
  %v66 = vld [vmem:[%s2 + $0x28] sm:$0xff]
  %v67 = vld [vmem:[%s2 + $0x30] sm:$0xff]
  %v68 = vld [vmem:[%s2 + $0x38] sm:$0xff]
  %v69 = vld [vmem:[%s2 + $0x40] sm:$0xff]
  %v70 = vld [vmem:[%s2 + $0x48] sm:$0xff]
  %v71 = vld [vmem:[%s2 + $0x50] sm:$0xff]
  %v72 = vld [vmem:[%s2 + $0x58] sm:$0xff]
  %v73 = vld [vmem:[%s2 + $0x60] sm:$0xff]
  %v74 = vld [vmem:[%s2 + $0x68] sm:$0xff]
  %v75 = vld [vmem:[%s2 + $0x70] sm:$0xff]
  %v76 = vld [vmem:[%s2 + $0x78] sm:$0xff]
  %v77 = vld [vmem:[%s2 + $0x80] sm:$0xff]
  %v78 = vld [vmem:[%s2 + $0x88] sm:$0xff]
  %v79 = vld [vmem:[%s2 + $0x90] sm:$0xff]
  %v80 = vld [vmem:[%s2 + $0x98] sm:$0xff]
  %v81 = vld [vmem:[%s2 + $0xa0] sm:$0xff]
  %v82 = vld [vmem:[%s2 + $0xa8] sm:$0xff]
  %v83 = vld [vmem:[%s2 + $0xb0] sm:$0xff]
  %v84 = vld [vmem:[%s2 + $0xb8] sm:$0xff]
  %v85 = vld [vmem:[%s2 + $0xc0] sm:$0xff]
  %v86 = vld [vmem:[%s2 + $0xc8] sm:$0xff]
  %v87 = vld [vmem:[%s2 + $0xd0] sm:$0xff]
  %v88 = vld [vmem:[%s2 + $0xd8] sm:$0xff]
  %v89 = vld [vmem:[%s2 + $0xe0] sm:$0xff]
  %v90 = vld [vmem:[%s2 + $0xe8] sm:$0xff]
  %v91 = vld [vmem:[%s2 + $0xf0] sm:$0xff]
  %v92 = vld [vmem:[%s2 + $0xf8] sm:$0xff]
  %v93 = vrot.slane %v29, 7
  %v94 = vrot.slane %v30, 7
  %v95 = vrot.slane %v31, 7
  %v96 = vrot.slane %v32, 7
  %v97 = vrot.slane %v33, 7
  %v98 = vrot.slane %v34, 7
  %v99 = vrot.slane %v35, 7
  %v100 = vrot.slane %v36, 7
  %v101 = vrot.slane %v37, 7
  %v102 = vrot.slane %v38, 7
  %v103 = vrot.slane %v39, 7
  %v104 = vrot.slane %v40, 7
  %v105 = vrot.slane %v41, 7
  %v106 = vrot.slane %v42, 7
  %v107 = vrot.slane %v43, 7
  %v108 = vrot.slane %v44, 7
  %v109 = vrot.slane %v45, 7
  %v110 = vrot.slane %v46, 7
  %v111 = vrot.slane %v47, 7
  %v112 = vrot.slane %v48, 7
  %v113 = vrot.slane %v49, 7
  %v114 = vrot.slane %v50, 7
  %v115 = vrot.slane %v51, 7
  %v116 = vrot.slane %v52, 7
  %v117 = vrot.slane %v53, 7
  %v118 = vrot.slane %v54, 7
  %v119 = vrot.slane %v55, 7
  %v120 = vrot.slane %v56, 7
  %v121 = vrot.slane %v57, 7
  %v122 = vrot.slane %v58, 7
  %v123 = vrot.slane %v59, 7
  %v124 = vrot.slane %v60, 7
  %v125 = vlaneseq
  %v126 = vshrl.u32 %v125, 7
  %vm127 = vcmp.lt.s32.totalorder %v126, 1
  %v128 = vsel %vm127, %v123, %v124
  %v129 = vsel %vm127, %v122, %v123
  %v130 = vsel %vm127, %v121, %v122
  %v131 = vsel %vm127, %v120, %v121
  %v132 = vsel %vm127, %v119, %v120
  %v133 = vsel %vm127, %v118, %v119
  %v134 = vsel %vm127, %v117, %v118
  %v135 = vsel %vm127, %v116, %v117
  %v136 = vsel %vm127, %v115, %v116
  %v137 = vsel %vm127, %v114, %v115
  %v138 = vsel %vm127, %v113, %v114
  %v139 = vsel %vm127, %v112, %v113
  %v140 = vsel %vm127, %v111, %v112
  %v141 = vsel %vm127, %v110, %v111
  %v142 = vsel %vm127, %v109, %v110
  %v143 = vsel %vm127, %v108, %v109
  %v144 = vsel %vm127, %v107, %v108
  %v145 = vsel %vm127, %v106, %v107
  %v146 = vsel %vm127, %v105, %v106
  %v147 = vsel %vm127, %v104, %v105
  %v148 = vsel %vm127, %v103, %v104
  %v149 = vsel %vm127, %v102, %v103
  %v150 = vsel %vm127, %v101, %v102
  %v151 = vsel %vm127, %v100, %v101
  %v152 = vsel %vm127, %v99, %v100
  %v153 = vsel %vm127, %v98, %v99
  %v154 = vsel %vm127, %v97, %v98
  %v155 = vsel %vm127, %v96, %v97
  %v156 = vsel %vm127, %v95, %v96
  %v157 = vsel %vm127, %v94, %v95
  %v158 = vsel %vm127, %v93, %v94
  %v159 = vsel %vm127, %v124, %v93
  %v160 = vld [vmem:[%s3] sm:$0xff]
  %v161 = vld [vmem:[%s3 + $0x8] sm:$0xff]
  %v162 = vld [vmem:[%s3 + $0x10] sm:$0xff]
  %v163 = vld [vmem:[%s3 + $0x18] sm:$0xff]
  %v164 = vld [vmem:[%s3 + $0x20] sm:$0xff]
  %v165 = vld [vmem:[%s3 + $0x28] sm:$0xff]
  %v166 = vld [vmem:[%s3 + $0x30] sm:$0xff]
  %v167 = vld [vmem:[%s3 + $0x38] sm:$0xff]
  %v168 = vld [vmem:[%s3 + $0x40] sm:$0xff]
  %v169 = vld [vmem:[%s3 + $0x48] sm:$0xff]
  %v170 = vld [vmem:[%s3 + $0x50] sm:$0xff]
  %v171 = vld [vmem:[%s3 + $0x58] sm:$0xff]
  %v172 = vld [vmem:[%s3 + $0x60] sm:$0xff]
  %v173 = vld [vmem:[%s3 + $0x68] sm:$0xff]
  %v174 = vld [vmem:[%s3 + $0x70] sm:$0xff]
  %v175 = vld [vmem:[%s3 + $0x78] sm:$0xff]
  %v176 = vld [vmem:[%s3 + $0x80] sm:$0xff]
  %v177 = vld [vmem:[%s3 + $0x88] sm:$0xff]
  %v178 = vld [vmem:[%s3 + $0x90] sm:$0xff]
  %v179 = vld [vmem:[%s3 + $0x98] sm:$0xff]
  %v180 = vld [vmem:[%s3 + $0xa0] sm:$0xff]
  %v181 = vld [vmem:[%s3 + $0xa8] sm:$0xff]
  %v182 = vld [vmem:[%s3 + $0xb0] sm:$0xff]
  %v183 = vld [vmem:[%s3 + $0xb8] sm:$0xff]
  %v184 = vld [vmem:[%s3 + $0xc0] sm:$0xff]
  %v185 = vld [vmem:[%s3 + $0xc8] sm:$0xff]
  %v186 = vld [vmem:[%s3 + $0xd0] sm:$0xff]
  %v187 = vld [vmem:[%s3 + $0xd8] sm:$0xff]
  %v188 = vld [vmem:[%s3 + $0xe0] sm:$0xff]
  %v189 = vld [vmem:[%s3 + $0xe8] sm:$0xff]
  %v190 = vld [vmem:[%s3 + $0xf0] sm:$0xff]
  %v191 = vld [vmem:[%s3 + $0xf8] sm:$0xff]
  %v192 = vmul.f32 %v129, %v160
  %v193 = vmul.f32 %v128, %v161
  %v194 = vmul.f32 %v159, %v162
  %v195 = vmul.f32 %v158, %v163
  %v196 = vmul.f32 %v157, %v164
  %v197 = vmul.f32 %v156, %v165
  %v198 = vmul.f32 %v155, %v166
  %v199 = vmul.f32 %v154, %v167
  %v200 = vmul.f32 %v153, %v168
  %v201 = vmul.f32 %v152, %v169
  %v202 = vmul.f32 %v151, %v170
  %v203 = vmul.f32 %v150, %v171
  %v204 = vmul.f32 %v149, %v172
  %v205 = vmul.f32 %v148, %v173
  %v206 = vmul.f32 %v147, %v174
  %v207 = vmul.f32 %v146, %v175
  %v208 = vmul.f32 %v145, %v176
  %v209 = vmul.f32 %v144, %v177
  %v210 = vmul.f32 %v143, %v178
  %v211 = vmul.f32 %v142, %v179
  %v212 = vmul.f32 %v141, %v180
  %v213 = vmul.f32 %v140, %v181
  %v214 = vmul.f32 %v139, %v182
  %v215 = vmul.f32 %v138, %v183
  %v216 = vmul.f32 %v137, %v184
  %v217 = vmul.f32 %v136, %v185
  %v218 = vmul.f32 %v135, %v186
  %v219 = vmul.f32 %v134, %v187
  %v220 = vmul.f32 %v133, %v188
  %v221 = vmul.f32 %v132, %v189
  %v222 = vmul.f32 %v131, %v190
  %v223 = vmul.f32 %v130, %v191
  %v224 = vld [vmem:[%s1] sm:$0xff]
  %v225 = vld [vmem:[%s1 + $0x8] sm:$0xff]
  %v226 = vld [vmem:[%s1 + $0x10] sm:$0xff]
  %v227 = vld [vmem:[%s1 + $0x18] sm:$0xff]
  %v228 = vld [vmem:[%s1 + $0x20] sm:$0xff]
  %v229 = vld [vmem:[%s1 + $0x28] sm:$0xff]
  %v230 = vld [vmem:[%s1 + $0x30] sm:$0xff]
  %v231 = vld [vmem:[%s1 + $0x38] sm:$0xff]
  %vm232 = vcmask 523264
  %v234 = vsel %vm232, %v192, 0
  %v237 = vsel %vm232, %v193, 0
  %v240 = vsel %vm232, %v194, 0
  %v243 = vsel %vm232, %v195, 0
  %v246 = vsel %vm232, %v196, 0
  %v249 = vsel %vm232, %v197, 0
  %v252 = vsel %vm232, %v198, 0
  %v255 = vsel %vm232, %v199, 0
  %v258 = vsel %vm232, %v200, 0
  %v261 = vsel %vm232, %v201, 0
  %v264 = vsel %vm232, %v202, 0
  %v267 = vsel %vm232, %v203, 0
  %v270 = vsel %vm232, %v204, 0
  %v273 = vsel %vm232, %v205, 0
  %v276 = vsel %vm232, %v206, 0
  %v279 = vsel %vm232, %v207, 0
  %v282 = vsel %vm232, %v208, 0
  %v285 = vsel %vm232, %v209, 0
  %v288 = vsel %vm232, %v210, 0
  %v291 = vsel %vm232, %v211, 0
  %v294 = vsel %vm232, %v212, 0
  %v297 = vsel %vm232, %v213, 0
  %v300 = vsel %vm232, %v214, 0
  %v303 = vsel %vm232, %v215, 0
  %v306 = vsel %vm232, %v216, 0
  %v309 = vsel %vm232, %v217, 0
  %v312 = vsel %vm232, %v218, 0
  %v315 = vsel %vm232, %v219, 0
  %v318 = vsel %vm232, %v220, 0
  %v321 = vsel %vm232, %v221, 0
  %v324 = vsel %vm232, %v222, 0
  %v327 = vsel %vm232, %v223, 0
  %329 = vmatpush.msra.mxu0 0.0
  %330 = vmatpush.msra.mxu0 0.0
  %331 = vmatpush.msra.mxu0 0.0
  %332 = vmatpush.msra.mxu0 0.0
  %333 = vmatpush.msra.mxu0 0.0
  %334 = vmatpush.msra.mxu0 0.0
  %335 = vmatpush.msra.mxu0 0.0
  %336 = vmatpush.msra.mxu0 0.0
  %337 = vmatpush.msra.mxu0 %v231
  %338 = vmatpush.msra.mxu0 %v230
  %339 = vmatpush.msra.mxu0 %v229
  %340 = vmatpush.msra.mxu0 %v228
  %341 = vmatpush.msra.mxu0 %v227
  %342 = vmatpush.msra.mxu0 %v226
  %343 = vmatpush.msra.mxu0 %v225
  %344 = vmatpush.msra.mxu0 %v224
  %345 = vmatmul.f32.gmra.mxu0 %v234
  %v346 = vpop.f32.mrf.mxu0
  %v347 = vadd.f32 0.0, %v346
  %348 = vmatmul.f32.gmra.mxu0 %v237
  %v349 = vpop.f32.mrf.mxu0
  %v350 = vadd.f32 0.0, %v349
  %351 = vmatmul.f32.gmra.mxu0 %v240
  %v352 = vpop.f32.mrf.mxu0
  %v353 = vadd.f32 0.0, %v352
  %354 = vmatmul.f32.gmra.mxu0 %v243
  %v355 = vpop.f32.mrf.mxu0
  %v356 = vadd.f32 0.0, %v355
  %357 = vmatmul.f32.gmra.mxu0 %v246
  %v358 = vpop.f32.mrf.mxu0
  %v359 = vadd.f32 0.0, %v358
  %360 = vmatmul.f32.gmra.mxu0 %v249
  %v361 = vpop.f32.mrf.mxu0
  %v362 = vadd.f32 0.0, %v361
  %363 = vmatmul.f32.gmra.mxu0 %v252
  %v364 = vpop.f32.mrf.mxu0
  %v365 = vadd.f32 0.0, %v364
  %366 = vmatmul.f32.gmra.mxu0 %v255
  %v367 = vpop.f32.mrf.mxu0
  %v368 = vadd.f32 0.0, %v367
  %369 = vmatmul.f32.gmra.mxu0 %v258
  %v370 = vpop.f32.mrf.mxu0
  %v371 = vadd.f32 0.0, %v370
  %372 = vmatmul.f32.gmra.mxu0 %v261
  %v373 = vpop.f32.mrf.mxu0
  %v374 = vadd.f32 0.0, %v373
  %375 = vmatmul.f32.gmra.mxu0 %v264
  %v376 = vpop.f32.mrf.mxu0
  %v377 = vadd.f32 0.0, %v376
  %378 = vmatmul.f32.gmra.mxu0 %v267
  %v379 = vpop.f32.mrf.mxu0
  %v380 = vadd.f32 0.0, %v379
  %381 = vmatmul.f32.gmra.mxu0 %v270
  %v382 = vpop.f32.mrf.mxu0
  %v383 = vadd.f32 0.0, %v382
  %384 = vmatmul.f32.gmra.mxu0 %v273
  %v385 = vpop.f32.mrf.mxu0
  %v386 = vadd.f32 0.0, %v385
  %387 = vmatmul.f32.gmra.mxu0 %v276
  %v388 = vpop.f32.mrf.mxu0
  %v389 = vadd.f32 0.0, %v388
  %390 = vmatmul.f32.gmra.mxu0 %v279
  %v391 = vpop.f32.mrf.mxu0
  %v392 = vadd.f32 0.0, %v391
  %393 = vmatmul.f32.gmra.mxu0 %v282
  %v394 = vpop.f32.mrf.mxu0
  %v395 = vadd.f32 0.0, %v394
  %396 = vmatmul.f32.gmra.mxu0 %v285
  %v397 = vpop.f32.mrf.mxu0
  %v398 = vadd.f32 0.0, %v397
  %399 = vmatmul.f32.gmra.mxu0 %v288
  %v400 = vpop.f32.mrf.mxu0
  %v401 = vadd.f32 0.0, %v400
  %402 = vmatmul.f32.gmra.mxu0 %v291
  %v403 = vpop.f32.mrf.mxu0
  %v404 = vadd.f32 0.0, %v403
  %405 = vmatmul.f32.gmra.mxu0 %v294
  %v406 = vpop.f32.mrf.mxu0
  %v407 = vadd.f32 0.0, %v406
  %408 = vmatmul.f32.gmra.mxu0 %v297
  %v409 = vpop.f32.mrf.mxu0
  %v410 = vadd.f32 0.0, %v409
  %411 = vmatmul.f32.gmra.mxu0 %v300
  %v412 = vpop.f32.mrf.mxu0
  %v413 = vadd.f32 0.0, %v412
  %414 = vmatmul.f32.gmra.mxu0 %v303
  %v415 = vpop.f32.mrf.mxu0
  %v416 = vadd.f32 0.0, %v415
  %417 = vmatmul.f32.gmra.mxu0 %v306
  %v418 = vpop.f32.mrf.mxu0
  %v419 = vadd.f32 0.0, %v418
  %420 = vmatmul.f32.gmra.mxu0 %v309
  %v421 = vpop.f32.mrf.mxu0
  %v422 = vadd.f32 0.0, %v421
  %423 = vmatmul.f32.gmra.mxu0 %v312
  %v424 = vpop.f32.mrf.mxu0
  %v425 = vadd.f32 0.0, %v424
  %426 = vmatmul.f32.gmra.mxu0 %v315
  %v427 = vpop.f32.mrf.mxu0
  %v428 = vadd.f32 0.0, %v427
  %429 = vmatmul.f32.gmra.mxu0 %v318
  %v430 = vpop.f32.mrf.mxu0
  %v431 = vadd.f32 0.0, %v430
  %432 = vmatmul.f32.gmra.mxu0 %v321
  %v433 = vpop.f32.mrf.mxu0
  %v434 = vadd.f32 0.0, %v433
  %435 = vmatmul.f32.gmra.mxu0 %v324
  %v436 = vpop.f32.mrf.mxu0
  %v437 = vadd.f32 0.0, %v436
  %438 = vmatmul.f32.gmra.mxu0 %v327
  %v439 = vpop.f32.mrf.mxu0
  %v440 = vadd.f32 0.0, %v439
  %441 = vdwg.mxu0
  %v442 = vadd.f32 %v61, %v347
  %v443 = vadd.f32 %v62, %v350
  %v444 = vadd.f32 %v63, %v353
  %v445 = vadd.f32 %v64, %v356
  %v446 = vadd.f32 %v65, %v359
  %v447 = vadd.f32 %v66, %v362
  %v448 = vadd.f32 %v67, %v365
  %v449 = vadd.f32 %v68, %v368
  %v450 = vadd.f32 %v69, %v371
  %v451 = vadd.f32 %v70, %v374
  %v452 = vadd.f32 %v71, %v377
  %v453 = vadd.f32 %v72, %v380
  %v454 = vadd.f32 %v73, %v383
  %v455 = vadd.f32 %v74, %v386
  %v456 = vadd.f32 %v75, %v389
  %v457 = vadd.f32 %v76, %v392
  %v458 = vadd.f32 %v77, %v395
  %v459 = vadd.f32 %v78, %v398
  %v460 = vadd.f32 %v79, %v401
  %v461 = vadd.f32 %v80, %v404
  %v462 = vadd.f32 %v81, %v407
  %v463 = vadd.f32 %v82, %v410
  %v464 = vadd.f32 %v83, %v413
  %v465 = vadd.f32 %v84, %v416
  %v466 = vadd.f32 %v85, %v419
  %v467 = vadd.f32 %v86, %v422
  %v468 = vadd.f32 %v87, %v425
  %v469 = vadd.f32 %v88, %v428
  %v470 = vadd.f32 %v89, %v431
  %v471 = vadd.f32 %v90, %v434
  %v472 = vadd.f32 %v91, %v437
  %v473 = vadd.f32 %v92, %v440
  %s474 = scalar_lea.vmem %s3, 256
  %v475 = vld [vmem:[%s474] sm:$0xff]
  %v476 = vld [vmem:[%s474 + $0x8] sm:$0xff]
  %v477 = vld [vmem:[%s474 + $0x10] sm:$0xff]
  %v478 = vld [vmem:[%s474 + $0x18] sm:$0xff]
  %v479 = vld [vmem:[%s474 + $0x20] sm:$0xff]
  %v480 = vld [vmem:[%s474 + $0x28] sm:$0xff]
  %v481 = vld [vmem:[%s474 + $0x30] sm:$0xff]
  %v482 = vld [vmem:[%s474 + $0x38] sm:$0xff]
  %v483 = vld [vmem:[%s474 + $0x40] sm:$0xff]
  %v484 = vld [vmem:[%s474 + $0x48] sm:$0xff]
  %v485 = vld [vmem:[%s474 + $0x50] sm:$0xff]
  %v486 = vld [vmem:[%s474 + $0x58] sm:$0xff]
  %v487 = vld [vmem:[%s474 + $0x60] sm:$0xff]
  %v488 = vld [vmem:[%s474 + $0x68] sm:$0xff]
  %v489 = vld [vmem:[%s474 + $0x70] sm:$0xff]
  %v490 = vld [vmem:[%s474 + $0x78] sm:$0xff]
  %v491 = vld [vmem:[%s474 + $0x80] sm:$0xff]
  %v492 = vld [vmem:[%s474 + $0x88] sm:$0xff]
  %v493 = vld [vmem:[%s474 + $0x90] sm:$0xff]
  %v494 = vld [vmem:[%s474 + $0x98] sm:$0xff]
  %v495 = vld [vmem:[%s474 + $0xa0] sm:$0xff]
  %v496 = vld [vmem:[%s474 + $0xa8] sm:$0xff]
  %v497 = vld [vmem:[%s474 + $0xb0] sm:$0xff]
  %v498 = vld [vmem:[%s474 + $0xb8] sm:$0xff]
  %v499 = vld [vmem:[%s474 + $0xc0] sm:$0xff]
  %v500 = vld [vmem:[%s474 + $0xc8] sm:$0xff]
  %v501 = vld [vmem:[%s474 + $0xd0] sm:$0xff]
  %v502 = vld [vmem:[%s474 + $0xd8] sm:$0xff]
  %v503 = vld [vmem:[%s474 + $0xe0] sm:$0xff]
  %v504 = vld [vmem:[%s474 + $0xe8] sm:$0xff]
  %v505 = vld [vmem:[%s474 + $0xf0] sm:$0xff]
  %v506 = vld [vmem:[%s474 + $0xf8] sm:$0xff]
  %v507 = vmul.f32 %v59, %v475
  %v508 = vmul.f32 %v60, %v476
  %v509 = vmul.f32 %v29, %v477
  %v510 = vmul.f32 %v30, %v478
  %v511 = vmul.f32 %v31, %v479
  %v512 = vmul.f32 %v32, %v480
  %v513 = vmul.f32 %v33, %v481
  %v514 = vmul.f32 %v34, %v482
  %v515 = vmul.f32 %v35, %v483
  %v516 = vmul.f32 %v36, %v484
  %v517 = vmul.f32 %v37, %v485
  %v518 = vmul.f32 %v38, %v486
  %v519 = vmul.f32 %v39, %v487
  %v520 = vmul.f32 %v40, %v488
  %v521 = vmul.f32 %v41, %v489
  %v522 = vmul.f32 %v42, %v490
  %v523 = vmul.f32 %v43, %v491
  %v524 = vmul.f32 %v44, %v492
  %v525 = vmul.f32 %v45, %v493
  %v526 = vmul.f32 %v46, %v494
  %v527 = vmul.f32 %v47, %v495
  %v528 = vmul.f32 %v48, %v496
  %v529 = vmul.f32 %v49, %v497
  %v530 = vmul.f32 %v50, %v498
  %v531 = vmul.f32 %v51, %v499
  %v532 = vmul.f32 %v52, %v500
  %v533 = vmul.f32 %v53, %v501
  %v534 = vmul.f32 %v54, %v502
  %v535 = vmul.f32 %v55, %v503
  %v536 = vmul.f32 %v56, %v504
  %v537 = vmul.f32 %v57, %v505
  %v538 = vmul.f32 %v58, %v506
  %v539 = vld [vmem:[%s1 + $0x40] sm:$0xff]
  %v540 = vld [vmem:[%s1 + $0x48] sm:$0xff]
  %v541 = vld [vmem:[%s1 + $0x50] sm:$0xff]
  %v542 = vld [vmem:[%s1 + $0x58] sm:$0xff]
  %v543 = vld [vmem:[%s1 + $0x60] sm:$0xff]
  %v544 = vld [vmem:[%s1 + $0x68] sm:$0xff]
  %v545 = vld [vmem:[%s1 + $0x70] sm:$0xff]
  %v546 = vld [vmem:[%s1 + $0x78] sm:$0xff]
  %v548 = vsel %vm232, %v507, 0
  %v551 = vsel %vm232, %v508, 0
  %v554 = vsel %vm232, %v509, 0
  %v557 = vsel %vm232, %v510, 0
  %v560 = vsel %vm232, %v511, 0
  %v563 = vsel %vm232, %v512, 0
  %v566 = vsel %vm232, %v513, 0
  %v569 = vsel %vm232, %v514, 0
  %v572 = vsel %vm232, %v515, 0
  %v575 = vsel %vm232, %v516, 0
  %v578 = vsel %vm232, %v517, 0
  %v581 = vsel %vm232, %v518, 0
  %v584 = vsel %vm232, %v519, 0
  %v587 = vsel %vm232, %v520, 0
  %v590 = vsel %vm232, %v521, 0
  %v593 = vsel %vm232, %v522, 0
  %v596 = vsel %vm232, %v523, 0
  %v599 = vsel %vm232, %v524, 0
  %v602 = vsel %vm232, %v525, 0
  %v605 = vsel %vm232, %v526, 0
  %v608 = vsel %vm232, %v527, 0
  %v611 = vsel %vm232, %v528, 0
  %v614 = vsel %vm232, %v529, 0
  %v617 = vsel %vm232, %v530, 0
  %v620 = vsel %vm232, %v531, 0
  %v623 = vsel %vm232, %v532, 0
  %v626 = vsel %vm232, %v533, 0
  %v629 = vsel %vm232, %v534, 0
  %v632 = vsel %vm232, %v535, 0
  %v635 = vsel %vm232, %v536, 0
  %v638 = vsel %vm232, %v537, 0
  %v641 = vsel %vm232, %v538, 0
  %643 = vmatpush.msra.mxu0 0.0
  %644 = vmatpush.msra.mxu0 0.0
  %645 = vmatpush.msra.mxu0 0.0
  %646 = vmatpush.msra.mxu0 0.0
  %647 = vmatpush.msra.mxu0 0.0
  %648 = vmatpush.msra.mxu0 0.0
  %649 = vmatpush.msra.mxu0 0.0
  %650 = vmatpush.msra.mxu0 0.0
  %651 = vmatpush.msra.mxu0 %v546
  %652 = vmatpush.msra.mxu0 %v545
  %653 = vmatpush.msra.mxu0 %v544
  %654 = vmatpush.msra.mxu0 %v543
  %655 = vmatpush.msra.mxu0 %v542
  %656 = vmatpush.msra.mxu0 %v541
  %657 = vmatpush.msra.mxu0 %v540
  %658 = vmatpush.msra.mxu0 %v539
  %659 = vmatmul.f32.gmra.mxu0 %v548
  %v660 = vpop.f32.mrf.mxu0
  %v661 = vadd.f32 0.0, %v660
  %662 = vmatmul.f32.gmra.mxu0 %v551
  %v663 = vpop.f32.mrf.mxu0
  %v664 = vadd.f32 0.0, %v663
  %665 = vmatmul.f32.gmra.mxu0 %v554
  %v666 = vpop.f32.mrf.mxu0
  %v667 = vadd.f32 0.0, %v666
  %668 = vmatmul.f32.gmra.mxu0 %v557
  %v669 = vpop.f32.mrf.mxu0
  %v670 = vadd.f32 0.0, %v669
  %671 = vmatmul.f32.gmra.mxu0 %v560
  %v672 = vpop.f32.mrf.mxu0
  %v673 = vadd.f32 0.0, %v672
  %674 = vmatmul.f32.gmra.mxu0 %v563
  %v675 = vpop.f32.mrf.mxu0
  %v676 = vadd.f32 0.0, %v675
  %677 = vmatmul.f32.gmra.mxu0 %v566
  %v678 = vpop.f32.mrf.mxu0
  %v679 = vadd.f32 0.0, %v678
  %680 = vmatmul.f32.gmra.mxu0 %v569
  %v681 = vpop.f32.mrf.mxu0
  %v682 = vadd.f32 0.0, %v681
  %683 = vmatmul.f32.gmra.mxu0 %v572
  %v684 = vpop.f32.mrf.mxu0
  %v685 = vadd.f32 0.0, %v684
  %686 = vmatmul.f32.gmra.mxu0 %v575
  %v687 = vpop.f32.mrf.mxu0
  %v688 = vadd.f32 0.0, %v687
  %689 = vmatmul.f32.gmra.mxu0 %v578
  %v690 = vpop.f32.mrf.mxu0
  %v691 = vadd.f32 0.0, %v690
  %692 = vmatmul.f32.gmra.mxu0 %v581
  %v693 = vpop.f32.mrf.mxu0
  %v694 = vadd.f32 0.0, %v693
  %695 = vmatmul.f32.gmra.mxu0 %v584
  %v696 = vpop.f32.mrf.mxu0
  %v697 = vadd.f32 0.0, %v696
  %698 = vmatmul.f32.gmra.mxu0 %v587
  %v699 = vpop.f32.mrf.mxu0
  %v700 = vadd.f32 0.0, %v699
  %701 = vmatmul.f32.gmra.mxu0 %v590
  %v702 = vpop.f32.mrf.mxu0
  %v703 = vadd.f32 0.0, %v702
  %704 = vmatmul.f32.gmra.mxu0 %v593
  %v705 = vpop.f32.mrf.mxu0
  %v706 = vadd.f32 0.0, %v705
  %707 = vmatmul.f32.gmra.mxu0 %v596
  %v708 = vpop.f32.mrf.mxu0
  %v709 = vadd.f32 0.0, %v708
  %710 = vmatmul.f32.gmra.mxu0 %v599
  %v711 = vpop.f32.mrf.mxu0
  %v712 = vadd.f32 0.0, %v711
  %713 = vmatmul.f32.gmra.mxu0 %v602
  %v714 = vpop.f32.mrf.mxu0
  %v715 = vadd.f32 0.0, %v714
  %716 = vmatmul.f32.gmra.mxu0 %v605
  %v717 = vpop.f32.mrf.mxu0
  %v718 = vadd.f32 0.0, %v717
  %719 = vmatmul.f32.gmra.mxu0 %v608
  %v720 = vpop.f32.mrf.mxu0
  %v721 = vadd.f32 0.0, %v720
  %722 = vmatmul.f32.gmra.mxu0 %v611
  %v723 = vpop.f32.mrf.mxu0
  %v724 = vadd.f32 0.0, %v723
  %725 = vmatmul.f32.gmra.mxu0 %v614
  %v726 = vpop.f32.mrf.mxu0
  %v727 = vadd.f32 0.0, %v726
  %728 = vmatmul.f32.gmra.mxu0 %v617
  %v729 = vpop.f32.mrf.mxu0
  %v730 = vadd.f32 0.0, %v729
  %731 = vmatmul.f32.gmra.mxu0 %v620
  %v732 = vpop.f32.mrf.mxu0
  %v733 = vadd.f32 0.0, %v732
  %734 = vmatmul.f32.gmra.mxu0 %v623
  %v735 = vpop.f32.mrf.mxu0
  %v736 = vadd.f32 0.0, %v735
  %737 = vmatmul.f32.gmra.mxu0 %v626
  %v738 = vpop.f32.mrf.mxu0
  %v739 = vadd.f32 0.0, %v738
  %740 = vmatmul.f32.gmra.mxu0 %v629
  %v741 = vpop.f32.mrf.mxu0
  %v742 = vadd.f32 0.0, %v741
  %743 = vmatmul.f32.gmra.mxu0 %v632
  %v744 = vpop.f32.mrf.mxu0
  %v745 = vadd.f32 0.0, %v744
  %746 = vmatmul.f32.gmra.mxu0 %v635
  %v747 = vpop.f32.mrf.mxu0
  %v748 = vadd.f32 0.0, %v747
  %749 = vmatmul.f32.gmra.mxu0 %v638
  %v750 = vpop.f32.mrf.mxu0
  %v751 = vadd.f32 0.0, %v750
  %752 = vmatmul.f32.gmra.mxu0 %v641
  %v753 = vpop.f32.mrf.mxu0
  %v754 = vadd.f32 0.0, %v753
  %755 = vdwg.mxu0
  %v756 = vadd.f32 %v442, %v661
  %v757 = vadd.f32 %v443, %v664
  %v758 = vadd.f32 %v444, %v667
  %v759 = vadd.f32 %v445, %v670
  %v760 = vadd.f32 %v446, %v673
  %v761 = vadd.f32 %v447, %v676
  %v762 = vadd.f32 %v448, %v679
  %v763 = vadd.f32 %v449, %v682
  %v764 = vadd.f32 %v450, %v685
  %v765 = vadd.f32 %v451, %v688
  %v766 = vadd.f32 %v452, %v691
  %v767 = vadd.f32 %v453, %v694
  %v768 = vadd.f32 %v454, %v697
  %v769 = vadd.f32 %v455, %v700
  %v770 = vadd.f32 %v456, %v703
  %v771 = vadd.f32 %v457, %v706
  %v772 = vadd.f32 %v458, %v709
  %v773 = vadd.f32 %v459, %v712
  %v774 = vadd.f32 %v460, %v715
  %v775 = vadd.f32 %v461, %v718
  %v776 = vadd.f32 %v462, %v721
  %v777 = vadd.f32 %v463, %v724
  %v778 = vadd.f32 %v464, %v727
  %v779 = vadd.f32 %v465, %v730
  %v780 = vadd.f32 %v466, %v733
  %v781 = vadd.f32 %v467, %v736
  %v782 = vadd.f32 %v468, %v739
  %v783 = vadd.f32 %v469, %v742
  %v784 = vadd.f32 %v470, %v745
  %v785 = vadd.f32 %v471, %v748
  %v786 = vadd.f32 %v472, %v751
  %v787 = vadd.f32 %v473, %v754
  %v788 = vrot.slane %v29, 1
  %v789 = vrot.slane %v30, 1
  %v790 = vrot.slane %v31, 1
  %v791 = vrot.slane %v32, 1
  %v792 = vrot.slane %v33, 1
  %v793 = vrot.slane %v34, 1
  %v794 = vrot.slane %v35, 1
  %v795 = vrot.slane %v36, 1
  %v796 = vrot.slane %v37, 1
  %v797 = vrot.slane %v38, 1
  %v798 = vrot.slane %v39, 1
  %v799 = vrot.slane %v40, 1
  %v800 = vrot.slane %v41, 1
  %v801 = vrot.slane %v42, 1
  %v802 = vrot.slane %v43, 1
  %v803 = vrot.slane %v44, 1
  %v804 = vrot.slane %v45, 1
  %v805 = vrot.slane %v46, 1
  %v806 = vrot.slane %v47, 1
  %v807 = vrot.slane %v48, 1
  %v808 = vrot.slane %v49, 1
  %v809 = vrot.slane %v50, 1
  %v810 = vrot.slane %v51, 1
  %v811 = vrot.slane %v52, 1
  %v812 = vrot.slane %v53, 1
  %v813 = vrot.slane %v54, 1
  %v814 = vrot.slane %v55, 1
  %v815 = vrot.slane %v56, 1
  %v816 = vrot.slane %v57, 1
  %v817 = vrot.slane %v58, 1
  %v818 = vrot.slane %v59, 1
  %v819 = vrot.slane %v60, 1
  %vm820 = vcmp.lt.s32.totalorder %v126, 7
  %v821 = vsel %vm820, %v818, %v819
  %v822 = vsel %vm820, %v817, %v818
  %v823 = vsel %vm820, %v816, %v817
  %v824 = vsel %vm820, %v815, %v816
  %v825 = vsel %vm820, %v814, %v815
  %v826 = vsel %vm820, %v813, %v814
  %v827 = vsel %vm820, %v812, %v813
  %v828 = vsel %vm820, %v811, %v812
  %v829 = vsel %vm820, %v810, %v811
  %v830 = vsel %vm820, %v809, %v810
  %v831 = vsel %vm820, %v808, %v809
  %v832 = vsel %vm820, %v807, %v808
  %v833 = vsel %vm820, %v806, %v807
  %v834 = vsel %vm820, %v805, %v806
  %v835 = vsel %vm820, %v804, %v805
  %v836 = vsel %vm820, %v803, %v804
  %v837 = vsel %vm820, %v802, %v803
  %v838 = vsel %vm820, %v801, %v802
  %v839 = vsel %vm820, %v800, %v801
  %v840 = vsel %vm820, %v799, %v800
  %v841 = vsel %vm820, %v798, %v799
  %v842 = vsel %vm820, %v797, %v798
  %v843 = vsel %vm820, %v796, %v797
  %v844 = vsel %vm820, %v795, %v796
  %v845 = vsel %vm820, %v794, %v795
  %v846 = vsel %vm820, %v793, %v794
  %v847 = vsel %vm820, %v792, %v793
  %v848 = vsel %vm820, %v791, %v792
  %v849 = vsel %vm820, %v790, %v791
  %v850 = vsel %vm820, %v789, %v790
  %v851 = vsel %vm820, %v788, %v789
  %v852 = vsel %vm820, %v819, %v788
  %s853 = scalar_lea.vmem %s3, 512
  %v854 = vld [vmem:[%s853] sm:$0xff]
  %v855 = vld [vmem:[%s853 + $0x8] sm:$0xff]
  %v856 = vld [vmem:[%s853 + $0x10] sm:$0xff]
  %v857 = vld [vmem:[%s853 + $0x18] sm:$0xff]
  %v858 = vld [vmem:[%s853 + $0x20] sm:$0xff]
  %v859 = vld [vmem:[%s853 + $0x28] sm:$0xff]
  %v860 = vld [vmem:[%s853 + $0x30] sm:$0xff]
  %v861 = vld [vmem:[%s853 + $0x38] sm:$0xff]
  %v862 = vld [vmem:[%s853 + $0x40] sm:$0xff]
  %v863 = vld [vmem:[%s853 + $0x48] sm:$0xff]
  %v864 = vld [vmem:[%s853 + $0x50] sm:$0xff]
  %v865 = vld [vmem:[%s853 + $0x58] sm:$0xff]
  %v866 = vld [vmem:[%s853 + $0x60] sm:$0xff]
  %v867 = vld [vmem:[%s853 + $0x68] sm:$0xff]
  %v868 = vld [vmem:[%s853 + $0x70] sm:$0xff]
  %v869 = vld [vmem:[%s853 + $0x78] sm:$0xff]
  %v870 = vld [vmem:[%s853 + $0x80] sm:$0xff]
  %v871 = vld [vmem:[%s853 + $0x88] sm:$0xff]
  %v872 = vld [vmem:[%s853 + $0x90] sm:$0xff]
  %v873 = vld [vmem:[%s853 + $0x98] sm:$0xff]
  %v874 = vld [vmem:[%s853 + $0xa0] sm:$0xff]
  %v875 = vld [vmem:[%s853 + $0xa8] sm:$0xff]
  %v876 = vld [vmem:[%s853 + $0xb0] sm:$0xff]
  %v877 = vld [vmem:[%s853 + $0xb8] sm:$0xff]
  %v878 = vld [vmem:[%s853 + $0xc0] sm:$0xff]
  %v879 = vld [vmem:[%s853 + $0xc8] sm:$0xff]
  %v880 = vld [vmem:[%s853 + $0xd0] sm:$0xff]
  %v881 = vld [vmem:[%s853 + $0xd8] sm:$0xff]
  %v882 = vld [vmem:[%s853 + $0xe0] sm:$0xff]
  %v883 = vld [vmem:[%s853 + $0xe8] sm:$0xff]
  %v884 = vld [vmem:[%s853 + $0xf0] sm:$0xff]
  %v885 = vld [vmem:[%s853 + $0xf8] sm:$0xff]
  %v886 = vmul.f32 %v821, %v854
  %v887 = vmul.f32 %v852, %v855
  %v888 = vmul.f32 %v851, %v856
  %v889 = vmul.f32 %v850, %v857
  %v890 = vmul.f32 %v849, %v858
  %v891 = vmul.f32 %v848, %v859
  %v892 = vmul.f32 %v847, %v860
  %v893 = vmul.f32 %v846, %v861
  %v894 = vmul.f32 %v845, %v862
  %v895 = vmul.f32 %v844, %v863
  %v896 = vmul.f32 %v843, %v864
  %v897 = vmul.f32 %v842, %v865
  %v898 = vmul.f32 %v841, %v866
  %v899 = vmul.f32 %v840, %v867
  %v900 = vmul.f32 %v839, %v868
  %v901 = vmul.f32 %v838, %v869
  %v902 = vmul.f32 %v837, %v870
  %v903 = vmul.f32 %v836, %v871
  %v904 = vmul.f32 %v835, %v872
  %v905 = vmul.f32 %v834, %v873
  %v906 = vmul.f32 %v833, %v874
  %v907 = vmul.f32 %v832, %v875
  %v908 = vmul.f32 %v831, %v876
  %v909 = vmul.f32 %v830, %v877
  %v910 = vmul.f32 %v829, %v878
  %v911 = vmul.f32 %v828, %v879
  %v912 = vmul.f32 %v827, %v880
  %v913 = vmul.f32 %v826, %v881
  %v914 = vmul.f32 %v825, %v882
  %v915 = vmul.f32 %v824, %v883
  %v916 = vmul.f32 %v823, %v884
  %v917 = vmul.f32 %v822, %v885
  %v918 = vld [vmem:[%s1 + $0x80] sm:$0xff]
  %v919 = vld [vmem:[%s1 + $0x88] sm:$0xff]
  %v920 = vld [vmem:[%s1 + $0x90] sm:$0xff]
  %v921 = vld [vmem:[%s1 + $0x98] sm:$0xff]
  %v922 = vld [vmem:[%s1 + $0xa0] sm:$0xff]
  %v923 = vld [vmem:[%s1 + $0xa8] sm:$0xff]
  %v924 = vld [vmem:[%s1 + $0xb0] sm:$0xff]
  %v925 = vld [vmem:[%s1 + $0xb8] sm:$0xff]
  %v927 = vsel %vm232, %v886, 0
  %v930 = vsel %vm232, %v887, 0
  %v933 = vsel %vm232, %v888, 0
  %v936 = vsel %vm232, %v889, 0
  %v939 = vsel %vm232, %v890, 0
  %v942 = vsel %vm232, %v891, 0
  %v945 = vsel %vm232, %v892, 0
  %v948 = vsel %vm232, %v893, 0
  %v951 = vsel %vm232, %v894, 0
  %v954 = vsel %vm232, %v895, 0
  %v957 = vsel %vm232, %v896, 0
  %v960 = vsel %vm232, %v897, 0
  %v963 = vsel %vm232, %v898, 0
  %v966 = vsel %vm232, %v899, 0
  %v969 = vsel %vm232, %v900, 0
  %v972 = vsel %vm232, %v901, 0
  %v975 = vsel %vm232, %v902, 0
  %v978 = vsel %vm232, %v903, 0
  %v981 = vsel %vm232, %v904, 0
  %v984 = vsel %vm232, %v905, 0
  %v987 = vsel %vm232, %v906, 0
  %v990 = vsel %vm232, %v907, 0
  %v993 = vsel %vm232, %v908, 0
  %v996 = vsel %vm232, %v909, 0
  %v999 = vsel %vm232, %v910, 0
  %v1002 = vsel %vm232, %v911, 0
  %v1005 = vsel %vm232, %v912, 0
  %v1008 = vsel %vm232, %v913, 0
  %v1011 = vsel %vm232, %v914, 0
  %v1014 = vsel %vm232, %v915, 0
  %v1017 = vsel %vm232, %v916, 0
  %v1020 = vsel %vm232, %v917, 0
  %1022 = vmatpush.msra.mxu0 0.0
  %1023 = vmatpush.msra.mxu0 0.0
  %1024 = vmatpush.msra.mxu0 0.0
  %1025 = vmatpush.msra.mxu0 0.0
  %1026 = vmatpush.msra.mxu0 0.0
  %1027 = vmatpush.msra.mxu0 0.0
  %1028 = vmatpush.msra.mxu0 0.0
  %1029 = vmatpush.msra.mxu0 0.0
  %1030 = vmatpush.msra.mxu0 %v925
  %1031 = vmatpush.msra.mxu0 %v924
  %1032 = vmatpush.msra.mxu0 %v923
  %1033 = vmatpush.msra.mxu0 %v922
  %1034 = vmatpush.msra.mxu0 %v921
  %1035 = vmatpush.msra.mxu0 %v920
  %1036 = vmatpush.msra.mxu0 %v919
  %1037 = vmatpush.msra.mxu0 %v918
  %1038 = vmatmul.f32.gmra.mxu0 %v927
  %v1039 = vpop.f32.mrf.mxu0
  %v1040 = vadd.f32 0.0, %v1039
  %1041 = vmatmul.f32.gmra.mxu0 %v930
  %v1042 = vpop.f32.mrf.mxu0
  %v1043 = vadd.f32 0.0, %v1042
  %1044 = vmatmul.f32.gmra.mxu0 %v933
  %v1045 = vpop.f32.mrf.mxu0
  %v1046 = vadd.f32 0.0, %v1045
  %1047 = vmatmul.f32.gmra.mxu0 %v936
  %v1048 = vpop.f32.mrf.mxu0
  %v1049 = vadd.f32 0.0, %v1048
  %1050 = vmatmul.f32.gmra.mxu0 %v939
  %v1051 = vpop.f32.mrf.mxu0
  %v1052 = vadd.f32 0.0, %v1051
  %1053 = vmatmul.f32.gmra.mxu0 %v942
  %v1054 = vpop.f32.mrf.mxu0
  %v1055 = vadd.f32 0.0, %v1054
  %1056 = vmatmul.f32.gmra.mxu0 %v945
  %v1057 = vpop.f32.mrf.mxu0
  %v1058 = vadd.f32 0.0, %v1057
  %1059 = vmatmul.f32.gmra.mxu0 %v948
  %v1060 = vpop.f32.mrf.mxu0
  %v1061 = vadd.f32 0.0, %v1060
  %1062 = vmatmul.f32.gmra.mxu0 %v951
  %v1063 = vpop.f32.mrf.mxu0
  %v1064 = vadd.f32 0.0, %v1063
  %1065 = vmatmul.f32.gmra.mxu0 %v954
  %v1066 = vpop.f32.mrf.mxu0
  %v1067 = vadd.f32 0.0, %v1066
  %1068 = vmatmul.f32.gmra.mxu0 %v957
  %v1069 = vpop.f32.mrf.mxu0
  %v1070 = vadd.f32 0.0, %v1069
  %1071 = vmatmul.f32.gmra.mxu0 %v960
  %v1072 = vpop.f32.mrf.mxu0
  %v1073 = vadd.f32 0.0, %v1072
  %1074 = vmatmul.f32.gmra.mxu0 %v963
  %v1075 = vpop.f32.mrf.mxu0
  %v1076 = vadd.f32 0.0, %v1075
  %1077 = vmatmul.f32.gmra.mxu0 %v966
  %v1078 = vpop.f32.mrf.mxu0
  %v1079 = vadd.f32 0.0, %v1078
  %1080 = vmatmul.f32.gmra.mxu0 %v969
  %v1081 = vpop.f32.mrf.mxu0
  %v1082 = vadd.f32 0.0, %v1081
  %1083 = vmatmul.f32.gmra.mxu0 %v972
  %v1084 = vpop.f32.mrf.mxu0
  %v1085 = vadd.f32 0.0, %v1084
  %1086 = vmatmul.f32.gmra.mxu0 %v975
  %v1087 = vpop.f32.mrf.mxu0
  %v1088 = vadd.f32 0.0, %v1087
  %1089 = vmatmul.f32.gmra.mxu0 %v978
  %v1090 = vpop.f32.mrf.mxu0
  %v1091 = vadd.f32 0.0, %v1090
  %1092 = vmatmul.f32.gmra.mxu0 %v981
  %v1093 = vpop.f32.mrf.mxu0
  %v1094 = vadd.f32 0.0, %v1093
  %1095 = vmatmul.f32.gmra.mxu0 %v984
  %v1096 = vpop.f32.mrf.mxu0
  %v1097 = vadd.f32 0.0, %v1096
  %1098 = vmatmul.f32.gmra.mxu0 %v987
  %v1099 = vpop.f32.mrf.mxu0
  %v1100 = vadd.f32 0.0, %v1099
  %1101 = vmatmul.f32.gmra.mxu0 %v990
  %v1102 = vpop.f32.mrf.mxu0
  %v1103 = vadd.f32 0.0, %v1102
  %1104 = vmatmul.f32.gmra.mxu0 %v993
  %v1105 = vpop.f32.mrf.mxu0
  %v1106 = vadd.f32 0.0, %v1105
  %1107 = vmatmul.f32.gmra.mxu0 %v996
  %v1108 = vpop.f32.mrf.mxu0
  %v1109 = vadd.f32 0.0, %v1108
  %1110 = vmatmul.f32.gmra.mxu0 %v999
  %v1111 = vpop.f32.mrf.mxu0
  %v1112 = vadd.f32 0.0, %v1111
  %1113 = vmatmul.f32.gmra.mxu0 %v1002
  %v1114 = vpop.f32.mrf.mxu0
  %v1115 = vadd.f32 0.0, %v1114
  %1116 = vmatmul.f32.gmra.mxu0 %v1005
  %v1117 = vpop.f32.mrf.mxu0
  %v1118 = vadd.f32 0.0, %v1117
  %1119 = vmatmul.f32.gmra.mxu0 %v1008
  %v1120 = vpop.f32.mrf.mxu0
  %v1121 = vadd.f32 0.0, %v1120
  %1122 = vmatmul.f32.gmra.mxu0 %v1011
  %v1123 = vpop.f32.mrf.mxu0
  %v1124 = vadd.f32 0.0, %v1123
  %1125 = vmatmul.f32.gmra.mxu0 %v1014
  %v1126 = vpop.f32.mrf.mxu0
  %v1127 = vadd.f32 0.0, %v1126
  %1128 = vmatmul.f32.gmra.mxu0 %v1017
  %v1129 = vpop.f32.mrf.mxu0
  %v1130 = vadd.f32 0.0, %v1129
  %1131 = vmatmul.f32.gmra.mxu0 %v1020
  %v1132 = vpop.f32.mrf.mxu0
  %v1133 = vadd.f32 0.0, %v1132
  %1134 = vdwg.mxu0
  %v1135 = vadd.f32 %v756, %v1040
  %v1136 = vadd.f32 %v757, %v1043
  %v1137 = vadd.f32 %v758, %v1046
  %v1138 = vadd.f32 %v759, %v1049
  %v1139 = vadd.f32 %v760, %v1052
  %v1140 = vadd.f32 %v761, %v1055
  %v1141 = vadd.f32 %v762, %v1058
  %v1142 = vadd.f32 %v763, %v1061
  %v1143 = vadd.f32 %v764, %v1064
  %v1144 = vadd.f32 %v765, %v1067
  %v1145 = vadd.f32 %v766, %v1070
  %v1146 = vadd.f32 %v767, %v1073
  %v1147 = vadd.f32 %v768, %v1076
  %v1148 = vadd.f32 %v769, %v1079
  %v1149 = vadd.f32 %v770, %v1082
  %v1150 = vadd.f32 %v771, %v1085
  %v1151 = vadd.f32 %v772, %v1088
  %v1152 = vadd.f32 %v773, %v1091
  %v1153 = vadd.f32 %v774, %v1094
  %v1154 = vadd.f32 %v775, %v1097
  %v1155 = vadd.f32 %v776, %v1100
  %v1156 = vadd.f32 %v777, %v1103
  %v1157 = vadd.f32 %v778, %v1106
  %v1158 = vadd.f32 %v779, %v1109
  %v1159 = vadd.f32 %v780, %v1112
  %v1160 = vadd.f32 %v781, %v1115
  %v1161 = vadd.f32 %v782, %v1118
  %v1162 = vadd.f32 %v783, %v1121
  %v1163 = vadd.f32 %v784, %v1124
  %v1164 = vadd.f32 %v785, %v1127
  %v1165 = vadd.f32 %v786, %v1130
  %v1166 = vadd.f32 %v787, %v1133
  %s1167 = scalar_lea.vmem %s3, 768
  %v1168 = vld [vmem:[%s1167] sm:$0xff]
  %v1169 = vld [vmem:[%s1167 + $0x8] sm:$0xff]
  %v1170 = vld [vmem:[%s1167 + $0x10] sm:$0xff]
  %v1171 = vld [vmem:[%s1167 + $0x18] sm:$0xff]
  %v1172 = vld [vmem:[%s1167 + $0x20] sm:$0xff]
  %v1173 = vld [vmem:[%s1167 + $0x28] sm:$0xff]
  %v1174 = vld [vmem:[%s1167 + $0x30] sm:$0xff]
  %v1175 = vld [vmem:[%s1167 + $0x38] sm:$0xff]
  %v1176 = vld [vmem:[%s1167 + $0x40] sm:$0xff]
  %v1177 = vld [vmem:[%s1167 + $0x48] sm:$0xff]
  %v1178 = vld [vmem:[%s1167 + $0x50] sm:$0xff]
  %v1179 = vld [vmem:[%s1167 + $0x58] sm:$0xff]
  %v1180 = vld [vmem:[%s1167 + $0x60] sm:$0xff]
  %v1181 = vld [vmem:[%s1167 + $0x68] sm:$0xff]
  %v1182 = vld [vmem:[%s1167 + $0x70] sm:$0xff]
  %v1183 = vld [vmem:[%s1167 + $0x78] sm:$0xff]
  %v1184 = vld [vmem:[%s1167 + $0x80] sm:$0xff]
  %v1185 = vld [vmem:[%s1167 + $0x88] sm:$0xff]
  %v1186 = vld [vmem:[%s1167 + $0x90] sm:$0xff]
  %v1187 = vld [vmem:[%s1167 + $0x98] sm:$0xff]
  %v1188 = vld [vmem:[%s1167 + $0xa0] sm:$0xff]
  %v1189 = vld [vmem:[%s1167 + $0xa8] sm:$0xff]
  %v1190 = vld [vmem:[%s1167 + $0xb0] sm:$0xff]
  %v1191 = vld [vmem:[%s1167 + $0xb8] sm:$0xff]
  %v1192 = vld [vmem:[%s1167 + $0xc0] sm:$0xff]
  %v1193 = vld [vmem:[%s1167 + $0xc8] sm:$0xff]
  %v1194 = vld [vmem:[%s1167 + $0xd0] sm:$0xff]
  %v1195 = vld [vmem:[%s1167 + $0xd8] sm:$0xff]
  %v1196 = vld [vmem:[%s1167 + $0xe0] sm:$0xff]
  %v1197 = vld [vmem:[%s1167 + $0xe8] sm:$0xff]
  %v1198 = vld [vmem:[%s1167 + $0xf0] sm:$0xff]
  %v1199 = vld [vmem:[%s1167 + $0xf8] sm:$0xff]
  %v1200 = vmul.f32 %v159, %v1168
  %v1201 = vmul.f32 %v158, %v1169
  %v1202 = vmul.f32 %v157, %v1170
  %v1203 = vmul.f32 %v156, %v1171
  %v1204 = vmul.f32 %v155, %v1172
  %v1205 = vmul.f32 %v154, %v1173
  %v1206 = vmul.f32 %v153, %v1174
  %v1207 = vmul.f32 %v152, %v1175
  %v1208 = vmul.f32 %v151, %v1176
  %v1209 = vmul.f32 %v150, %v1177
  %v1210 = vmul.f32 %v149, %v1178
  %v1211 = vmul.f32 %v148, %v1179
  %v1212 = vmul.f32 %v147, %v1180
  %v1213 = vmul.f32 %v146, %v1181
  %v1214 = vmul.f32 %v145, %v1182
  %v1215 = vmul.f32 %v144, %v1183
  %v1216 = vmul.f32 %v143, %v1184
  %v1217 = vmul.f32 %v142, %v1185
  %v1218 = vmul.f32 %v141, %v1186
  %v1219 = vmul.f32 %v140, %v1187
  %v1220 = vmul.f32 %v139, %v1188
  %v1221 = vmul.f32 %v138, %v1189
  %v1222 = vmul.f32 %v137, %v1190
  %v1223 = vmul.f32 %v136, %v1191
  %v1224 = vmul.f32 %v135, %v1192
  %v1225 = vmul.f32 %v134, %v1193
  %v1226 = vmul.f32 %v133, %v1194
  %v1227 = vmul.f32 %v132, %v1195
  %v1228 = vmul.f32 %v131, %v1196
  %v1229 = vmul.f32 %v130, %v1197
  %v1230 = vmul.f32 %v129, %v1198
  %v1231 = vmul.f32 %v128, %v1199
  %v1232 = vld [vmem:[%s1 + $0xc0] sm:$0xff]
  %v1233 = vld [vmem:[%s1 + $0xc8] sm:$0xff]
  %v1234 = vld [vmem:[%s1 + $0xd0] sm:$0xff]
  %v1235 = vld [vmem:[%s1 + $0xd8] sm:$0xff]
  %v1236 = vld [vmem:[%s1 + $0xe0] sm:$0xff]
  %v1237 = vld [vmem:[%s1 + $0xe8] sm:$0xff]
  %v1238 = vld [vmem:[%s1 + $0xf0] sm:$0xff]
  %v1239 = vld [vmem:[%s1 + $0xf8] sm:$0xff]
  %v1241 = vsel %vm232, %v1200, 0
  %v1244 = vsel %vm232, %v1201, 0
  %v1247 = vsel %vm232, %v1202, 0
  %v1250 = vsel %vm232, %v1203, 0
  %v1253 = vsel %vm232, %v1204, 0
  %v1256 = vsel %vm232, %v1205, 0
  %v1259 = vsel %vm232, %v1206, 0
  %v1262 = vsel %vm232, %v1207, 0
  %v1265 = vsel %vm232, %v1208, 0
  %v1268 = vsel %vm232, %v1209, 0
  %v1271 = vsel %vm232, %v1210, 0
  %v1274 = vsel %vm232, %v1211, 0
  %v1277 = vsel %vm232, %v1212, 0
  %v1280 = vsel %vm232, %v1213, 0
  %v1283 = vsel %vm232, %v1214, 0
  %v1286 = vsel %vm232, %v1215, 0
  %v1289 = vsel %vm232, %v1216, 0
  %v1292 = vsel %vm232, %v1217, 0
  %v1295 = vsel %vm232, %v1218, 0
  %v1298 = vsel %vm232, %v1219, 0
  %v1301 = vsel %vm232, %v1220, 0
  %v1304 = vsel %vm232, %v1221, 0
  %v1307 = vsel %vm232, %v1222, 0
  %v1310 = vsel %vm232, %v1223, 0
  %v1313 = vsel %vm232, %v1224, 0
  %v1316 = vsel %vm232, %v1225, 0
  %v1319 = vsel %vm232, %v1226, 0
  %v1322 = vsel %vm232, %v1227, 0
  %v1325 = vsel %vm232, %v1228, 0
  %v1328 = vsel %vm232, %v1229, 0
  %v1331 = vsel %vm232, %v1230, 0
  %v1334 = vsel %vm232, %v1231, 0
  %1336 = vmatpush.msra.mxu0 0.0
  %1337 = vmatpush.msra.mxu0 0.0
  %1338 = vmatpush.msra.mxu0 0.0
  %1339 = vmatpush.msra.mxu0 0.0
  %1340 = vmatpush.msra.mxu0 0.0
  %1341 = vmatpush.msra.mxu0 0.0
  %1342 = vmatpush.msra.mxu0 0.0
  %1343 = vmatpush.msra.mxu0 0.0
  %1344 = vmatpush.msra.mxu0 %v1239
  %1345 = vmatpush.msra.mxu0 %v1238
  %1346 = vmatpush.msra.mxu0 %v1237
  %1347 = vmatpush.msra.mxu0 %v1236
  %1348 = vmatpush.msra.mxu0 %v1235
  %1349 = vmatpush.msra.mxu0 %v1234
  %1350 = vmatpush.msra.mxu0 %v1233
  %1351 = vmatpush.msra.mxu0 %v1232
  %1352 = vmatmul.f32.gmra.mxu0 %v1241
  %v1353 = vpop.f32.mrf.mxu0
  %v1354 = vadd.f32 0.0, %v1353
  %1355 = vmatmul.f32.gmra.mxu0 %v1244
  %v1356 = vpop.f32.mrf.mxu0
  %v1357 = vadd.f32 0.0, %v1356
  %1358 = vmatmul.f32.gmra.mxu0 %v1247
  %v1359 = vpop.f32.mrf.mxu0
  %v1360 = vadd.f32 0.0, %v1359
  %1361 = vmatmul.f32.gmra.mxu0 %v1250
  %v1362 = vpop.f32.mrf.mxu0
  %v1363 = vadd.f32 0.0, %v1362
  %1364 = vmatmul.f32.gmra.mxu0 %v1253
  %v1365 = vpop.f32.mrf.mxu0
  %v1366 = vadd.f32 0.0, %v1365
  %1367 = vmatmul.f32.gmra.mxu0 %v1256
  %v1368 = vpop.f32.mrf.mxu0
  %v1369 = vadd.f32 0.0, %v1368
  %1370 = vmatmul.f32.gmra.mxu0 %v1259
  %v1371 = vpop.f32.mrf.mxu0
  %v1372 = vadd.f32 0.0, %v1371
  %1373 = vmatmul.f32.gmra.mxu0 %v1262
  %v1374 = vpop.f32.mrf.mxu0
  %v1375 = vadd.f32 0.0, %v1374
  %1376 = vmatmul.f32.gmra.mxu0 %v1265
  %v1377 = vpop.f32.mrf.mxu0
  %v1378 = vadd.f32 0.0, %v1377
  %1379 = vmatmul.f32.gmra.mxu0 %v1268
  %v1380 = vpop.f32.mrf.mxu0
  %v1381 = vadd.f32 0.0, %v1380
  %1382 = vmatmul.f32.gmra.mxu0 %v1271
  %v1383 = vpop.f32.mrf.mxu0
  %v1384 = vadd.f32 0.0, %v1383
  %1385 = vmatmul.f32.gmra.mxu0 %v1274
  %v1386 = vpop.f32.mrf.mxu0
  %v1387 = vadd.f32 0.0, %v1386
  %1388 = vmatmul.f32.gmra.mxu0 %v1277
  %v1389 = vpop.f32.mrf.mxu0
  %v1390 = vadd.f32 0.0, %v1389
  %1391 = vmatmul.f32.gmra.mxu0 %v1280
  %v1392 = vpop.f32.mrf.mxu0
  %v1393 = vadd.f32 0.0, %v1392
  %1394 = vmatmul.f32.gmra.mxu0 %v1283
  %v1395 = vpop.f32.mrf.mxu0
  %v1396 = vadd.f32 0.0, %v1395
  %1397 = vmatmul.f32.gmra.mxu0 %v1286
  %v1398 = vpop.f32.mrf.mxu0
  %v1399 = vadd.f32 0.0, %v1398
  %1400 = vmatmul.f32.gmra.mxu0 %v1289
  %v1401 = vpop.f32.mrf.mxu0
  %v1402 = vadd.f32 0.0, %v1401
  %1403 = vmatmul.f32.gmra.mxu0 %v1292
  %v1404 = vpop.f32.mrf.mxu0
  %v1405 = vadd.f32 0.0, %v1404
  %1406 = vmatmul.f32.gmra.mxu0 %v1295
  %v1407 = vpop.f32.mrf.mxu0
  %v1408 = vadd.f32 0.0, %v1407
  %1409 = vmatmul.f32.gmra.mxu0 %v1298
  %v1410 = vpop.f32.mrf.mxu0
  %v1411 = vadd.f32 0.0, %v1410
  %1412 = vmatmul.f32.gmra.mxu0 %v1301
  %v1413 = vpop.f32.mrf.mxu0
  %v1414 = vadd.f32 0.0, %v1413
  %1415 = vmatmul.f32.gmra.mxu0 %v1304
  %v1416 = vpop.f32.mrf.mxu0
  %v1417 = vadd.f32 0.0, %v1416
  %1418 = vmatmul.f32.gmra.mxu0 %v1307
  %v1419 = vpop.f32.mrf.mxu0
  %v1420 = vadd.f32 0.0, %v1419
  %1421 = vmatmul.f32.gmra.mxu0 %v1310
  %v1422 = vpop.f32.mrf.mxu0
  %v1423 = vadd.f32 0.0, %v1422
  %1424 = vmatmul.f32.gmra.mxu0 %v1313
  %v1425 = vpop.f32.mrf.mxu0
  %v1426 = vadd.f32 0.0, %v1425
  %1427 = vmatmul.f32.gmra.mxu0 %v1316
  %v1428 = vpop.f32.mrf.mxu0
  %v1429 = vadd.f32 0.0, %v1428
  %1430 = vmatmul.f32.gmra.mxu0 %v1319
  %v1431 = vpop.f32.mrf.mxu0
  %v1432 = vadd.f32 0.0, %v1431
  %1433 = vmatmul.f32.gmra.mxu0 %v1322
  %v1434 = vpop.f32.mrf.mxu0
  %v1435 = vadd.f32 0.0, %v1434
  %1436 = vmatmul.f32.gmra.mxu0 %v1325
  %v1437 = vpop.f32.mrf.mxu0
  %v1438 = vadd.f32 0.0, %v1437
  %1439 = vmatmul.f32.gmra.mxu0 %v1328
  %v1440 = vpop.f32.mrf.mxu0
  %v1441 = vadd.f32 0.0, %v1440
  %1442 = vmatmul.f32.gmra.mxu0 %v1331
  %v1443 = vpop.f32.mrf.mxu0
  %v1444 = vadd.f32 0.0, %v1443
  %1445 = vmatmul.f32.gmra.mxu0 %v1334
  %v1446 = vpop.f32.mrf.mxu0
  %v1447 = vadd.f32 0.0, %v1446
  %1448 = vdwg.mxu0
  %v1449 = vadd.f32 %v1135, %v1354
  %v1450 = vadd.f32 %v1136, %v1357
  %v1451 = vadd.f32 %v1137, %v1360
  %v1452 = vadd.f32 %v1138, %v1363
  %v1453 = vadd.f32 %v1139, %v1366
  %v1454 = vadd.f32 %v1140, %v1369
  %v1455 = vadd.f32 %v1141, %v1372
  %v1456 = vadd.f32 %v1142, %v1375
  %v1457 = vadd.f32 %v1143, %v1378
  %v1458 = vadd.f32 %v1144, %v1381
  %v1459 = vadd.f32 %v1145, %v1384
  %v1460 = vadd.f32 %v1146, %v1387
  %v1461 = vadd.f32 %v1147, %v1390
  %v1462 = vadd.f32 %v1148, %v1393
  %v1463 = vadd.f32 %v1149, %v1396
  %v1464 = vadd.f32 %v1150, %v1399
  %v1465 = vadd.f32 %v1151, %v1402
  %v1466 = vadd.f32 %v1152, %v1405
  %v1467 = vadd.f32 %v1153, %v1408
  %v1468 = vadd.f32 %v1154, %v1411
  %v1469 = vadd.f32 %v1155, %v1414
  %v1470 = vadd.f32 %v1156, %v1417
  %v1471 = vadd.f32 %v1157, %v1420
  %v1472 = vadd.f32 %v1158, %v1423
  %v1473 = vadd.f32 %v1159, %v1426
  %v1474 = vadd.f32 %v1160, %v1429
  %v1475 = vadd.f32 %v1161, %v1432
  %v1476 = vadd.f32 %v1162, %v1435
  %v1477 = vadd.f32 %v1163, %v1438
  %v1478 = vadd.f32 %v1164, %v1441
  %v1479 = vadd.f32 %v1165, %v1444
  %v1480 = vadd.f32 %v1166, %v1447
  %v1481 = vld [vmem:[%s1 + $0x100] sm:$0xff]
  %v1482 = vld [vmem:[%s1 + $0x108] sm:$0xff]
  %v1483 = vld [vmem:[%s1 + $0x110] sm:$0xff]
  %v1484 = vld [vmem:[%s1 + $0x118] sm:$0xff]
  %v1485 = vld [vmem:[%s1 + $0x120] sm:$0xff]
  %v1486 = vld [vmem:[%s1 + $0x128] sm:$0xff]
  %v1487 = vld [vmem:[%s1 + $0x130] sm:$0xff]
  %v1488 = vld [vmem:[%s1 + $0x138] sm:$0xff]
  %v1490 = vsel %vm232, %v29, 0
  %v1493 = vsel %vm232, %v30, 0
  %v1496 = vsel %vm232, %v31, 0
  %v1499 = vsel %vm232, %v32, 0
  %v1502 = vsel %vm232, %v33, 0
  %v1505 = vsel %vm232, %v34, 0
  %v1508 = vsel %vm232, %v35, 0
  %v1511 = vsel %vm232, %v36, 0
  %v1514 = vsel %vm232, %v37, 0
  %v1517 = vsel %vm232, %v38, 0
  %v1520 = vsel %vm232, %v39, 0
  %v1523 = vsel %vm232, %v40, 0
  %v1526 = vsel %vm232, %v41, 0
  %v1529 = vsel %vm232, %v42, 0
  %v1532 = vsel %vm232, %v43, 0
  %v1535 = vsel %vm232, %v44, 0
  %v1538 = vsel %vm232, %v45, 0
  %v1541 = vsel %vm232, %v46, 0
  %v1544 = vsel %vm232, %v47, 0
  %v1547 = vsel %vm232, %v48, 0
  %v1550 = vsel %vm232, %v49, 0
  %v1553 = vsel %vm232, %v50, 0
  %v1556 = vsel %vm232, %v51, 0
  %v1559 = vsel %vm232, %v52, 0
  %v1562 = vsel %vm232, %v53, 0
  %v1565 = vsel %vm232, %v54, 0
  %v1568 = vsel %vm232, %v55, 0
  %v1571 = vsel %vm232, %v56, 0
  %v1574 = vsel %vm232, %v57, 0
  %v1577 = vsel %vm232, %v58, 0
  %v1580 = vsel %vm232, %v59, 0
  %v1583 = vsel %vm232, %v60, 0
  %1585 = vmatpush.msra.mxu0 0.0
  %1586 = vmatpush.msra.mxu0 0.0
  %1587 = vmatpush.msra.mxu0 0.0
  %1588 = vmatpush.msra.mxu0 0.0
  %1589 = vmatpush.msra.mxu0 0.0
  %1590 = vmatpush.msra.mxu0 0.0
  %1591 = vmatpush.msra.mxu0 0.0
  %1592 = vmatpush.msra.mxu0 0.0
  %1593 = vmatpush.msra.mxu0 %v1488
  %1594 = vmatpush.msra.mxu0 %v1487
  %1595 = vmatpush.msra.mxu0 %v1486
  %1596 = vmatpush.msra.mxu0 %v1485
  %1597 = vmatpush.msra.mxu0 %v1484
  %1598 = vmatpush.msra.mxu0 %v1483
  %1599 = vmatpush.msra.mxu0 %v1482
  %1600 = vmatpush.msra.mxu0 %v1481
  %1601 = vmatmul.f32.gmra.mxu0 %v1490
  %v1602 = vpop.f32.mrf.mxu0
  %v1603 = vadd.f32 0.0, %v1602
  %1604 = vmatmul.f32.gmra.mxu0 %v1493
  %v1605 = vpop.f32.mrf.mxu0
  %v1606 = vadd.f32 0.0, %v1605
  %1607 = vmatmul.f32.gmra.mxu0 %v1496
  %v1608 = vpop.f32.mrf.mxu0
  %v1609 = vadd.f32 0.0, %v1608
  %1610 = vmatmul.f32.gmra.mxu0 %v1499
  %v1611 = vpop.f32.mrf.mxu0
  %v1612 = vadd.f32 0.0, %v1611
  %1613 = vmatmul.f32.gmra.mxu0 %v1502
  %v1614 = vpop.f32.mrf.mxu0
  %v1615 = vadd.f32 0.0, %v1614
  %1616 = vmatmul.f32.gmra.mxu0 %v1505
  %v1617 = vpop.f32.mrf.mxu0
  %v1618 = vadd.f32 0.0, %v1617
  %1619 = vmatmul.f32.gmra.mxu0 %v1508
  %v1620 = vpop.f32.mrf.mxu0
  %v1621 = vadd.f32 0.0, %v1620
  %1622 = vmatmul.f32.gmra.mxu0 %v1511
  %v1623 = vpop.f32.mrf.mxu0
  %v1624 = vadd.f32 0.0, %v1623
  %1625 = vmatmul.f32.gmra.mxu0 %v1514
  %v1626 = vpop.f32.mrf.mxu0
  %v1627 = vadd.f32 0.0, %v1626
  %1628 = vmatmul.f32.gmra.mxu0 %v1517
  %v1629 = vpop.f32.mrf.mxu0
  %v1630 = vadd.f32 0.0, %v1629
  %1631 = vmatmul.f32.gmra.mxu0 %v1520
  %v1632 = vpop.f32.mrf.mxu0
  %v1633 = vadd.f32 0.0, %v1632
  %1634 = vmatmul.f32.gmra.mxu0 %v1523
  %v1635 = vpop.f32.mrf.mxu0
  %v1636 = vadd.f32 0.0, %v1635
  %1637 = vmatmul.f32.gmra.mxu0 %v1526
  %v1638 = vpop.f32.mrf.mxu0
  %v1639 = vadd.f32 0.0, %v1638
  %1640 = vmatmul.f32.gmra.mxu0 %v1529
  %v1641 = vpop.f32.mrf.mxu0
  %v1642 = vadd.f32 0.0, %v1641
  %1643 = vmatmul.f32.gmra.mxu0 %v1532
  %v1644 = vpop.f32.mrf.mxu0
  %v1645 = vadd.f32 0.0, %v1644
  %1646 = vmatmul.f32.gmra.mxu0 %v1535
  %v1647 = vpop.f32.mrf.mxu0
  %v1648 = vadd.f32 0.0, %v1647
  %1649 = vmatmul.f32.gmra.mxu0 %v1538
  %v1650 = vpop.f32.mrf.mxu0
  %v1651 = vadd.f32 0.0, %v1650
  %1652 = vmatmul.f32.gmra.mxu0 %v1541
  %v1653 = vpop.f32.mrf.mxu0
  %v1654 = vadd.f32 0.0, %v1653
  %1655 = vmatmul.f32.gmra.mxu0 %v1544
  %v1656 = vpop.f32.mrf.mxu0
  %v1657 = vadd.f32 0.0, %v1656
  %1658 = vmatmul.f32.gmra.mxu0 %v1547
  %v1659 = vpop.f32.mrf.mxu0
  %v1660 = vadd.f32 0.0, %v1659
  %1661 = vmatmul.f32.gmra.mxu0 %v1550
  %v1662 = vpop.f32.mrf.mxu0
  %v1663 = vadd.f32 0.0, %v1662
  %1664 = vmatmul.f32.gmra.mxu0 %v1553
  %v1665 = vpop.f32.mrf.mxu0
  %v1666 = vadd.f32 0.0, %v1665
  %1667 = vmatmul.f32.gmra.mxu0 %v1556
  %v1668 = vpop.f32.mrf.mxu0
  %v1669 = vadd.f32 0.0, %v1668
  %1670 = vmatmul.f32.gmra.mxu0 %v1559
  %v1671 = vpop.f32.mrf.mxu0
  %v1672 = vadd.f32 0.0, %v1671
  %1673 = vmatmul.f32.gmra.mxu0 %v1562
  %v1674 = vpop.f32.mrf.mxu0
  %v1675 = vadd.f32 0.0, %v1674
  %1676 = vmatmul.f32.gmra.mxu0 %v1565
  %v1677 = vpop.f32.mrf.mxu0
  %v1678 = vadd.f32 0.0, %v1677
  %1679 = vmatmul.f32.gmra.mxu0 %v1568
  %v1680 = vpop.f32.mrf.mxu0
  %v1681 = vadd.f32 0.0, %v1680
  %1682 = vmatmul.f32.gmra.mxu0 %v1571
  %v1683 = vpop.f32.mrf.mxu0
  %v1684 = vadd.f32 0.0, %v1683
  %1685 = vmatmul.f32.gmra.mxu0 %v1574
  %v1686 = vpop.f32.mrf.mxu0
  %v1687 = vadd.f32 0.0, %v1686
  %1688 = vmatmul.f32.gmra.mxu0 %v1577
  %v1689 = vpop.f32.mrf.mxu0
  %v1690 = vadd.f32 0.0, %v1689
  %1691 = vmatmul.f32.gmra.mxu0 %v1580
  %v1692 = vpop.f32.mrf.mxu0
  %v1693 = vadd.f32 0.0, %v1692
  %1694 = vmatmul.f32.gmra.mxu0 %v1583
  %v1695 = vpop.f32.mrf.mxu0
  %v1696 = vadd.f32 0.0, %v1695
  %1697 = vdwg.mxu0
  %v1698 = vadd.f32 %v1449, %v1603
  %v1699 = vadd.f32 %v1450, %v1606
  %v1700 = vadd.f32 %v1451, %v1609
  %v1701 = vadd.f32 %v1452, %v1612
  %v1702 = vadd.f32 %v1453, %v1615
  %v1703 = vadd.f32 %v1454, %v1618
  %v1704 = vadd.f32 %v1455, %v1621
  %v1705 = vadd.f32 %v1456, %v1624
  %v1706 = vadd.f32 %v1457, %v1627
  %v1707 = vadd.f32 %v1458, %v1630
  %v1708 = vadd.f32 %v1459, %v1633
  %v1709 = vadd.f32 %v1460, %v1636
  %v1710 = vadd.f32 %v1461, %v1639
  %v1711 = vadd.f32 %v1462, %v1642
  %v1712 = vadd.f32 %v1463, %v1645
  %v1713 = vadd.f32 %v1464, %v1648
  %v1714 = vadd.f32 %v1465, %v1651
  %v1715 = vadd.f32 %v1466, %v1654
  %v1716 = vadd.f32 %v1467, %v1657
  %v1717 = vadd.f32 %v1468, %v1660
  %v1718 = vadd.f32 %v1469, %v1663
  %v1719 = vadd.f32 %v1470, %v1666
  %v1720 = vadd.f32 %v1471, %v1669
  %v1721 = vadd.f32 %v1472, %v1672
  %v1722 = vadd.f32 %v1473, %v1675
  %v1723 = vadd.f32 %v1474, %v1678
  %v1724 = vadd.f32 %v1475, %v1681
  %v1725 = vadd.f32 %v1476, %v1684
  %v1726 = vadd.f32 %v1477, %v1687
  %v1727 = vadd.f32 %v1478, %v1690
  %v1728 = vadd.f32 %v1479, %v1693
  %v1729 = vadd.f32 %v1480, %v1696
  %s1730 = scalar_lea.vmem %s3, 1280
  %v1731 = vld [vmem:[%s1730] sm:$0xff]
  %v1732 = vld [vmem:[%s1730 + $0x8] sm:$0xff]
  %v1733 = vld [vmem:[%s1730 + $0x10] sm:$0xff]
  %v1734 = vld [vmem:[%s1730 + $0x18] sm:$0xff]
  %v1735 = vld [vmem:[%s1730 + $0x20] sm:$0xff]
  %v1736 = vld [vmem:[%s1730 + $0x28] sm:$0xff]
  %v1737 = vld [vmem:[%s1730 + $0x30] sm:$0xff]
  %v1738 = vld [vmem:[%s1730 + $0x38] sm:$0xff]
  %v1739 = vld [vmem:[%s1730 + $0x40] sm:$0xff]
  %v1740 = vld [vmem:[%s1730 + $0x48] sm:$0xff]
  %v1741 = vld [vmem:[%s1730 + $0x50] sm:$0xff]
  %v1742 = vld [vmem:[%s1730 + $0x58] sm:$0xff]
  %v1743 = vld [vmem:[%s1730 + $0x60] sm:$0xff]
  %v1744 = vld [vmem:[%s1730 + $0x68] sm:$0xff]
  %v1745 = vld [vmem:[%s1730 + $0x70] sm:$0xff]
  %v1746 = vld [vmem:[%s1730 + $0x78] sm:$0xff]
  %v1747 = vld [vmem:[%s1730 + $0x80] sm:$0xff]
  %v1748 = vld [vmem:[%s1730 + $0x88] sm:$0xff]
  %v1749 = vld [vmem:[%s1730 + $0x90] sm:$0xff]
  %v1750 = vld [vmem:[%s1730 + $0x98] sm:$0xff]
  %v1751 = vld [vmem:[%s1730 + $0xa0] sm:$0xff]
  %v1752 = vld [vmem:[%s1730 + $0xa8] sm:$0xff]
  %v1753 = vld [vmem:[%s1730 + $0xb0] sm:$0xff]
  %v1754 = vld [vmem:[%s1730 + $0xb8] sm:$0xff]
  %v1755 = vld [vmem:[%s1730 + $0xc0] sm:$0xff]
  %v1756 = vld [vmem:[%s1730 + $0xc8] sm:$0xff]
  %v1757 = vld [vmem:[%s1730 + $0xd0] sm:$0xff]
  %v1758 = vld [vmem:[%s1730 + $0xd8] sm:$0xff]
  %v1759 = vld [vmem:[%s1730 + $0xe0] sm:$0xff]
  %v1760 = vld [vmem:[%s1730 + $0xe8] sm:$0xff]
  %v1761 = vld [vmem:[%s1730 + $0xf0] sm:$0xff]
  %v1762 = vld [vmem:[%s1730 + $0xf8] sm:$0xff]
  %v1763 = vmul.f32 %v851, %v1731
  %v1764 = vmul.f32 %v850, %v1732
  %v1765 = vmul.f32 %v849, %v1733
  %v1766 = vmul.f32 %v848, %v1734
  %v1767 = vmul.f32 %v847, %v1735
  %v1768 = vmul.f32 %v846, %v1736
  %v1769 = vmul.f32 %v845, %v1737
  %v1770 = vmul.f32 %v844, %v1738
  %v1771 = vmul.f32 %v843, %v1739
  %v1772 = vmul.f32 %v842, %v1740
  %v1773 = vmul.f32 %v841, %v1741
  %v1774 = vmul.f32 %v840, %v1742
  %v1775 = vmul.f32 %v839, %v1743
  %v1776 = vmul.f32 %v838, %v1744
  %v1777 = vmul.f32 %v837, %v1745
  %v1778 = vmul.f32 %v836, %v1746
  %v1779 = vmul.f32 %v835, %v1747
  %v1780 = vmul.f32 %v834, %v1748
  %v1781 = vmul.f32 %v833, %v1749
  %v1782 = vmul.f32 %v832, %v1750
  %v1783 = vmul.f32 %v831, %v1751
  %v1784 = vmul.f32 %v830, %v1752
  %v1785 = vmul.f32 %v829, %v1753
  %v1786 = vmul.f32 %v828, %v1754
  %v1787 = vmul.f32 %v827, %v1755
  %v1788 = vmul.f32 %v826, %v1756
  %v1789 = vmul.f32 %v825, %v1757
  %v1790 = vmul.f32 %v824, %v1758
  %v1791 = vmul.f32 %v823, %v1759
  %v1792 = vmul.f32 %v822, %v1760
  %v1793 = vmul.f32 %v821, %v1761
  %v1794 = vmul.f32 %v852, %v1762
  %v1795 = vld [vmem:[%s1 + $0x140] sm:$0xff]
  %v1796 = vld [vmem:[%s1 + $0x148] sm:$0xff]
  %v1797 = vld [vmem:[%s1 + $0x150] sm:$0xff]
  %v1798 = vld [vmem:[%s1 + $0x158] sm:$0xff]
  %v1799 = vld [vmem:[%s1 + $0x160] sm:$0xff]
  %v1800 = vld [vmem:[%s1 + $0x168] sm:$0xff]
  %v1801 = vld [vmem:[%s1 + $0x170] sm:$0xff]
  %v1802 = vld [vmem:[%s1 + $0x178] sm:$0xff]
  %v1804 = vsel %vm232, %v1763, 0
  %v1807 = vsel %vm232, %v1764, 0
  %v1810 = vsel %vm232, %v1765, 0
  %v1813 = vsel %vm232, %v1766, 0
  %v1816 = vsel %vm232, %v1767, 0
  %v1819 = vsel %vm232, %v1768, 0
  %v1822 = vsel %vm232, %v1769, 0
  %v1825 = vsel %vm232, %v1770, 0
  %v1828 = vsel %vm232, %v1771, 0
  %v1831 = vsel %vm232, %v1772, 0
  %v1834 = vsel %vm232, %v1773, 0
  %v1837 = vsel %vm232, %v1774, 0
  %v1840 = vsel %vm232, %v1775, 0
  %v1843 = vsel %vm232, %v1776, 0
  %v1846 = vsel %vm232, %v1777, 0
  %v1849 = vsel %vm232, %v1778, 0
  %v1852 = vsel %vm232, %v1779, 0
  %v1855 = vsel %vm232, %v1780, 0
  %v1858 = vsel %vm232, %v1781, 0
  %v1861 = vsel %vm232, %v1782, 0
  %v1864 = vsel %vm232, %v1783, 0
  %v1867 = vsel %vm232, %v1784, 0
  %v1870 = vsel %vm232, %v1785, 0
  %v1873 = vsel %vm232, %v1786, 0
  %v1876 = vsel %vm232, %v1787, 0
  %v1879 = vsel %vm232, %v1788, 0
  %v1882 = vsel %vm232, %v1789, 0
  %v1885 = vsel %vm232, %v1790, 0
  %v1888 = vsel %vm232, %v1791, 0
  %v1891 = vsel %vm232, %v1792, 0
  %v1894 = vsel %vm232, %v1793, 0
  %v1897 = vsel %vm232, %v1794, 0
  %1899 = vmatpush.msra.mxu0 0.0
  %1900 = vmatpush.msra.mxu0 0.0
  %1901 = vmatpush.msra.mxu0 0.0
  %1902 = vmatpush.msra.mxu0 0.0
  %1903 = vmatpush.msra.mxu0 0.0
  %1904 = vmatpush.msra.mxu0 0.0
  %1905 = vmatpush.msra.mxu0 0.0
  %1906 = vmatpush.msra.mxu0 0.0
  %1907 = vmatpush.msra.mxu0 %v1802
  %1908 = vmatpush.msra.mxu0 %v1801
  %1909 = vmatpush.msra.mxu0 %v1800
  %1910 = vmatpush.msra.mxu0 %v1799
  %1911 = vmatpush.msra.mxu0 %v1798
  %1912 = vmatpush.msra.mxu0 %v1797
  %1913 = vmatpush.msra.mxu0 %v1796
  %1914 = vmatpush.msra.mxu0 %v1795
  %1915 = vmatmul.f32.gmra.mxu0 %v1804
  %v1916 = vpop.f32.mrf.mxu0
  %v1917 = vadd.f32 0.0, %v1916
  %1918 = vmatmul.f32.gmra.mxu0 %v1807
  %v1919 = vpop.f32.mrf.mxu0
  %v1920 = vadd.f32 0.0, %v1919
  %1921 = vmatmul.f32.gmra.mxu0 %v1810
  %v1922 = vpop.f32.mrf.mxu0
  %v1923 = vadd.f32 0.0, %v1922
  %1924 = vmatmul.f32.gmra.mxu0 %v1813
  %v1925 = vpop.f32.mrf.mxu0
  %v1926 = vadd.f32 0.0, %v1925
  %1927 = vmatmul.f32.gmra.mxu0 %v1816
  %v1928 = vpop.f32.mrf.mxu0
  %v1929 = vadd.f32 0.0, %v1928
  %1930 = vmatmul.f32.gmra.mxu0 %v1819
  %v1931 = vpop.f32.mrf.mxu0
  %v1932 = vadd.f32 0.0, %v1931
  %1933 = vmatmul.f32.gmra.mxu0 %v1822
  %v1934 = vpop.f32.mrf.mxu0
  %v1935 = vadd.f32 0.0, %v1934
  %1936 = vmatmul.f32.gmra.mxu0 %v1825
  %v1937 = vpop.f32.mrf.mxu0
  %v1938 = vadd.f32 0.0, %v1937
  %1939 = vmatmul.f32.gmra.mxu0 %v1828
  %v1940 = vpop.f32.mrf.mxu0
  %v1941 = vadd.f32 0.0, %v1940
  %1942 = vmatmul.f32.gmra.mxu0 %v1831
  %v1943 = vpop.f32.mrf.mxu0
  %v1944 = vadd.f32 0.0, %v1943
  %1945 = vmatmul.f32.gmra.mxu0 %v1834
  %v1946 = vpop.f32.mrf.mxu0
  %v1947 = vadd.f32 0.0, %v1946
  %1948 = vmatmul.f32.gmra.mxu0 %v1837
  %v1949 = vpop.f32.mrf.mxu0
  %v1950 = vadd.f32 0.0, %v1949
  %1951 = vmatmul.f32.gmra.mxu0 %v1840
  %v1952 = vpop.f32.mrf.mxu0
  %v1953 = vadd.f32 0.0, %v1952
  %1954 = vmatmul.f32.gmra.mxu0 %v1843
  %v1955 = vpop.f32.mrf.mxu0
  %v1956 = vadd.f32 0.0, %v1955
  %1957 = vmatmul.f32.gmra.mxu0 %v1846
  %v1958 = vpop.f32.mrf.mxu0
  %v1959 = vadd.f32 0.0, %v1958
  %1960 = vmatmul.f32.gmra.mxu0 %v1849
  %v1961 = vpop.f32.mrf.mxu0
  %v1962 = vadd.f32 0.0, %v1961
  %1963 = vmatmul.f32.gmra.mxu0 %v1852
  %v1964 = vpop.f32.mrf.mxu0
  %v1965 = vadd.f32 0.0, %v1964
  %1966 = vmatmul.f32.gmra.mxu0 %v1855
  %v1967 = vpop.f32.mrf.mxu0
  %v1968 = vadd.f32 0.0, %v1967
  %1969 = vmatmul.f32.gmra.mxu0 %v1858
  %v1970 = vpop.f32.mrf.mxu0
  %v1971 = vadd.f32 0.0, %v1970
  %1972 = vmatmul.f32.gmra.mxu0 %v1861
  %v1973 = vpop.f32.mrf.mxu0
  %v1974 = vadd.f32 0.0, %v1973
  %1975 = vmatmul.f32.gmra.mxu0 %v1864
  %v1976 = vpop.f32.mrf.mxu0
  %v1977 = vadd.f32 0.0, %v1976
  %1978 = vmatmul.f32.gmra.mxu0 %v1867
  %v1979 = vpop.f32.mrf.mxu0
  %v1980 = vadd.f32 0.0, %v1979
  %1981 = vmatmul.f32.gmra.mxu0 %v1870
  %v1982 = vpop.f32.mrf.mxu0
  %v1983 = vadd.f32 0.0, %v1982
  %1984 = vmatmul.f32.gmra.mxu0 %v1873
  %v1985 = vpop.f32.mrf.mxu0
  %v1986 = vadd.f32 0.0, %v1985
  %1987 = vmatmul.f32.gmra.mxu0 %v1876
  %v1988 = vpop.f32.mrf.mxu0
  %v1989 = vadd.f32 0.0, %v1988
  %1990 = vmatmul.f32.gmra.mxu0 %v1879
  %v1991 = vpop.f32.mrf.mxu0
  %v1992 = vadd.f32 0.0, %v1991
  %1993 = vmatmul.f32.gmra.mxu0 %v1882
  %v1994 = vpop.f32.mrf.mxu0
  %v1995 = vadd.f32 0.0, %v1994
  %1996 = vmatmul.f32.gmra.mxu0 %v1885
  %v1997 = vpop.f32.mrf.mxu0
  %v1998 = vadd.f32 0.0, %v1997
  %1999 = vmatmul.f32.gmra.mxu0 %v1888
  %v2000 = vpop.f32.mrf.mxu0
  %v2001 = vadd.f32 0.0, %v2000
  %2002 = vmatmul.f32.gmra.mxu0 %v1891
  %v2003 = vpop.f32.mrf.mxu0
  %v2004 = vadd.f32 0.0, %v2003
  %2005 = vmatmul.f32.gmra.mxu0 %v1894
  %v2006 = vpop.f32.mrf.mxu0
  %v2007 = vadd.f32 0.0, %v2006
  %2008 = vmatmul.f32.gmra.mxu0 %v1897
  %v2009 = vpop.f32.mrf.mxu0
  %v2010 = vadd.f32 0.0, %v2009
  %2011 = vdwg.mxu0
  %v2012 = vadd.f32 %v1698, %v1917
  %v2013 = vadd.f32 %v1699, %v1920
  %v2014 = vadd.f32 %v1700, %v1923
  %v2015 = vadd.f32 %v1701, %v1926
  %v2016 = vadd.f32 %v1702, %v1929
  %v2017 = vadd.f32 %v1703, %v1932
  %v2018 = vadd.f32 %v1704, %v1935
  %v2019 = vadd.f32 %v1705, %v1938
  %v2020 = vadd.f32 %v1706, %v1941
  %v2021 = vadd.f32 %v1707, %v1944
  %v2022 = vadd.f32 %v1708, %v1947
  %v2023 = vadd.f32 %v1709, %v1950
  %v2024 = vadd.f32 %v1710, %v1953
  %v2025 = vadd.f32 %v1711, %v1956
  %v2026 = vadd.f32 %v1712, %v1959
  %v2027 = vadd.f32 %v1713, %v1962
  %v2028 = vadd.f32 %v1714, %v1965
  %v2029 = vadd.f32 %v1715, %v1968
  %v2030 = vadd.f32 %v1716, %v1971
  %v2031 = vadd.f32 %v1717, %v1974
  %v2032 = vadd.f32 %v1718, %v1977
  %v2033 = vadd.f32 %v1719, %v1980
  %v2034 = vadd.f32 %v1720, %v1983
  %v2035 = vadd.f32 %v1721, %v1986
  %v2036 = vadd.f32 %v1722, %v1989
  %v2037 = vadd.f32 %v1723, %v1992
  %v2038 = vadd.f32 %v1724, %v1995
  %v2039 = vadd.f32 %v1725, %v1998
  %v2040 = vadd.f32 %v1726, %v2001
  %v2041 = vadd.f32 %v1727, %v2004
  %v2042 = vadd.f32 %v1728, %v2007
  %v2043 = vadd.f32 %v1729, %v2010
  %s2044 = scalar_lea.vmem %s3, 1536
  %v2045 = vld [vmem:[%s2044] sm:$0xff]
  %v2046 = vld [vmem:[%s2044 + $0x8] sm:$0xff]
  %v2047 = vld [vmem:[%s2044 + $0x10] sm:$0xff]
  %v2048 = vld [vmem:[%s2044 + $0x18] sm:$0xff]
  %v2049 = vld [vmem:[%s2044 + $0x20] sm:$0xff]
  %v2050 = vld [vmem:[%s2044 + $0x28] sm:$0xff]
  %v2051 = vld [vmem:[%s2044 + $0x30] sm:$0xff]
  %v2052 = vld [vmem:[%s2044 + $0x38] sm:$0xff]
  %v2053 = vld [vmem:[%s2044 + $0x40] sm:$0xff]
  %v2054 = vld [vmem:[%s2044 + $0x48] sm:$0xff]
  %v2055 = vld [vmem:[%s2044 + $0x50] sm:$0xff]
  %v2056 = vld [vmem:[%s2044 + $0x58] sm:$0xff]
  %v2057 = vld [vmem:[%s2044 + $0x60] sm:$0xff]
  %v2058 = vld [vmem:[%s2044 + $0x68] sm:$0xff]
  %v2059 = vld [vmem:[%s2044 + $0x70] sm:$0xff]
  %v2060 = vld [vmem:[%s2044 + $0x78] sm:$0xff]
  %v2061 = vld [vmem:[%s2044 + $0x80] sm:$0xff]
  %v2062 = vld [vmem:[%s2044 + $0x88] sm:$0xff]
  %v2063 = vld [vmem:[%s2044 + $0x90] sm:$0xff]
  %v2064 = vld [vmem:[%s2044 + $0x98] sm:$0xff]
  %v2065 = vld [vmem:[%s2044 + $0xa0] sm:$0xff]
  %v2066 = vld [vmem:[%s2044 + $0xa8] sm:$0xff]
  %v2067 = vld [vmem:[%s2044 + $0xb0] sm:$0xff]
  %v2068 = vld [vmem:[%s2044 + $0xb8] sm:$0xff]
  %v2069 = vld [vmem:[%s2044 + $0xc0] sm:$0xff]
  %v2070 = vld [vmem:[%s2044 + $0xc8] sm:$0xff]
  %v2071 = vld [vmem:[%s2044 + $0xd0] sm:$0xff]
  %v2072 = vld [vmem:[%s2044 + $0xd8] sm:$0xff]
  %v2073 = vld [vmem:[%s2044 + $0xe0] sm:$0xff]
  %v2074 = vld [vmem:[%s2044 + $0xe8] sm:$0xff]
  %v2075 = vld [vmem:[%s2044 + $0xf0] sm:$0xff]
  %v2076 = vld [vmem:[%s2044 + $0xf8] sm:$0xff]
  %v2077 = vmul.f32 %v157, %v2045
  %v2078 = vmul.f32 %v156, %v2046
  %v2079 = vmul.f32 %v155, %v2047
  %v2080 = vmul.f32 %v154, %v2048
  %v2081 = vmul.f32 %v153, %v2049
  %v2082 = vmul.f32 %v152, %v2050
  %v2083 = vmul.f32 %v151, %v2051
  %v2084 = vmul.f32 %v150, %v2052
  %v2085 = vmul.f32 %v149, %v2053
  %v2086 = vmul.f32 %v148, %v2054
  %v2087 = vmul.f32 %v147, %v2055
  %v2088 = vmul.f32 %v146, %v2056
  %v2089 = vmul.f32 %v145, %v2057
  %v2090 = vmul.f32 %v144, %v2058
  %v2091 = vmul.f32 %v143, %v2059
  %v2092 = vmul.f32 %v142, %v2060
  %v2093 = vmul.f32 %v141, %v2061
  %v2094 = vmul.f32 %v140, %v2062
  %v2095 = vmul.f32 %v139, %v2063
  %v2096 = vmul.f32 %v138, %v2064
  %v2097 = vmul.f32 %v137, %v2065
  %v2098 = vmul.f32 %v136, %v2066
  %v2099 = vmul.f32 %v135, %v2067
  %v2100 = vmul.f32 %v134, %v2068
  %v2101 = vmul.f32 %v133, %v2069
  %v2102 = vmul.f32 %v132, %v2070
  %v2103 = vmul.f32 %v131, %v2071
  %v2104 = vmul.f32 %v130, %v2072
  %v2105 = vmul.f32 %v129, %v2073
  %v2106 = vmul.f32 %v128, %v2074
  %v2107 = vmul.f32 %v159, %v2075
  %v2108 = vmul.f32 %v158, %v2076
  %v2109 = vld [vmem:[%s1 + $0x180] sm:$0xff]
  %v2110 = vld [vmem:[%s1 + $0x188] sm:$0xff]
  %v2111 = vld [vmem:[%s1 + $0x190] sm:$0xff]
  %v2112 = vld [vmem:[%s1 + $0x198] sm:$0xff]
  %v2113 = vld [vmem:[%s1 + $0x1a0] sm:$0xff]
  %v2114 = vld [vmem:[%s1 + $0x1a8] sm:$0xff]
  %v2115 = vld [vmem:[%s1 + $0x1b0] sm:$0xff]
  %v2116 = vld [vmem:[%s1 + $0x1b8] sm:$0xff]
  %v2118 = vsel %vm232, %v2077, 0
  %v2121 = vsel %vm232, %v2078, 0
  %v2124 = vsel %vm232, %v2079, 0
  %v2127 = vsel %vm232, %v2080, 0
  %v2130 = vsel %vm232, %v2081, 0
  %v2133 = vsel %vm232, %v2082, 0
  %v2136 = vsel %vm232, %v2083, 0
  %v2139 = vsel %vm232, %v2084, 0
  %v2142 = vsel %vm232, %v2085, 0
  %v2145 = vsel %vm232, %v2086, 0
  %v2148 = vsel %vm232, %v2087, 0
  %v2151 = vsel %vm232, %v2088, 0
  %v2154 = vsel %vm232, %v2089, 0
  %v2157 = vsel %vm232, %v2090, 0
  %v2160 = vsel %vm232, %v2091, 0
  %v2163 = vsel %vm232, %v2092, 0
  %v2166 = vsel %vm232, %v2093, 0
  %v2169 = vsel %vm232, %v2094, 0
  %v2172 = vsel %vm232, %v2095, 0
  %v2175 = vsel %vm232, %v2096, 0
  %v2178 = vsel %vm232, %v2097, 0
  %v2181 = vsel %vm232, %v2098, 0
  %v2184 = vsel %vm232, %v2099, 0
  %v2187 = vsel %vm232, %v2100, 0
  %v2190 = vsel %vm232, %v2101, 0
  %v2193 = vsel %vm232, %v2102, 0
  %v2196 = vsel %vm232, %v2103, 0
  %v2199 = vsel %vm232, %v2104, 0
  %v2202 = vsel %vm232, %v2105, 0
  %v2205 = vsel %vm232, %v2106, 0
  %v2208 = vsel %vm232, %v2107, 0
  %v2211 = vsel %vm232, %v2108, 0
  %2213 = vmatpush.msra.mxu0 0.0
  %2214 = vmatpush.msra.mxu0 0.0
  %2215 = vmatpush.msra.mxu0 0.0
  %2216 = vmatpush.msra.mxu0 0.0
  %2217 = vmatpush.msra.mxu0 0.0
  %2218 = vmatpush.msra.mxu0 0.0
  %2219 = vmatpush.msra.mxu0 0.0
  %2220 = vmatpush.msra.mxu0 0.0
  %2221 = vmatpush.msra.mxu0 %v2116
  %2222 = vmatpush.msra.mxu0 %v2115
  %2223 = vmatpush.msra.mxu0 %v2114
  %2224 = vmatpush.msra.mxu0 %v2113
  %2225 = vmatpush.msra.mxu0 %v2112
  %2226 = vmatpush.msra.mxu0 %v2111
  %2227 = vmatpush.msra.mxu0 %v2110
  %2228 = vmatpush.msra.mxu0 %v2109
  %2229 = vmatmul.f32.gmra.mxu0 %v2118
  %v2230 = vpop.f32.mrf.mxu0
  %v2231 = vadd.f32 0.0, %v2230
  %2232 = vmatmul.f32.gmra.mxu0 %v2121
  %v2233 = vpop.f32.mrf.mxu0
  %v2234 = vadd.f32 0.0, %v2233
  %2235 = vmatmul.f32.gmra.mxu0 %v2124
  %v2236 = vpop.f32.mrf.mxu0
  %v2237 = vadd.f32 0.0, %v2236
  %2238 = vmatmul.f32.gmra.mxu0 %v2127
  %v2239 = vpop.f32.mrf.mxu0
  %v2240 = vadd.f32 0.0, %v2239
  %2241 = vmatmul.f32.gmra.mxu0 %v2130
  %v2242 = vpop.f32.mrf.mxu0
  %v2243 = vadd.f32 0.0, %v2242
  %2244 = vmatmul.f32.gmra.mxu0 %v2133
  %v2245 = vpop.f32.mrf.mxu0
  %v2246 = vadd.f32 0.0, %v2245
  %2247 = vmatmul.f32.gmra.mxu0 %v2136
  %v2248 = vpop.f32.mrf.mxu0
  %v2249 = vadd.f32 0.0, %v2248
  %2250 = vmatmul.f32.gmra.mxu0 %v2139
  %v2251 = vpop.f32.mrf.mxu0
  %v2252 = vadd.f32 0.0, %v2251
  %2253 = vmatmul.f32.gmra.mxu0 %v2142
  %v2254 = vpop.f32.mrf.mxu0
  %v2255 = vadd.f32 0.0, %v2254
  %2256 = vmatmul.f32.gmra.mxu0 %v2145
  %v2257 = vpop.f32.mrf.mxu0
  %v2258 = vadd.f32 0.0, %v2257
  %2259 = vmatmul.f32.gmra.mxu0 %v2148
  %v2260 = vpop.f32.mrf.mxu0
  %v2261 = vadd.f32 0.0, %v2260
  %2262 = vmatmul.f32.gmra.mxu0 %v2151
  %v2263 = vpop.f32.mrf.mxu0
  %v2264 = vadd.f32 0.0, %v2263
  %2265 = vmatmul.f32.gmra.mxu0 %v2154
  %v2266 = vpop.f32.mrf.mxu0
  %v2267 = vadd.f32 0.0, %v2266
  %2268 = vmatmul.f32.gmra.mxu0 %v2157
  %v2269 = vpop.f32.mrf.mxu0
  %v2270 = vadd.f32 0.0, %v2269
  %2271 = vmatmul.f32.gmra.mxu0 %v2160
  %v2272 = vpop.f32.mrf.mxu0
  %v2273 = vadd.f32 0.0, %v2272
  %2274 = vmatmul.f32.gmra.mxu0 %v2163
  %v2275 = vpop.f32.mrf.mxu0
  %v2276 = vadd.f32 0.0, %v2275
  %2277 = vmatmul.f32.gmra.mxu0 %v2166
  %v2278 = vpop.f32.mrf.mxu0
  %v2279 = vadd.f32 0.0, %v2278
  %2280 = vmatmul.f32.gmra.mxu0 %v2169
  %v2281 = vpop.f32.mrf.mxu0
  %v2282 = vadd.f32 0.0, %v2281
  %2283 = vmatmul.f32.gmra.mxu0 %v2172
  %v2284 = vpop.f32.mrf.mxu0
  %v2285 = vadd.f32 0.0, %v2284
  %2286 = vmatmul.f32.gmra.mxu0 %v2175
  %v2287 = vpop.f32.mrf.mxu0
  %v2288 = vadd.f32 0.0, %v2287
  %2289 = vmatmul.f32.gmra.mxu0 %v2178
  %v2290 = vpop.f32.mrf.mxu0
  %v2291 = vadd.f32 0.0, %v2290
  %2292 = vmatmul.f32.gmra.mxu0 %v2181
  %v2293 = vpop.f32.mrf.mxu0
  %v2294 = vadd.f32 0.0, %v2293
  %2295 = vmatmul.f32.gmra.mxu0 %v2184
  %v2296 = vpop.f32.mrf.mxu0
  %v2297 = vadd.f32 0.0, %v2296
  %2298 = vmatmul.f32.gmra.mxu0 %v2187
  %v2299 = vpop.f32.mrf.mxu0
  %v2300 = vadd.f32 0.0, %v2299
  %2301 = vmatmul.f32.gmra.mxu0 %v2190
  %v2302 = vpop.f32.mrf.mxu0
  %v2303 = vadd.f32 0.0, %v2302
  %2304 = vmatmul.f32.gmra.mxu0 %v2193
  %v2305 = vpop.f32.mrf.mxu0
  %v2306 = vadd.f32 0.0, %v2305
  %2307 = vmatmul.f32.gmra.mxu0 %v2196
  %v2308 = vpop.f32.mrf.mxu0
  %v2309 = vadd.f32 0.0, %v2308
  %2310 = vmatmul.f32.gmra.mxu0 %v2199
  %v2311 = vpop.f32.mrf.mxu0
  %v2312 = vadd.f32 0.0, %v2311
  %2313 = vmatmul.f32.gmra.mxu0 %v2202
  %v2314 = vpop.f32.mrf.mxu0
  %v2315 = vadd.f32 0.0, %v2314
  %2316 = vmatmul.f32.gmra.mxu0 %v2205
  %v2317 = vpop.f32.mrf.mxu0
  %v2318 = vadd.f32 0.0, %v2317
  %2319 = vmatmul.f32.gmra.mxu0 %v2208
  %v2320 = vpop.f32.mrf.mxu0
  %v2321 = vadd.f32 0.0, %v2320
  %2322 = vmatmul.f32.gmra.mxu0 %v2211
  %v2323 = vpop.f32.mrf.mxu0
  %v2324 = vadd.f32 0.0, %v2323
  %2325 = vdwg.mxu0
  %v2326 = vadd.f32 %v2012, %v2231
  %v2327 = vadd.f32 %v2013, %v2234
  %v2328 = vadd.f32 %v2014, %v2237
  %v2329 = vadd.f32 %v2015, %v2240
  %v2330 = vadd.f32 %v2016, %v2243
  %v2331 = vadd.f32 %v2017, %v2246
  %v2332 = vadd.f32 %v2018, %v2249
  %v2333 = vadd.f32 %v2019, %v2252
  %v2334 = vadd.f32 %v2020, %v2255
  %v2335 = vadd.f32 %v2021, %v2258
  %v2336 = vadd.f32 %v2022, %v2261
  %v2337 = vadd.f32 %v2023, %v2264
  %v2338 = vadd.f32 %v2024, %v2267
  %v2339 = vadd.f32 %v2025, %v2270
  %v2340 = vadd.f32 %v2026, %v2273
  %v2341 = vadd.f32 %v2027, %v2276
  %v2342 = vadd.f32 %v2028, %v2279
  %v2343 = vadd.f32 %v2029, %v2282
  %v2344 = vadd.f32 %v2030, %v2285
  %v2345 = vadd.f32 %v2031, %v2288
  %v2346 = vadd.f32 %v2032, %v2291
  %v2347 = vadd.f32 %v2033, %v2294
  %v2348 = vadd.f32 %v2034, %v2297
  %v2349 = vadd.f32 %v2035, %v2300
  %v2350 = vadd.f32 %v2036, %v2303
  %v2351 = vadd.f32 %v2037, %v2306
  %v2352 = vadd.f32 %v2038, %v2309
  %v2353 = vadd.f32 %v2039, %v2312
  %v2354 = vadd.f32 %v2040, %v2315
  %v2355 = vadd.f32 %v2041, %v2318
  %v2356 = vadd.f32 %v2042, %v2321
  %v2357 = vadd.f32 %v2043, %v2324
  %s2358 = scalar_lea.vmem %s3, 1792
  %v2359 = vld [vmem:[%s2358] sm:$0xff]
  %v2360 = vld [vmem:[%s2358 + $0x8] sm:$0xff]
  %v2361 = vld [vmem:[%s2358 + $0x10] sm:$0xff]
  %v2362 = vld [vmem:[%s2358 + $0x18] sm:$0xff]
  %v2363 = vld [vmem:[%s2358 + $0x20] sm:$0xff]
  %v2364 = vld [vmem:[%s2358 + $0x28] sm:$0xff]
  %v2365 = vld [vmem:[%s2358 + $0x30] sm:$0xff]
  %v2366 = vld [vmem:[%s2358 + $0x38] sm:$0xff]
  %v2367 = vld [vmem:[%s2358 + $0x40] sm:$0xff]
  %v2368 = vld [vmem:[%s2358 + $0x48] sm:$0xff]
  %v2369 = vld [vmem:[%s2358 + $0x50] sm:$0xff]
  %v2370 = vld [vmem:[%s2358 + $0x58] sm:$0xff]
  %v2371 = vld [vmem:[%s2358 + $0x60] sm:$0xff]
  %v2372 = vld [vmem:[%s2358 + $0x68] sm:$0xff]
  %v2373 = vld [vmem:[%s2358 + $0x70] sm:$0xff]
  %v2374 = vld [vmem:[%s2358 + $0x78] sm:$0xff]
  %v2375 = vld [vmem:[%s2358 + $0x80] sm:$0xff]
  %v2376 = vld [vmem:[%s2358 + $0x88] sm:$0xff]
  %v2377 = vld [vmem:[%s2358 + $0x90] sm:$0xff]
  %v2378 = vld [vmem:[%s2358 + $0x98] sm:$0xff]
  %v2379 = vld [vmem:[%s2358 + $0xa0] sm:$0xff]
  %v2380 = vld [vmem:[%s2358 + $0xa8] sm:$0xff]
  %v2381 = vld [vmem:[%s2358 + $0xb0] sm:$0xff]
  %v2382 = vld [vmem:[%s2358 + $0xb8] sm:$0xff]
  %v2383 = vld [vmem:[%s2358 + $0xc0] sm:$0xff]
  %v2384 = vld [vmem:[%s2358 + $0xc8] sm:$0xff]
  %v2385 = vld [vmem:[%s2358 + $0xd0] sm:$0xff]
  %v2386 = vld [vmem:[%s2358 + $0xd8] sm:$0xff]
  %v2387 = vld [vmem:[%s2358 + $0xe0] sm:$0xff]
  %v2388 = vld [vmem:[%s2358 + $0xe8] sm:$0xff]
  %v2389 = vld [vmem:[%s2358 + $0xf0] sm:$0xff]
  %v2390 = vld [vmem:[%s2358 + $0xf8] sm:$0xff]
  %v2391 = vmul.f32 %v31, %v2359
  %v2392 = vmul.f32 %v32, %v2360
  %v2393 = vmul.f32 %v33, %v2361
  %v2394 = vmul.f32 %v34, %v2362
  %v2395 = vmul.f32 %v35, %v2363
  %v2396 = vmul.f32 %v36, %v2364
  %v2397 = vmul.f32 %v37, %v2365
  %v2398 = vmul.f32 %v38, %v2366
  %v2399 = vmul.f32 %v39, %v2367
  %v2400 = vmul.f32 %v40, %v2368
  %v2401 = vmul.f32 %v41, %v2369
  %v2402 = vmul.f32 %v42, %v2370
  %v2403 = vmul.f32 %v43, %v2371
  %v2404 = vmul.f32 %v44, %v2372
  %v2405 = vmul.f32 %v45, %v2373
  %v2406 = vmul.f32 %v46, %v2374
  %v2407 = vmul.f32 %v47, %v2375
  %v2408 = vmul.f32 %v48, %v2376
  %v2409 = vmul.f32 %v49, %v2377
  %v2410 = vmul.f32 %v50, %v2378
  %v2411 = vmul.f32 %v51, %v2379
  %v2412 = vmul.f32 %v52, %v2380
  %v2413 = vmul.f32 %v53, %v2381
  %v2414 = vmul.f32 %v54, %v2382
  %v2415 = vmul.f32 %v55, %v2383
  %v2416 = vmul.f32 %v56, %v2384
  %v2417 = vmul.f32 %v57, %v2385
  %v2418 = vmul.f32 %v58, %v2386
  %v2419 = vmul.f32 %v59, %v2387
  %v2420 = vmul.f32 %v60, %v2388
  %v2421 = vmul.f32 %v29, %v2389
  %v2422 = vmul.f32 %v30, %v2390
  %v2423 = vld [vmem:[%s1 + $0x1c0] sm:$0xff]
  %v2424 = vld [vmem:[%s1 + $0x1c8] sm:$0xff]
  %v2425 = vld [vmem:[%s1 + $0x1d0] sm:$0xff]
  %v2426 = vld [vmem:[%s1 + $0x1d8] sm:$0xff]
  %v2427 = vld [vmem:[%s1 + $0x1e0] sm:$0xff]
  %v2428 = vld [vmem:[%s1 + $0x1e8] sm:$0xff]
  %v2429 = vld [vmem:[%s1 + $0x1f0] sm:$0xff]
  %v2430 = vld [vmem:[%s1 + $0x1f8] sm:$0xff]
  %v2432 = vsel %vm232, %v2391, 0
  %v2435 = vsel %vm232, %v2392, 0
  %v2438 = vsel %vm232, %v2393, 0
  %v2441 = vsel %vm232, %v2394, 0
  %v2444 = vsel %vm232, %v2395, 0
  %v2447 = vsel %vm232, %v2396, 0
  %v2450 = vsel %vm232, %v2397, 0
  %v2453 = vsel %vm232, %v2398, 0
  %v2456 = vsel %vm232, %v2399, 0
  %v2459 = vsel %vm232, %v2400, 0
  %v2462 = vsel %vm232, %v2401, 0
  %v2465 = vsel %vm232, %v2402, 0
  %v2468 = vsel %vm232, %v2403, 0
  %v2471 = vsel %vm232, %v2404, 0
  %v2474 = vsel %vm232, %v2405, 0
  %v2477 = vsel %vm232, %v2406, 0
  %v2480 = vsel %vm232, %v2407, 0
  %v2483 = vsel %vm232, %v2408, 0
  %v2486 = vsel %vm232, %v2409, 0
  %v2489 = vsel %vm232, %v2410, 0
  %v2492 = vsel %vm232, %v2411, 0
  %v2495 = vsel %vm232, %v2412, 0
  %v2498 = vsel %vm232, %v2413, 0
  %v2501 = vsel %vm232, %v2414, 0
  %v2504 = vsel %vm232, %v2415, 0
  %v2507 = vsel %vm232, %v2416, 0
  %v2510 = vsel %vm232, %v2417, 0
  %v2513 = vsel %vm232, %v2418, 0
  %v2516 = vsel %vm232, %v2419, 0
  %v2519 = vsel %vm232, %v2420, 0
  %v2522 = vsel %vm232, %v2421, 0
  %v2525 = vsel %vm232, %v2422, 0
  %2527 = vmatpush.msra.mxu0 0.0
  %2528 = vmatpush.msra.mxu0 0.0
  %2529 = vmatpush.msra.mxu0 0.0
  %2530 = vmatpush.msra.mxu0 0.0
  %2531 = vmatpush.msra.mxu0 0.0
  %2532 = vmatpush.msra.mxu0 0.0
  %2533 = vmatpush.msra.mxu0 0.0
  %2534 = vmatpush.msra.mxu0 0.0
  %2535 = vmatpush.msra.mxu0 %v2430
  %2536 = vmatpush.msra.mxu0 %v2429
  %2537 = vmatpush.msra.mxu0 %v2428
  %2538 = vmatpush.msra.mxu0 %v2427
  %2539 = vmatpush.msra.mxu0 %v2426
  %2540 = vmatpush.msra.mxu0 %v2425
  %2541 = vmatpush.msra.mxu0 %v2424
  %2542 = vmatpush.msra.mxu0 %v2423
  %2543 = vmatmul.f32.gmra.mxu0 %v2432
  %v2544 = vpop.f32.mrf.mxu0
  %v2545 = vadd.f32 0.0, %v2544
  %2546 = vmatmul.f32.gmra.mxu0 %v2435
  %v2547 = vpop.f32.mrf.mxu0
  %v2548 = vadd.f32 0.0, %v2547
  %2549 = vmatmul.f32.gmra.mxu0 %v2438
  %v2550 = vpop.f32.mrf.mxu0
  %v2551 = vadd.f32 0.0, %v2550
  %2552 = vmatmul.f32.gmra.mxu0 %v2441
  %v2553 = vpop.f32.mrf.mxu0
  %v2554 = vadd.f32 0.0, %v2553
  %2555 = vmatmul.f32.gmra.mxu0 %v2444
  %v2556 = vpop.f32.mrf.mxu0
  %v2557 = vadd.f32 0.0, %v2556
  %2558 = vmatmul.f32.gmra.mxu0 %v2447
  %v2559 = vpop.f32.mrf.mxu0
  %v2560 = vadd.f32 0.0, %v2559
  %2561 = vmatmul.f32.gmra.mxu0 %v2450
  %v2562 = vpop.f32.mrf.mxu0
  %v2563 = vadd.f32 0.0, %v2562
  %2564 = vmatmul.f32.gmra.mxu0 %v2453
  %v2565 = vpop.f32.mrf.mxu0
  %v2566 = vadd.f32 0.0, %v2565
  %2567 = vmatmul.f32.gmra.mxu0 %v2456
  %v2568 = vpop.f32.mrf.mxu0
  %v2569 = vadd.f32 0.0, %v2568
  %2570 = vmatmul.f32.gmra.mxu0 %v2459
  %v2571 = vpop.f32.mrf.mxu0
  %v2572 = vadd.f32 0.0, %v2571
  %2573 = vmatmul.f32.gmra.mxu0 %v2462
  %v2574 = vpop.f32.mrf.mxu0
  %v2575 = vadd.f32 0.0, %v2574
  %2576 = vmatmul.f32.gmra.mxu0 %v2465
  %v2577 = vpop.f32.mrf.mxu0
  %v2578 = vadd.f32 0.0, %v2577
  %2579 = vmatmul.f32.gmra.mxu0 %v2468
  %v2580 = vpop.f32.mrf.mxu0
  %v2581 = vadd.f32 0.0, %v2580
  %2582 = vmatmul.f32.gmra.mxu0 %v2471
  %v2583 = vpop.f32.mrf.mxu0
  %v2584 = vadd.f32 0.0, %v2583
  %2585 = vmatmul.f32.gmra.mxu0 %v2474
  %v2586 = vpop.f32.mrf.mxu0
  %v2587 = vadd.f32 0.0, %v2586
  %2588 = vmatmul.f32.gmra.mxu0 %v2477
  %v2589 = vpop.f32.mrf.mxu0
  %v2590 = vadd.f32 0.0, %v2589
  %2591 = vmatmul.f32.gmra.mxu0 %v2480
  %v2592 = vpop.f32.mrf.mxu0
  %v2593 = vadd.f32 0.0, %v2592
  %2594 = vmatmul.f32.gmra.mxu0 %v2483
  %v2595 = vpop.f32.mrf.mxu0
  %v2596 = vadd.f32 0.0, %v2595
  %2597 = vmatmul.f32.gmra.mxu0 %v2486
  %v2598 = vpop.f32.mrf.mxu0
  %v2599 = vadd.f32 0.0, %v2598
  %2600 = vmatmul.f32.gmra.mxu0 %v2489
  %v2601 = vpop.f32.mrf.mxu0
  %v2602 = vadd.f32 0.0, %v2601
  %2603 = vmatmul.f32.gmra.mxu0 %v2492
  %v2604 = vpop.f32.mrf.mxu0
  %v2605 = vadd.f32 0.0, %v2604
  %2606 = vmatmul.f32.gmra.mxu0 %v2495
  %v2607 = vpop.f32.mrf.mxu0
  %v2608 = vadd.f32 0.0, %v2607
  %2609 = vmatmul.f32.gmra.mxu0 %v2498
  %v2610 = vpop.f32.mrf.mxu0
  %v2611 = vadd.f32 0.0, %v2610
  %2612 = vmatmul.f32.gmra.mxu0 %v2501
  %v2613 = vpop.f32.mrf.mxu0
  %v2614 = vadd.f32 0.0, %v2613
  %2615 = vmatmul.f32.gmra.mxu0 %v2504
  %v2616 = vpop.f32.mrf.mxu0
  %v2617 = vadd.f32 0.0, %v2616
  %2618 = vmatmul.f32.gmra.mxu0 %v2507
  %v2619 = vpop.f32.mrf.mxu0
  %v2620 = vadd.f32 0.0, %v2619
  %2621 = vmatmul.f32.gmra.mxu0 %v2510
  %v2622 = vpop.f32.mrf.mxu0
  %v2623 = vadd.f32 0.0, %v2622
  %2624 = vmatmul.f32.gmra.mxu0 %v2513
  %v2625 = vpop.f32.mrf.mxu0
  %v2626 = vadd.f32 0.0, %v2625
  %2627 = vmatmul.f32.gmra.mxu0 %v2516
  %v2628 = vpop.f32.mrf.mxu0
  %v2629 = vadd.f32 0.0, %v2628
  %2630 = vmatmul.f32.gmra.mxu0 %v2519
  %v2631 = vpop.f32.mrf.mxu0
  %v2632 = vadd.f32 0.0, %v2631
  %2633 = vmatmul.f32.gmra.mxu0 %v2522
  %v2634 = vpop.f32.mrf.mxu0
  %v2635 = vadd.f32 0.0, %v2634
  %2636 = vmatmul.f32.gmra.mxu0 %v2525
  %v2637 = vpop.f32.mrf.mxu0
  %v2638 = vadd.f32 0.0, %v2637
  %2639 = vdwg.mxu0
  %v2640 = vadd.f32 %v2326, %v2545
  %v2641 = vadd.f32 %v2327, %v2548
  %v2642 = vadd.f32 %v2328, %v2551
  %v2643 = vadd.f32 %v2329, %v2554
  %v2644 = vadd.f32 %v2330, %v2557
  %v2645 = vadd.f32 %v2331, %v2560
  %v2646 = vadd.f32 %v2332, %v2563
  %v2647 = vadd.f32 %v2333, %v2566
  %v2648 = vadd.f32 %v2334, %v2569
  %v2649 = vadd.f32 %v2335, %v2572
  %v2650 = vadd.f32 %v2336, %v2575
  %v2651 = vadd.f32 %v2337, %v2578
  %v2652 = vadd.f32 %v2338, %v2581
  %v2653 = vadd.f32 %v2339, %v2584
  %v2654 = vadd.f32 %v2340, %v2587
  %v2655 = vadd.f32 %v2341, %v2590
  %v2656 = vadd.f32 %v2342, %v2593
  %v2657 = vadd.f32 %v2343, %v2596
  %v2658 = vadd.f32 %v2344, %v2599
  %v2659 = vadd.f32 %v2345, %v2602
  %v2660 = vadd.f32 %v2346, %v2605
  %v2661 = vadd.f32 %v2347, %v2608
  %v2662 = vadd.f32 %v2348, %v2611
  %v2663 = vadd.f32 %v2349, %v2614
  %v2664 = vadd.f32 %v2350, %v2617
  %v2665 = vadd.f32 %v2351, %v2620
  %v2666 = vadd.f32 %v2352, %v2623
  %v2667 = vadd.f32 %v2353, %v2626
  %v2668 = vadd.f32 %v2354, %v2629
  %v2669 = vadd.f32 %v2355, %v2632
  %v2670 = vadd.f32 %v2356, %v2635
  %v2671 = vadd.f32 %v2357, %v2638
  %s2672 = scalar_lea.vmem %s3, 2048
  %v2673 = vld [vmem:[%s2672] sm:$0xff]
  %v2674 = vld [vmem:[%s2672 + $0x8] sm:$0xff]
  %v2675 = vld [vmem:[%s2672 + $0x10] sm:$0xff]
  %v2676 = vld [vmem:[%s2672 + $0x18] sm:$0xff]
  %v2677 = vld [vmem:[%s2672 + $0x20] sm:$0xff]
  %v2678 = vld [vmem:[%s2672 + $0x28] sm:$0xff]
  %v2679 = vld [vmem:[%s2672 + $0x30] sm:$0xff]
  %v2680 = vld [vmem:[%s2672 + $0x38] sm:$0xff]
  %v2681 = vld [vmem:[%s2672 + $0x40] sm:$0xff]
  %v2682 = vld [vmem:[%s2672 + $0x48] sm:$0xff]
  %v2683 = vld [vmem:[%s2672 + $0x50] sm:$0xff]
  %v2684 = vld [vmem:[%s2672 + $0x58] sm:$0xff]
  %v2685 = vld [vmem:[%s2672 + $0x60] sm:$0xff]
  %v2686 = vld [vmem:[%s2672 + $0x68] sm:$0xff]
  %v2687 = vld [vmem:[%s2672 + $0x70] sm:$0xff]
  %v2688 = vld [vmem:[%s2672 + $0x78] sm:$0xff]
  %v2689 = vld [vmem:[%s2672 + $0x80] sm:$0xff]
  %v2690 = vld [vmem:[%s2672 + $0x88] sm:$0xff]
  %v2691 = vld [vmem:[%s2672 + $0x90] sm:$0xff]
  %v2692 = vld [vmem:[%s2672 + $0x98] sm:$0xff]
  %v2693 = vld [vmem:[%s2672 + $0xa0] sm:$0xff]
  %v2694 = vld [vmem:[%s2672 + $0xa8] sm:$0xff]
  %v2695 = vld [vmem:[%s2672 + $0xb0] sm:$0xff]
  %v2696 = vld [vmem:[%s2672 + $0xb8] sm:$0xff]
  %v2697 = vld [vmem:[%s2672 + $0xc0] sm:$0xff]
  %v2698 = vld [vmem:[%s2672 + $0xc8] sm:$0xff]
  %v2699 = vld [vmem:[%s2672 + $0xd0] sm:$0xff]
  %v2700 = vld [vmem:[%s2672 + $0xd8] sm:$0xff]
  %v2701 = vld [vmem:[%s2672 + $0xe0] sm:$0xff]
  %v2702 = vld [vmem:[%s2672 + $0xe8] sm:$0xff]
  %v2703 = vld [vmem:[%s2672 + $0xf0] sm:$0xff]
  %v2704 = vld [vmem:[%s2672 + $0xf8] sm:$0xff]
  %v2705 = vmul.f32 %v849, %v2673
  %v2706 = vmul.f32 %v848, %v2674
  %v2707 = vmul.f32 %v847, %v2675
  %v2708 = vmul.f32 %v846, %v2676
  %v2709 = vmul.f32 %v845, %v2677
  %v2710 = vmul.f32 %v844, %v2678
  %v2711 = vmul.f32 %v843, %v2679
  %v2712 = vmul.f32 %v842, %v2680
  %v2713 = vmul.f32 %v841, %v2681
  %v2714 = vmul.f32 %v840, %v2682
  %v2715 = vmul.f32 %v839, %v2683
  %v2716 = vmul.f32 %v838, %v2684
  %v2717 = vmul.f32 %v837, %v2685
  %v2718 = vmul.f32 %v836, %v2686
  %v2719 = vmul.f32 %v835, %v2687
  %v2720 = vmul.f32 %v834, %v2688
  %v2721 = vmul.f32 %v833, %v2689
  %v2722 = vmul.f32 %v832, %v2690
  %v2723 = vmul.f32 %v831, %v2691
  %v2724 = vmul.f32 %v830, %v2692
  %v2725 = vmul.f32 %v829, %v2693
  %v2726 = vmul.f32 %v828, %v2694
  %v2727 = vmul.f32 %v827, %v2695
  %v2728 = vmul.f32 %v826, %v2696
  %v2729 = vmul.f32 %v825, %v2697
  %v2730 = vmul.f32 %v824, %v2698
  %v2731 = vmul.f32 %v823, %v2699
  %v2732 = vmul.f32 %v822, %v2700
  %v2733 = vmul.f32 %v821, %v2701
  %v2734 = vmul.f32 %v852, %v2702
  %v2735 = vmul.f32 %v851, %v2703
  %v2736 = vmul.f32 %v850, %v2704
  %v2737 = vld [vmem:[%s1 + $0x200] sm:$0xff]
  %v2738 = vld [vmem:[%s1 + $0x208] sm:$0xff]
  %v2739 = vld [vmem:[%s1 + $0x210] sm:$0xff]
  %v2740 = vld [vmem:[%s1 + $0x218] sm:$0xff]
  %v2741 = vld [vmem:[%s1 + $0x220] sm:$0xff]
  %v2742 = vld [vmem:[%s1 + $0x228] sm:$0xff]
  %v2743 = vld [vmem:[%s1 + $0x230] sm:$0xff]
  %v2744 = vld [vmem:[%s1 + $0x238] sm:$0xff]
  %v2746 = vsel %vm232, %v2705, 0
  %v2749 = vsel %vm232, %v2706, 0
  %v2752 = vsel %vm232, %v2707, 0
  %v2755 = vsel %vm232, %v2708, 0
  %v2758 = vsel %vm232, %v2709, 0
  %v2761 = vsel %vm232, %v2710, 0
  %v2764 = vsel %vm232, %v2711, 0
  %v2767 = vsel %vm232, %v2712, 0
  %v2770 = vsel %vm232, %v2713, 0
  %v2773 = vsel %vm232, %v2714, 0
  %v2776 = vsel %vm232, %v2715, 0
  %v2779 = vsel %vm232, %v2716, 0
  %v2782 = vsel %vm232, %v2717, 0
  %v2785 = vsel %vm232, %v2718, 0
  %v2788 = vsel %vm232, %v2719, 0
  %v2791 = vsel %vm232, %v2720, 0
  %v2794 = vsel %vm232, %v2721, 0
  %v2797 = vsel %vm232, %v2722, 0
  %v2800 = vsel %vm232, %v2723, 0
  %v2803 = vsel %vm232, %v2724, 0
  %v2806 = vsel %vm232, %v2725, 0
  %v2809 = vsel %vm232, %v2726, 0
  %v2812 = vsel %vm232, %v2727, 0
  %v2815 = vsel %vm232, %v2728, 0
  %v2818 = vsel %vm232, %v2729, 0
  %v2821 = vsel %vm232, %v2730, 0
  %v2824 = vsel %vm232, %v2731, 0
  %v2827 = vsel %vm232, %v2732, 0
  %v2830 = vsel %vm232, %v2733, 0
  %v2833 = vsel %vm232, %v2734, 0
  %v2836 = vsel %vm232, %v2735, 0
  %v2839 = vsel %vm232, %v2736, 0
  %2841 = vmatpush.msra.mxu0 0.0
  %2842 = vmatpush.msra.mxu0 0.0
  %2843 = vmatpush.msra.mxu0 0.0
  %2844 = vmatpush.msra.mxu0 0.0
  %2845 = vmatpush.msra.mxu0 0.0
  %2846 = vmatpush.msra.mxu0 0.0
  %2847 = vmatpush.msra.mxu0 0.0
  %2848 = vmatpush.msra.mxu0 0.0
  %2849 = vmatpush.msra.mxu0 %v2744
  %2850 = vmatpush.msra.mxu0 %v2743
  %2851 = vmatpush.msra.mxu0 %v2742
  %2852 = vmatpush.msra.mxu0 %v2741
  %2853 = vmatpush.msra.mxu0 %v2740
  %2854 = vmatpush.msra.mxu0 %v2739
  %2855 = vmatpush.msra.mxu0 %v2738
  %2856 = vmatpush.msra.mxu0 %v2737
  %2857 = vmatmul.f32.gmra.mxu0 %v2746
  %v2858 = vpop.f32.mrf.mxu0
  %v2859 = vadd.f32 0.0, %v2858
  %2860 = vmatmul.f32.gmra.mxu0 %v2749
  %v2861 = vpop.f32.mrf.mxu0
  %v2862 = vadd.f32 0.0, %v2861
  %2863 = vmatmul.f32.gmra.mxu0 %v2752
  %v2864 = vpop.f32.mrf.mxu0
  %v2865 = vadd.f32 0.0, %v2864
  %2866 = vmatmul.f32.gmra.mxu0 %v2755
  %v2867 = vpop.f32.mrf.mxu0
  %v2868 = vadd.f32 0.0, %v2867
  %2869 = vmatmul.f32.gmra.mxu0 %v2758
  %v2870 = vpop.f32.mrf.mxu0
  %v2871 = vadd.f32 0.0, %v2870
  %2872 = vmatmul.f32.gmra.mxu0 %v2761
  %v2873 = vpop.f32.mrf.mxu0
  %v2874 = vadd.f32 0.0, %v2873
  %2875 = vmatmul.f32.gmra.mxu0 %v2764
  %v2876 = vpop.f32.mrf.mxu0
  %v2877 = vadd.f32 0.0, %v2876
  %2878 = vmatmul.f32.gmra.mxu0 %v2767
  %v2879 = vpop.f32.mrf.mxu0
  %v2880 = vadd.f32 0.0, %v2879
  %2881 = vmatmul.f32.gmra.mxu0 %v2770
  %v2882 = vpop.f32.mrf.mxu0
  %v2883 = vadd.f32 0.0, %v2882
  %2884 = vmatmul.f32.gmra.mxu0 %v2773
  %v2885 = vpop.f32.mrf.mxu0
  %v2886 = vadd.f32 0.0, %v2885
  %2887 = vmatmul.f32.gmra.mxu0 %v2776
  %v2888 = vpop.f32.mrf.mxu0
  %v2889 = vadd.f32 0.0, %v2888
  %2890 = vmatmul.f32.gmra.mxu0 %v2779
  %v2891 = vpop.f32.mrf.mxu0
  %v2892 = vadd.f32 0.0, %v2891
  %2893 = vmatmul.f32.gmra.mxu0 %v2782
  %v2894 = vpop.f32.mrf.mxu0
  %v2895 = vadd.f32 0.0, %v2894
  %2896 = vmatmul.f32.gmra.mxu0 %v2785
  %v2897 = vpop.f32.mrf.mxu0
  %v2898 = vadd.f32 0.0, %v2897
  %2899 = vmatmul.f32.gmra.mxu0 %v2788
  %v2900 = vpop.f32.mrf.mxu0
  %v2901 = vadd.f32 0.0, %v2900
  %2902 = vmatmul.f32.gmra.mxu0 %v2791
  %v2903 = vpop.f32.mrf.mxu0
  %v2904 = vadd.f32 0.0, %v2903
  %2905 = vmatmul.f32.gmra.mxu0 %v2794
  %v2906 = vpop.f32.mrf.mxu0
  %v2907 = vadd.f32 0.0, %v2906
  %2908 = vmatmul.f32.gmra.mxu0 %v2797
  %v2909 = vpop.f32.mrf.mxu0
  %v2910 = vadd.f32 0.0, %v2909
  %2911 = vmatmul.f32.gmra.mxu0 %v2800
  %v2912 = vpop.f32.mrf.mxu0
  %v2913 = vadd.f32 0.0, %v2912
  %2914 = vmatmul.f32.gmra.mxu0 %v2803
  %v2915 = vpop.f32.mrf.mxu0
  %v2916 = vadd.f32 0.0, %v2915
  %2917 = vmatmul.f32.gmra.mxu0 %v2806
  %v2918 = vpop.f32.mrf.mxu0
  %v2919 = vadd.f32 0.0, %v2918
  %2920 = vmatmul.f32.gmra.mxu0 %v2809
  %v2921 = vpop.f32.mrf.mxu0
  %v2922 = vadd.f32 0.0, %v2921
  %2923 = vmatmul.f32.gmra.mxu0 %v2812
  %v2924 = vpop.f32.mrf.mxu0
  %v2925 = vadd.f32 0.0, %v2924
  %2926 = vmatmul.f32.gmra.mxu0 %v2815
  %v2927 = vpop.f32.mrf.mxu0
  %v2928 = vadd.f32 0.0, %v2927
  %2929 = vmatmul.f32.gmra.mxu0 %v2818
  %v2930 = vpop.f32.mrf.mxu0
  %v2931 = vadd.f32 0.0, %v2930
  %2932 = vmatmul.f32.gmra.mxu0 %v2821
  %v2933 = vpop.f32.mrf.mxu0
  %v2934 = vadd.f32 0.0, %v2933
  %2935 = vmatmul.f32.gmra.mxu0 %v2824
  %v2936 = vpop.f32.mrf.mxu0
  %v2937 = vadd.f32 0.0, %v2936
  %2938 = vmatmul.f32.gmra.mxu0 %v2827
  %v2939 = vpop.f32.mrf.mxu0
  %v2940 = vadd.f32 0.0, %v2939
  %2941 = vmatmul.f32.gmra.mxu0 %v2830
  %v2942 = vpop.f32.mrf.mxu0
  %v2943 = vadd.f32 0.0, %v2942
  %2944 = vmatmul.f32.gmra.mxu0 %v2833
  %v2945 = vpop.f32.mrf.mxu0
  %v2946 = vadd.f32 0.0, %v2945
  %2947 = vmatmul.f32.gmra.mxu0 %v2836
  %v2948 = vpop.f32.mrf.mxu0
  %v2949 = vadd.f32 0.0, %v2948
  %2950 = vmatmul.f32.gmra.mxu0 %v2839
  %v2951 = vpop.f32.mrf.mxu0
  %v2952 = vadd.f32 0.0, %v2951
  %2953 = vdwg.mxu0
  %v2954 = vadd.f32 %v2640, %v2859
  %v2955 = vadd.f32 %v2641, %v2862
  %v2956 = vadd.f32 %v2642, %v2865
  %v2957 = vadd.f32 %v2643, %v2868
  %v2958 = vadd.f32 %v2644, %v2871
  %v2959 = vadd.f32 %v2645, %v2874
  %v2960 = vadd.f32 %v2646, %v2877
  %v2961 = vadd.f32 %v2647, %v2880
  %v2962 = vadd.f32 %v2648, %v2883
  %v2963 = vadd.f32 %v2649, %v2886
  %v2964 = vadd.f32 %v2650, %v2889
  %v2965 = vadd.f32 %v2651, %v2892
  %v2966 = vadd.f32 %v2652, %v2895
  %v2967 = vadd.f32 %v2653, %v2898
  %v2968 = vadd.f32 %v2654, %v2901
  %v2969 = vadd.f32 %v2655, %v2904
  %v2970 = vadd.f32 %v2656, %v2907
  %v2971 = vadd.f32 %v2657, %v2910
  %v2972 = vadd.f32 %v2658, %v2913
  %v2973 = vadd.f32 %v2659, %v2916
  %v2974 = vadd.f32 %v2660, %v2919
  %v2975 = vadd.f32 %v2661, %v2922
  %v2976 = vadd.f32 %v2662, %v2925
  %v2977 = vadd.f32 %v2663, %v2928
  %v2978 = vadd.f32 %v2664, %v2931
  %v2979 = vadd.f32 %v2665, %v2934
  %v2980 = vadd.f32 %v2666, %v2937
  %v2981 = vadd.f32 %v2667, %v2940
  %v2982 = vadd.f32 %v2668, %v2943
  %v2983 = vadd.f32 %v2669, %v2946
  %v2984 = vadd.f32 %v2670, %v2949
  %v2985 = vadd.f32 %v2671, %v2952
  %vm2986 = vcmp.gt.f32.partialorder %v2954, 0.0
  %vm2987 = vcmp.gt.f32.partialorder %v2955, 0.0
  %vm2988 = vcmp.gt.f32.partialorder %v2956, 0.0
  %vm2989 = vcmp.gt.f32.partialorder %v2957, 0.0
  %vm2990 = vcmp.gt.f32.partialorder %v2958, 0.0
  %vm2991 = vcmp.gt.f32.partialorder %v2959, 0.0
  %vm2992 = vcmp.gt.f32.partialorder %v2960, 0.0
  %vm2993 = vcmp.gt.f32.partialorder %v2961, 0.0
  %vm2994 = vcmp.gt.f32.partialorder %v2962, 0.0
  %vm2995 = vcmp.gt.f32.partialorder %v2963, 0.0
  %vm2996 = vcmp.gt.f32.partialorder %v2964, 0.0
  %vm2997 = vcmp.gt.f32.partialorder %v2965, 0.0
  %vm2998 = vcmp.gt.f32.partialorder %v2966, 0.0
  %vm2999 = vcmp.gt.f32.partialorder %v2967, 0.0
  %vm3000 = vcmp.gt.f32.partialorder %v2968, 0.0
  %vm3001 = vcmp.gt.f32.partialorder %v2969, 0.0
  %vm3002 = vcmp.gt.f32.partialorder %v2970, 0.0
  %vm3003 = vcmp.gt.f32.partialorder %v2971, 0.0
  %vm3004 = vcmp.gt.f32.partialorder %v2972, 0.0
  %vm3005 = vcmp.gt.f32.partialorder %v2973, 0.0
  %vm3006 = vcmp.gt.f32.partialorder %v2974, 0.0
  %vm3007 = vcmp.gt.f32.partialorder %v2975, 0.0
  %vm3008 = vcmp.gt.f32.partialorder %v2976, 0.0
  %vm3009 = vcmp.gt.f32.partialorder %v2977, 0.0
  %vm3010 = vcmp.gt.f32.partialorder %v2978, 0.0
  %vm3011 = vcmp.gt.f32.partialorder %v2979, 0.0
  %vm3012 = vcmp.gt.f32.partialorder %v2980, 0.0
  %vm3013 = vcmp.gt.f32.partialorder %v2981, 0.0
  %vm3014 = vcmp.gt.f32.partialorder %v2982, 0.0
  %vm3015 = vcmp.gt.f32.partialorder %v2983, 0.0
  %vm3016 = vcmp.gt.f32.partialorder %v2984, 0.0
  %vm3017 = vcmp.gt.f32.partialorder %v2985, 0.0
  %v3018 = vmul.f32 %v2954, 0.2
  %v3019 = vmul.f32 %v2955, 0.2
  %v3020 = vmul.f32 %v2956, 0.2
  %v3021 = vmul.f32 %v2957, 0.2
  %v3022 = vmul.f32 %v2958, 0.2
  %v3023 = vmul.f32 %v2959, 0.2
  %v3024 = vmul.f32 %v2960, 0.2
  %v3025 = vmul.f32 %v2961, 0.2
  %v3026 = vmul.f32 %v2962, 0.2
  %v3027 = vmul.f32 %v2963, 0.2
  %v3028 = vmul.f32 %v2964, 0.2
  %v3029 = vmul.f32 %v2965, 0.2
  %v3030 = vmul.f32 %v2966, 0.2
  %v3031 = vmul.f32 %v2967, 0.2
  %v3032 = vmul.f32 %v2968, 0.2
  %v3033 = vmul.f32 %v2969, 0.2
  %v3034 = vmul.f32 %v2970, 0.2
  %v3035 = vmul.f32 %v2971, 0.2
  %v3036 = vmul.f32 %v2972, 0.2
  %v3037 = vmul.f32 %v2973, 0.2
  %v3038 = vmul.f32 %v2974, 0.2
  %v3039 = vmul.f32 %v2975, 0.2
  %v3040 = vmul.f32 %v2976, 0.2
  %v3041 = vmul.f32 %v2977, 0.2
  %v3042 = vmul.f32 %v2978, 0.2
  %v3043 = vmul.f32 %v2979, 0.2
  %v3044 = vmul.f32 %v2980, 0.2
  %v3045 = vmul.f32 %v2981, 0.2
  %v3046 = vmul.f32 %v2982, 0.2
  %v3047 = vmul.f32 %v2983, 0.2
  %v3048 = vmul.f32 %v2984, 0.2
  %v3049 = vmul.f32 %v2985, 0.2
  %v3050 = vsel %vm2986, %v2954, %v3018
  %v3051 = vsel %vm2987, %v2955, %v3019
  %v3052 = vsel %vm2988, %v2956, %v3020
  %v3053 = vsel %vm2989, %v2957, %v3021
  %v3054 = vsel %vm2990, %v2958, %v3022
  %v3055 = vsel %vm2991, %v2959, %v3023
  %v3056 = vsel %vm2992, %v2960, %v3024
  %v3057 = vsel %vm2993, %v2961, %v3025
  %v3058 = vsel %vm2994, %v2962, %v3026
  %v3059 = vsel %vm2995, %v2963, %v3027
  %v3060 = vsel %vm2996, %v2964, %v3028
  %v3061 = vsel %vm2997, %v2965, %v3029
  %v3062 = vsel %vm2998, %v2966, %v3030
  %v3063 = vsel %vm2999, %v2967, %v3031
  %v3064 = vsel %vm3000, %v2968, %v3032
  %v3065 = vsel %vm3001, %v2969, %v3033
  %v3066 = vsel %vm3002, %v2970, %v3034
  %v3067 = vsel %vm3003, %v2971, %v3035
  %v3068 = vsel %vm3004, %v2972, %v3036
  %v3069 = vsel %vm3005, %v2973, %v3037
  %v3070 = vsel %vm3006, %v2974, %v3038
  %v3071 = vsel %vm3007, %v2975, %v3039
  %v3072 = vsel %vm3008, %v2976, %v3040
  %v3073 = vsel %vm3009, %v2977, %v3041
  %v3074 = vsel %vm3010, %v2978, %v3042
  %v3075 = vsel %vm3011, %v2979, %v3043
  %v3076 = vsel %vm3012, %v2980, %v3044
  %v3077 = vsel %vm3013, %v2981, %v3045
  %v3078 = vsel %vm3014, %v2982, %v3046
  %v3079 = vsel %vm3015, %v2983, %v3047
  %v3080 = vsel %vm3016, %v2984, %v3048
  %v3081 = vsel %vm3017, %v2985, %v3049
  %v3082 = vld [vmem:[%s6] sm:$0x3]
  %v3084 = vperm.slane %v3082, 0
  %v3085 = vperm.slane %v3082, 1
  %3088 = vmatpush.msra.mxu0 %v3065
  %3089 = vmatpush.msra.mxu0 %v3064
  %3090 = vmatpush.msra.mxu0 %v3063
  %3091 = vmatpush.msra.mxu0 %v3062
  %3092 = vmatpush.msra.mxu0 %v3061
  %3093 = vmatpush.msra.mxu0 %v3060
  %3094 = vmatpush.msra.mxu0 %v3059
  %3095 = vmatpush.msra.mxu0 %v3058
  %3096 = vmatpush.msra.mxu0 %v3057
  %3097 = vmatpush.msra.mxu0 %v3056
  %3098 = vmatpush.msra.mxu0 %v3055
  %3099 = vmatpush.msra.mxu0 %v3054
  %3100 = vmatpush.msra.mxu0 %v3053
  %3101 = vmatpush.msra.mxu0 %v3052
  %3102 = vmatpush.msra.mxu0 %v3051
  %3103 = vmatpush.msra.mxu0 %v3050
  %3104 = vmatmul.f32.gmra.mxu0 %v3084
  %v3105 = vpop.f32.mrf.mxu0
  %v3106 = vadd.f32 0.0, %v3105
  %3107 = vdwg.mxu0
  %3108 = vmatpush.msra.mxu0 %v3081
  %3109 = vmatpush.msra.mxu0 %v3080
  %3110 = vmatpush.msra.mxu0 %v3079
  %3111 = vmatpush.msra.mxu0 %v3078
  %3112 = vmatpush.msra.mxu0 %v3077
  %3113 = vmatpush.msra.mxu0 %v3076
  %3114 = vmatpush.msra.mxu0 %v3075
  %3115 = vmatpush.msra.mxu0 %v3074
  %3116 = vmatpush.msra.mxu0 %v3073
  %3117 = vmatpush.msra.mxu0 %v3072
  %3118 = vmatpush.msra.mxu0 %v3071
  %3119 = vmatpush.msra.mxu0 %v3070
  %3120 = vmatpush.msra.mxu0 %v3069
  %3121 = vmatpush.msra.mxu0 %v3068
  %3122 = vmatpush.msra.mxu0 %v3067
  %3123 = vmatpush.msra.mxu0 %v3066
  %3124 = vmatmul.f32.gmra.mxu0 %v3085
  %v3125 = vpop.f32.mrf.mxu0
  %v3126 = vadd.f32 %v3106, %v3125
  %3127 = vdwg.mxu0
  %v3128 = vld [vmem:[%s4] sm:$0xff]
  %v3129 = vld [vmem:[%s4 + $0x8] sm:$0xff]
  %v3130 = vld [vmem:[%s4 + $0x10] sm:$0xff]
  %v3131 = vld [vmem:[%s4 + $0x18] sm:$0xff]
  %v3132 = vld [vmem:[%s4 + $0x20] sm:$0xff]
  %v3133 = vld [vmem:[%s4 + $0x28] sm:$0xff]
  %v3134 = vld [vmem:[%s4 + $0x30] sm:$0xff]
  %v3135 = vld [vmem:[%s4 + $0x38] sm:$0xff]
  %v3137 = vsel %vm232, %v3126, 0
  %3139 = vmatpush.msra.mxu0 0.0
  %3140 = vmatpush.msra.mxu0 0.0
  %3141 = vmatpush.msra.mxu0 0.0
  %3142 = vmatpush.msra.mxu0 0.0
  %3143 = vmatpush.msra.mxu0 0.0
  %3144 = vmatpush.msra.mxu0 0.0
  %3145 = vmatpush.msra.mxu0 0.0
  %3146 = vmatpush.msra.mxu0 0.0
  %3147 = vmatpush.msra.mxu0 %v3135
  %3148 = vmatpush.msra.mxu0 %v3134
  %3149 = vmatpush.msra.mxu0 %v3133
  %3150 = vmatpush.msra.mxu0 %v3132
  %3151 = vmatpush.msra.mxu0 %v3131
  %3152 = vmatpush.msra.mxu0 %v3130
  %3153 = vmatpush.msra.mxu0 %v3129
  %3154 = vmatpush.msra.mxu0 %v3128
  %3155 = vmatmul.f32.gmra.mxu0 %v3137
  %v3156 = vpop.f32.mrf.mxu0
  %v3157 = vadd.f32 0.0, %v3156
  %3158 = vdwg.mxu0
  %v3159 = vmax.f32 %v3157, 0.0
  %v3160 = vld [vmem:[%s5] sm:$0xff]
  %vm3161 = vcmask 64512
  %v3163 = vsel %vm3161, %v3159, 0
  %3165 = vmatpush.msra.mxu0 0.0
  %3166 = vmatpush.msra.mxu0 0.0
  %3167 = vmatpush.msra.mxu0 0.0
  %3168 = vmatpush.msra.mxu0 0.0
  %3169 = vmatpush.msra.mxu0 0.0
  %3170 = vmatpush.msra.mxu0 0.0
  %3171 = vmatpush.msra.mxu0 0.0
  %3172 = vmatpush.msra.mxu0 0.0
  %3173 = vmatpush.msra.mxu0 0.0
  %3174 = vmatpush.msra.mxu0 0.0
  %3175 = vmatpush.msra.mxu0 0.0
  %3176 = vmatpush.msra.mxu0 0.0
  %3177 = vmatpush.msra.mxu0 0.0
  %3178 = vmatpush.msra.mxu0 0.0
  %3179 = vmatpush.msra.mxu0 0.0
  %3180 = vmatpush.msra.mxu0 %v3160
  %3181 = vmatmul.f32.gmra.mxu0 %v3163
  %v3182 = vpop.f32.mrf.mxu0
  %v3183 = vadd.f32 0.0, %v3182
  %3184 = vdwg.mxu0
  %v3185 = vxor.u32 %v3183, 2147483648
  %v3186 = vmul.f32 %v3185, 1.442695
  %v3187 = vpow.pop %v3186
  %v3188 = vadd.f32 %v3187, 1.0
  %v3189 = vrcp.pop %v3188
  %v3190 = vmul.f32 %v3188, %v3189
  %v3191 = vsub.f32 1.0, %v3190
  %v3192 = vmul.f32 %v3189, %v3191
  %v3193 = vadd.f32 %v3189, %v3192
  %vm3194 = vweird.f32 %v3188
  %vm3195 = vweird.f32 %v3189
  %vm3196 = vmor %vm3194, %vm3195
  %v3197 = vsel %vm3196, %v3189, %v3193
  %v3198 = vand.u32 2147483647, %v3188
  %vm3199 = vcmp.eq.f32.partialorder %v3198, 8.507059e+37
  %v3200 = vand.u32 %v3188, 2147483648
  %v3201 = vor.u32 1.1754944e-38, %v3200
  %v3202 = vsel %vm3199, %v3201, %v3197
  %v3203 = vmul.f32 1.0, %v3202
  %v3204 = vld [vmem:[%s7] sm:$0xff]
  %v3205 = vld [vmem:[%s7 + $0x8] sm:$0xff]
  %v3206 = vld [vmem:[%s7 + $0x10] sm:$0xff]
  %v3207 = vld [vmem:[%s7 + $0x18] sm:$0xff]
  %v3208 = vld [vmem:[%s7 + $0x20] sm:$0xff]
  %v3209 = vld [vmem:[%s7 + $0x28] sm:$0xff]
  %v3210 = vld [vmem:[%s7 + $0x30] sm:$0xff]
  %v3211 = vld [vmem:[%s7 + $0x38] sm:$0xff]
  %v3212 = vld [vmem:[%s7 + $0x40] sm:$0xff]
  %v3213 = vld [vmem:[%s7 + $0x48] sm:$0xff]
  %v3214 = vld [vmem:[%s7 + $0x50] sm:$0xff]
  %v3215 = vld [vmem:[%s7 + $0x58] sm:$0xff]
  %v3216 = vld [vmem:[%s7 + $0x60] sm:$0xff]
  %v3217 = vld [vmem:[%s7 + $0x68] sm:$0xff]
  %v3218 = vld [vmem:[%s7 + $0x70] sm:$0xff]
  %v3219 = vld [vmem:[%s7 + $0x78] sm:$0xff]
  %v3220 = vld [vmem:[%s7 + $0x80] sm:$0xff]
  %v3221 = vld [vmem:[%s7 + $0x88] sm:$0xff]
  %v3222 = vld [vmem:[%s7 + $0x90] sm:$0xff]
  %v3223 = vld [vmem:[%s7 + $0x98] sm:$0xff]
  %v3224 = vld [vmem:[%s7 + $0xa0] sm:$0xff]
  %v3225 = vld [vmem:[%s7 + $0xa8] sm:$0xff]
  %v3226 = vld [vmem:[%s7 + $0xb0] sm:$0xff]
  %v3227 = vld [vmem:[%s7 + $0xb8] sm:$0xff]
  %v3228 = vld [vmem:[%s7 + $0xc0] sm:$0xff]
  %v3229 = vld [vmem:[%s7 + $0xc8] sm:$0xff]
  %v3230 = vld [vmem:[%s7 + $0xd0] sm:$0xff]
  %v3231 = vld [vmem:[%s7 + $0xd8] sm:$0xff]
  %v3232 = vld [vmem:[%s7 + $0xe0] sm:$0xff]
  %v3233 = vld [vmem:[%s7 + $0xe8] sm:$0xff]
  %v3234 = vld [vmem:[%s7 + $0xf0] sm:$0xff]
  %v3235 = vld [vmem:[%s7 + $0xf8] sm:$0xff]
  %vm3236 = vcmask 7168
  %v3238 = vsel %vm3236, %v3204, 0
  %v3241 = vsel %vm3236, %v3205, 0
  %v3244 = vsel %vm3236, %v3206, 0
  %v3247 = vsel %vm3236, %v3207, 0
  %v3250 = vsel %vm3236, %v3208, 0
  %v3253 = vsel %vm3236, %v3209, 0
  %v3256 = vsel %vm3236, %v3210, 0
  %v3259 = vsel %vm3236, %v3211, 0
  %v3262 = vsel %vm3236, %v3212, 0
  %v3265 = vsel %vm3236, %v3213, 0
  %v3268 = vsel %vm3236, %v3214, 0
  %v3271 = vsel %vm3236, %v3215, 0
  %v3274 = vsel %vm3236, %v3216, 0
  %v3277 = vsel %vm3236, %v3217, 0
  %v3280 = vsel %vm3236, %v3218, 0
  %v3283 = vsel %vm3236, %v3219, 0
  %v3286 = vsel %vm3236, %v3220, 0
  %v3289 = vsel %vm3236, %v3221, 0
  %v3292 = vsel %vm3236, %v3222, 0
  %v3295 = vsel %vm3236, %v3223, 0
  %v3298 = vsel %vm3236, %v3224, 0
  %v3301 = vsel %vm3236, %v3225, 0
  %v3304 = vsel %vm3236, %v3226, 0
  %v3307 = vsel %vm3236, %v3227, 0
  %v3310 = vsel %vm3236, %v3228, 0
  %v3313 = vsel %vm3236, %v3229, 0
  %v3316 = vsel %vm3236, %v3230, 0
  %v3319 = vsel %vm3236, %v3231, 0
  %v3322 = vsel %vm3236, %v3232, 0
  %v3325 = vsel %vm3236, %v3233, 0
  %v3328 = vsel %vm3236, %v3234, 0
  %v3331 = vsel %vm3236, %v3235, 0
  %vm3333 = vcmask 1040384
  %v3335 = vsel %vm3333, %v3203, 0
  %3337 = vmatpush.msra.mxu0 0.0
  %3338 = vmatpush.msra.mxu0 0.0
  %3339 = vmatpush.msra.mxu0 0.0
  %3340 = vmatpush.msra.mxu0 0.0
  %3341 = vmatpush.msra.mxu0 0.0
  %3342 = vmatpush.msra.mxu0 0.0
  %3343 = vmatpush.msra.mxu0 0.0
  %3344 = vmatpush.msra.mxu0 0.0
  %3345 = vmatpush.msra.mxu0 0.0
  %3346 = vmatpush.msra.mxu0 0.0
  %3347 = vmatpush.msra.mxu0 0.0
  %3348 = vmatpush.msra.mxu0 0.0
  %3349 = vmatpush.msra.mxu0 0.0
  %3350 = vmatpush.msra.mxu0 0.0
  %3351 = vmatpush.msra.mxu0 0.0
  %3352 = vmatpush.msra.mxu0 %v3335
  %3353 = vmatmul.f32.gmra.mxu0 %v3238
  %v3354 = vpop.f32.mrf.mxu0
  %v3355 = vadd.f32 0.0, %v3354
  %3356 = vmatmul.f32.gmra.mxu0 %v3241
  %v3357 = vpop.f32.mrf.mxu0
  %v3358 = vadd.f32 0.0, %v3357
  %3359 = vmatmul.f32.gmra.mxu0 %v3244
  %v3360 = vpop.f32.mrf.mxu0
  %v3361 = vadd.f32 0.0, %v3360
  %3362 = vmatmul.f32.gmra.mxu0 %v3247
  %v3363 = vpop.f32.mrf.mxu0
  %v3364 = vadd.f32 0.0, %v3363
  %3365 = vmatmul.f32.gmra.mxu0 %v3250
  %v3366 = vpop.f32.mrf.mxu0
  %v3367 = vadd.f32 0.0, %v3366
  %3368 = vmatmul.f32.gmra.mxu0 %v3253
  %v3369 = vpop.f32.mrf.mxu0
  %v3370 = vadd.f32 0.0, %v3369
  %3371 = vmatmul.f32.gmra.mxu0 %v3256
  %v3372 = vpop.f32.mrf.mxu0
  %v3373 = vadd.f32 0.0, %v3372
  %3374 = vmatmul.f32.gmra.mxu0 %v3259
  %v3375 = vpop.f32.mrf.mxu0
  %v3376 = vadd.f32 0.0, %v3375
  %3377 = vmatmul.f32.gmra.mxu0 %v3262
  %v3378 = vpop.f32.mrf.mxu0
  %v3379 = vadd.f32 0.0, %v3378
  %3380 = vmatmul.f32.gmra.mxu0 %v3265
  %v3381 = vpop.f32.mrf.mxu0
  %v3382 = vadd.f32 0.0, %v3381
  %3383 = vmatmul.f32.gmra.mxu0 %v3268
  %v3384 = vpop.f32.mrf.mxu0
  %v3385 = vadd.f32 0.0, %v3384
  %3386 = vmatmul.f32.gmra.mxu0 %v3271
  %v3387 = vpop.f32.mrf.mxu0
  %v3388 = vadd.f32 0.0, %v3387
  %3389 = vmatmul.f32.gmra.mxu0 %v3274
  %v3390 = vpop.f32.mrf.mxu0
  %v3391 = vadd.f32 0.0, %v3390
  %3392 = vmatmul.f32.gmra.mxu0 %v3277
  %v3393 = vpop.f32.mrf.mxu0
  %v3394 = vadd.f32 0.0, %v3393
  %3395 = vmatmul.f32.gmra.mxu0 %v3280
  %v3396 = vpop.f32.mrf.mxu0
  %v3397 = vadd.f32 0.0, %v3396
  %3398 = vmatmul.f32.gmra.mxu0 %v3283
  %v3399 = vpop.f32.mrf.mxu0
  %v3400 = vadd.f32 0.0, %v3399
  %3401 = vmatmul.f32.gmra.mxu0 %v3286
  %v3402 = vpop.f32.mrf.mxu0
  %v3403 = vadd.f32 0.0, %v3402
  %3404 = vmatmul.f32.gmra.mxu0 %v3289
  %v3405 = vpop.f32.mrf.mxu0
  %v3406 = vadd.f32 0.0, %v3405
  %3407 = vmatmul.f32.gmra.mxu0 %v3292
  %v3408 = vpop.f32.mrf.mxu0
  %v3409 = vadd.f32 0.0, %v3408
  %3410 = vmatmul.f32.gmra.mxu0 %v3295
  %v3411 = vpop.f32.mrf.mxu0
  %v3412 = vadd.f32 0.0, %v3411
  %3413 = vmatmul.f32.gmra.mxu0 %v3298
  %v3414 = vpop.f32.mrf.mxu0
  %v3415 = vadd.f32 0.0, %v3414
  %3416 = vmatmul.f32.gmra.mxu0 %v3301
  %v3417 = vpop.f32.mrf.mxu0
  %v3418 = vadd.f32 0.0, %v3417
  %3419 = vmatmul.f32.gmra.mxu0 %v3304
  %v3420 = vpop.f32.mrf.mxu0
  %v3421 = vadd.f32 0.0, %v3420
  %3422 = vmatmul.f32.gmra.mxu0 %v3307
  %v3423 = vpop.f32.mrf.mxu0
  %v3424 = vadd.f32 0.0, %v3423
  %3425 = vmatmul.f32.gmra.mxu0 %v3310
  %v3426 = vpop.f32.mrf.mxu0
  %v3427 = vadd.f32 0.0, %v3426
  %3428 = vmatmul.f32.gmra.mxu0 %v3313
  %v3429 = vpop.f32.mrf.mxu0
  %v3430 = vadd.f32 0.0, %v3429
  %3431 = vmatmul.f32.gmra.mxu0 %v3316
  %v3432 = vpop.f32.mrf.mxu0
  %v3433 = vadd.f32 0.0, %v3432
  %3434 = vmatmul.f32.gmra.mxu0 %v3319
  %v3435 = vpop.f32.mrf.mxu0
  %v3436 = vadd.f32 0.0, %v3435
  %3437 = vmatmul.f32.gmra.mxu0 %v3322
  %v3438 = vpop.f32.mrf.mxu0
  %v3439 = vadd.f32 0.0, %v3438
  %3440 = vmatmul.f32.gmra.mxu0 %v3325
  %v3441 = vpop.f32.mrf.mxu0
  %v3442 = vadd.f32 0.0, %v3441
  %3443 = vmatmul.f32.gmra.mxu0 %v3328
  %v3444 = vpop.f32.mrf.mxu0
  %v3445 = vadd.f32 0.0, %v3444
  %3446 = vmatmul.f32.gmra.mxu0 %v3331
  %v3447 = vpop.f32.mrf.mxu0
  %v3448 = vadd.f32 0.0, %v3447
  %3449 = vdwg.mxu0
  %v3450 = vmul.f32 %v3050, %v3355
  %v3451 = vmul.f32 %v3051, %v3358
  %v3452 = vmul.f32 %v3052, %v3361
  %v3453 = vmul.f32 %v3053, %v3364
  %v3454 = vmul.f32 %v3054, %v3367
  %v3455 = vmul.f32 %v3055, %v3370
  %v3456 = vmul.f32 %v3056, %v3373
  %v3457 = vmul.f32 %v3057, %v3376
  %v3458 = vmul.f32 %v3058, %v3379
  %v3459 = vmul.f32 %v3059, %v3382
  %v3460 = vmul.f32 %v3060, %v3385
  %v3461 = vmul.f32 %v3061, %v3388
  %v3462 = vmul.f32 %v3062, %v3391
  %v3463 = vmul.f32 %v3063, %v3394
  %v3464 = vmul.f32 %v3064, %v3397
  %v3465 = vmul.f32 %v3065, %v3400
  %v3466 = vmul.f32 %v3066, %v3403
  %v3467 = vmul.f32 %v3067, %v3406
  %v3468 = vmul.f32 %v3068, %v3409
  %v3469 = vmul.f32 %v3069, %v3412
  %v3470 = vmul.f32 %v3070, %v3415
  %v3471 = vmul.f32 %v3071, %v3418
  %v3472 = vmul.f32 %v3072, %v3421
  %v3473 = vmul.f32 %v3073, %v3424
  %v3474 = vmul.f32 %v3074, %v3427
  %v3475 = vmul.f32 %v3075, %v3430
  %v3476 = vmul.f32 %v3076, %v3433
  %v3477 = vmul.f32 %v3077, %v3436
  %v3478 = vmul.f32 %v3078, %v3439
  %v3479 = vmul.f32 %v3079, %v3442
  %v3480 = vmul.f32 %v3080, %v3445
  %v3481 = vmul.f32 %v3081, %v3448
  %3482 = vst.msk [vmem:[%s8] sm:$0xff] %vm232, %v3450
  %3483 = vst.msk [vmem:[%s8 + $0x8] sm:$0xff] %vm232, %v3451
  %3484 = vst.msk [vmem:[%s8 + $0x10] sm:$0xff] %vm232, %v3452
  %3485 = vst.msk [vmem:[%s8 + $0x18] sm:$0xff] %vm232, %v3453
  %3486 = vst.msk [vmem:[%s8 + $0x20] sm:$0xff] %vm232, %v3454
  %3487 = vst.msk [vmem:[%s8 + $0x28] sm:$0xff] %vm232, %v3455
  %3488 = vst.msk [vmem:[%s8 + $0x30] sm:$0xff] %vm232, %v3456
  %3489 = vst.msk [vmem:[%s8 + $0x38] sm:$0xff] %vm232, %v3457
  %3490 = vst.msk [vmem:[%s8 + $0x40] sm:$0xff] %vm232, %v3458
  %3491 = vst.msk [vmem:[%s8 + $0x48] sm:$0xff] %vm232, %v3459
  %3492 = vst.msk [vmem:[%s8 + $0x50] sm:$0xff] %vm232, %v3460
  %3493 = vst.msk [vmem:[%s8 + $0x58] sm:$0xff] %vm232, %v3461
  %3494 = vst.msk [vmem:[%s8 + $0x60] sm:$0xff] %vm232, %v3462
  %3495 = vst.msk [vmem:[%s8 + $0x68] sm:$0xff] %vm232, %v3463
  %3496 = vst.msk [vmem:[%s8 + $0x70] sm:$0xff] %vm232, %v3464
  %3497 = vst.msk [vmem:[%s8 + $0x78] sm:$0xff] %vm232, %v3465
  %3498 = vst.msk [vmem:[%s8 + $0x80] sm:$0xff] %vm232, %v3466
  %3499 = vst.msk [vmem:[%s8 + $0x88] sm:$0xff] %vm232, %v3467
  %3500 = vst.msk [vmem:[%s8 + $0x90] sm:$0xff] %vm232, %v3468
  %3501 = vst.msk [vmem:[%s8 + $0x98] sm:$0xff] %vm232, %v3469
  %3502 = vst.msk [vmem:[%s8 + $0xa0] sm:$0xff] %vm232, %v3470
  %3503 = vst.msk [vmem:[%s8 + $0xa8] sm:$0xff] %vm232, %v3471
  %3504 = vst.msk [vmem:[%s8 + $0xb0] sm:$0xff] %vm232, %v3472
  %3505 = vst.msk [vmem:[%s8 + $0xb8] sm:$0xff] %vm232, %v3473
  %3506 = vst.msk [vmem:[%s8 + $0xc0] sm:$0xff] %vm232, %v3474
  %3507 = vst.msk [vmem:[%s8 + $0xc8] sm:$0xff] %vm232, %v3475
  %3508 = vst.msk [vmem:[%s8 + $0xd0] sm:$0xff] %vm232, %v3476
  %3509 = vst.msk [vmem:[%s8 + $0xd8] sm:$0xff] %vm232, %v3477
  %3510 = vst.msk [vmem:[%s8 + $0xe0] sm:$0xff] %vm232, %v3478
  %3511 = vst.msk [vmem:[%s8 + $0xe8] sm:$0xff] %vm232, %v3479
  %3512 = vst.msk [vmem:[%s8 + $0xf0] sm:$0xff] %vm232, %v3480
  %3513 = vst.msk [vmem:[%s8 + $0xf8] sm:$0xff] %vm232, %v3481
  // Predicated region
  $region34: #{tpu_custom_call.1} parent=0 // pred_check
    _
  $region35: #{tpu_custom_call.1} parent=0 // pred_check_branch
    %3515 = sbr.rel (0) target = $region37
  $region36: #{tpu_custom_call.1} parent=0 // pred_region
    _
  $region37: #{tpu_custom_call.1} parent=0 // pred_fallthru
    _
  // Predicated region
  $region38: #{tpu_custom_call.1} parent=0 // pred_check
    _
  $region39: #{tpu_custom_call.1} parent=0 // pred_check_branch
    %3517 = sbr.rel (0) target = $region41
  $region40: #{tpu_custom_call.1} parent=0 // pred_region
    _
  $region41: #{tpu_custom_call.1} parent=0 // pred_fallthru
    _

</llo_original>
